<compile_context>
chip_gen: v6e
topology: v6e:2x2x1
jax: 0.10.0
libtpu: 0.0.40
codegen_flags: <defaults>
</compile_context>

<pallas_src>
import functools

import jax
import jax.numpy as jnp
from jax import lax
from jax.experimental import pallas as pl
from jax.experimental.pallas import tpu as pltpu

LANE = 128
MASK_VALUE = -1e30                       # python float literal (safe to inline in kernels)
VMEM_LIMIT = 48 * 1024 * 1024            # explicit scoped-VMEM budget; fits v5e/v6e/v7x


def _round_up(n, m):
    return ((n + m - 1) // m) * m


def _pick_tile(n, prefs=(512, 256, 128)):
    """Largest preferred tile dividing n (n is a multiple of 128)."""
    for t in prefs:
        if n % t == 0:
            return t
    return n


# ---------------------------------------------------------------------------
# Kernel 1: fused feature/attention projection  hcat = x @ [W | W·a_src | W·a_dst]
# ---------------------------------------------------------------------------
def gat_project_kernel(f_out_pad, x_ref, w_ref, h_ref, att_ref):
    hcat = jnp.dot(x_ref[...].astype(jnp.bfloat16), w_ref[...],
                   preferred_element_type=jnp.float32)        # [tm, f_out_pad + 128]
    h_ref[...] = hcat[:, :f_out_pad].astype(h_ref.dtype)      # projected features (bf16)
    att_ref[...] = hcat[:, f_out_pad:]                        # col 0 = a_src, col 1 = a_dst (f32)


def gat_project(x_pad, wcat, f_out_pad):
    n_pad, f_in = x_pad.shape
    tm = _pick_tile(n_pad)
    kernel = functools.partial(gat_project_kernel, f_out_pad)
    return pl.pallas_call(
        kernel,
        out_shape=(jax.ShapeDtypeStruct((n_pad, f_out_pad), jnp.bfloat16),
                   jax.ShapeDtypeStruct((n_pad, LANE), jnp.float32)),
        grid_spec=pltpu.PrefetchScalarGridSpec(
            num_scalar_prefetch=0,
            grid=(n_pad // tm,),
            in_specs=[pl.BlockSpec((tm, f_in), lambda i: (i, 0)),
                      pl.BlockSpec((f_in, f_out_pad + LANE), lambda i: (0, 0))],
            out_specs=(pl.BlockSpec((tm, f_out_pad), lambda i: (i, 0)),
                       pl.BlockSpec((tm, LANE), lambda i: (i, 0)))),
        compiler_params=pltpu.CompilerParams(
            dimension_semantics=("parallel",),
            vmem_limit_bytes=VMEM_LIMIT),
    )(x_pad, wcat)


# ---------------------------------------------------------------------------
# Kernel 2: masked attention + aggregation with an online (flash-style) softmax
# ---------------------------------------------------------------------------
def _online_softmax_step(adst_ref, asrc_ref, adjb_ref, h_ref, m_sc, l_sc, acc_sc):
    @pl.when(pl.program_id(1) == 0)
    def _():
        m_sc[...] = jnp.full(m_sc.shape, MASK_VALUE, m_sc.dtype)
        l_sc[...] = jnp.zeros(l_sc.shape, l_sc.dtype)
        acc_sc[...] = jnp.zeros(acc_sc.shape, acc_sc.dtype)

    # e[i, j] = LeakyReLU_0.2(a_dst[i] + a_src[j]) + additive adjacency mask.
    e = adst_ref[...] + asrc_ref[...]                 # [tm,1] + [1,tk] -> [tm,tk] f32
    e = jnp.where(e > 0, e, 0.2 * e)                  # LeakyReLU(negative_slope=0.2)
    e = e + adjb_ref[...].astype(jnp.float32)         # 0 where edge, -1e30 elsewhere

    m_prev = m_sc[...]
    m_new = jnp.maximum(m_prev, jnp.max(e, axis=-1, keepdims=True))
    corr = jnp.exp(m_prev - m_new)
    p = jnp.exp(e - m_new)                            # exactly 0 where masked
    l_sc[...] = corr * l_sc[...] + jnp.sum(p, axis=-1, keepdims=True)
    acc_sc[...] = corr * acc_sc[...] + jnp.dot(
        p.astype(h_ref.dtype), h_ref[...], preferred_element_type=jnp.float32)
    m_sc[...] = m_new


def gat_attn_relu_kernel(adst_ref, asrc_ref, adjb_ref, h_ref, b_ref, o_ref,
                         m_sc, l_sc, acc_sc):
    _online_softmax_step(adst_ref, asrc_ref, adjb_ref, h_ref, m_sc, l_sc, acc_sc)

    @pl.when(pl.program_id(1) == pl.num_programs(1) - 1)
    def _():
        out = acc_sc[...] * pl.reciprocal(l_sc[...], approx=True) + b_ref[...]
        o_ref[...] = jnp.maximum(out, 0.0)            # fused F.relu


def gat_attn_final_kernel(n_class, adst_ref, asrc_ref, adjb_ref, h_ref, b_ref,
                          h_out_ref, p_out_ref, m_sc, l_sc, acc_sc):
    _online_softmax_step(adst_ref, asrc_ref, adjb_ref, h_ref, m_sc, l_sc, acc_sc)

    @pl.when(pl.program_id(1) == pl.num_programs(1) - 1)
    def _():
        out = acc_sc[...] * pl.reciprocal(l_sc[...], approx=True) + b_ref[...]
        h_out_ref[...] = out
        # F.softmax(h, dim=1): softmax over classes; mask out lane-padding cols.
        col = lax.broadcasted_iota(jnp.int32, out.shape, 1)
        hm = jnp.where(col < n_class, out, MASK_VALUE)
        mx = jnp.max(hm, axis=-1, keepdims=True)
        ex = jnp.exp(hm - mx)
        p_out_ref[...] = ex / jnp.sum(ex, axis=-1, keepdims=True)


def gat_attention(a_dst_col, a_src_row, adj_bias, h_proj, b_pad, *, relu, n_class=None):
    n_pad, f_out_pad = h_proj.shape
    tm = _pick_tile(n_pad)                  # target-row block
    tk = _pick_tile(n_pad)                  # source block (streamed / reduced over)
    grid = (n_pad // tm, n_pad // tk)

    in_specs = [
        pl.BlockSpec((tm, 1), lambda i, j: (i, 0)),          # a_dst (target column)
        pl.BlockSpec((1, tk), lambda i, j: (0, j)),          # a_src (source row)
        pl.BlockSpec((tm, tk), lambda i, j: (i, j)),         # additive adjacency bias (bf16)
        pl.BlockSpec((tk, f_out_pad), lambda i, j: (j, 0)),  # projected source features (bf16)
        pl.BlockSpec((1, f_out_pad), lambda i, j: (0, 0)),   # layer bias
    ]
    scratch = [pltpu.VMEM((tm, 1), jnp.float32),             # running row max
               pltpu.VMEM((tm, 1), jnp.float32),             # running row sum
               pltpu.VMEM((tm, f_out_pad), jnp.float32)]     # output accumulator
    cparams = pltpu.CompilerParams(
        dimension_semantics=("parallel", "arbitrary"),
        vmem_limit_bytes=VMEM_LIMIT)
    args = (a_dst_col, a_src_row, adj_bias, h_proj, b_pad)

    if relu:
        return pl.pallas_call(
            gat_attn_relu_kernel,
            out_shape=jax.ShapeDtypeStruct((n_pad, f_out_pad), jnp.float32),
            grid_spec=pltpu.PrefetchScalarGridSpec(
                num_scalar_prefetch=0, grid=grid, in_specs=in_specs,
                out_specs=pl.BlockSpec((tm, f_out_pad), lambda i, j: (i, 0)),
                scratch_shapes=scratch),
            compiler_params=cparams,
        )(*args)

    kernel = functools.partial(gat_attn_final_kernel, n_class)
    return pl.pallas_call(
        kernel,
        out_shape=(jax.ShapeDtypeStruct((n_pad, f_out_pad), jnp.float32),
                   jax.ShapeDtypeStruct((n_pad, f_out_pad), jnp.float32)),
        grid_spec=pltpu.PrefetchScalarGridSpec(
            num_scalar_prefetch=0, grid=grid, in_specs=in_specs,
            out_specs=(pl.BlockSpec((tm, f_out_pad), lambda i, j: (i, 0)),
                       pl.BlockSpec((tm, f_out_pad), lambda i, j: (i, 0))),
            scratch_shapes=scratch),
        compiler_params=cparams,
    )(*args)


# ---------------------------------------------------------------------------
# One GATConv layer = projection kernel + attention kernel (+ tiny JAX glue)
# ---------------------------------------------------------------------------
def gat_conv_layer(x_pad, adj_bias, wcat, b_pad, *, relu, n_class=None):
    f_out_pad = b_pad.shape[1]
    n_pad = x_pad.shape[0]
    h_proj, att = gat_project(x_pad, wcat, f_out_pad)
    a_src_row = att[:, 0].reshape(1, n_pad)      # per-source logit contribution, row layout
    a_dst_col = att[:, 1:2]                      # per-target logit contribution, column layout
    return gat_attention(a_dst_col, a_src_row, adj_bias, h_proj, b_pad,
                         relu=relu, n_class=n_class)


@functools.partial(jax.jit, static_argnames=("num_nodes", "dim_out"))
def gat_forward(x_pad, adj_bias, params, num_nodes, dim_out):
    """Two-layer architecture: gat1 -> relu -> gat2 -> (h, softmax(h, dim=1))."""
    h1 = gat_conv_layer(x_pad, adj_bias, params["wcat1"], params["b1"], relu=True)
    h_pad, p_pad = gat_conv_layer(h1, adj_bias, params["wcat2"], params["b2"],
                                  relu=False, n_class=dim_out)
    return h_pad[:num_nodes, :dim_out], p_pad[:num_nodes, :dim_out]


# ---------------------------------------------------------------------------
# Plain-JAX glue: densification, padding, parameter packing
# ---------------------------------------------------------------------------
def edge_index_to_bias(edge_index, num_pad):
    """Additive attention mask bias[target, source]: 0 on edges / self-loops,
    -1e30 elsewhere (bf16).  Self-loops are added for padded rows too so every
    softmax row has a finite max and positive denominator (no NaN in padding)."""
    bias = jnp.full((num_pad, num_pad), MASK_VALUE, jnp.float32)
    bias = bias.at[edge_index[1], edge_index[0]].set(0.0)     # edge source -> target
    idx = jnp.arange(num_pad)
    bias = bias.at[idx, idx].set(0.0)                          # add_self_loops=True
    return bias.astype(jnp.bfloat16)


def init_gat_params(key, dim_in, dim_h1, dim_out):
    """Deterministic synthetic parameters (glorot-style scaling)."""
    ks = jax.random.split(key, 6)

    def glorot(k, shape):
        fan_in, fan_out = shape[0], shape[-1]
        lim = (6.0 / (fan_in + fan_out)) ** 0.5
        return jax.random.uniform(k, shape, jnp.float32, -lim, lim)

    return {
        "w1": glorot(ks[0], (dim_in, dim_h1)),
        "att_src1": glorot(ks[1], (dim_h1,)),
        "att_dst1": glorot(ks[2], (dim_h1,)),
        "b1": jnp.zeros((dim_h1,), jnp.float32),
        "w2": glorot(ks[3], (dim_h1, dim_out)),
        "att_src2": glorot(ks[4], (dim_out,)),
        "att_dst2": glorot(ks[5], (dim_out,)),
        "b2": jnp.zeros((dim_out,), jnp.float32),
    }


def pack_gatconv(w, att_src, att_dst, bias, f_in_pad):
    """Fuse W with the attention vectors: [W_pad | W·a_src | W·a_dst | 0...] (bf16)."""
    f_in, f_out = w.shape
    f_out_pad = _round_up(f_out, LANE)
    wcat = jnp.zeros((f_in_pad, f_out_pad + LANE), jnp.float32)
    wcat = wcat.at[:f_in, :f_out].set(w)
    wcat = wcat.at[:f_in, f_out_pad].set(w @ att_src)
    wcat = wcat.at[:f_in, f_out_pad + 1].set(w @ att_dst)
    b_pad = jnp.zeros((1, f_out_pad), jnp.float32).at[0, :f_out].set(bias)
    return wcat.astype(jnp.bfloat16), b_pad


def pack_gat_params(raw, dim_in, dim_h1, dim_out):
    wcat1, b1 = pack_gatconv(raw["w1"], raw["att_src1"], raw["att_dst1"],
                             raw["b1"], f_in_pad=dim_in)
    wcat2, b2 = pack_gatconv(raw["w2"], raw["att_src2"], raw["att_dst2"],
                             raw["b2"], f_in_pad=_round_up(dim_h1, LANE))
    return {"wcat1": wcat1, "b1": b1, "wcat2": wcat2, "b2": b2}


if __name__ == "__main__":
    N, DIM_IN, DIM_H1, DIM_OUT, E = 16, 8, 16, 4, 40

    key = jax.random.PRNGKey(0)
    k_x, k_src, k_dst, k_p = jax.random.split(key, 4)

    x = jax.random.normal(k_x, (N, DIM_IN), jnp.float32)
    src = jax.random.randint(k_src, (E,), 0, N)
    dst = jax.random.randint(k_dst, (E,), 0, N)
    edge_index = jnp.stack([src, dst], axis=0)        # [2, E], row0=source, row1=target

    n_pad = _round_up(N, LANE)
    x_pad = jnp.zeros((n_pad, DIM_IN), jnp.float32).at[:N].set(x)
    adj_bias = edge_index_to_bias(edge_index, n_pad)

    raw_params = init_gat_params(k_p, DIM_IN, DIM_H1, DIM_OUT)
    params = pack_gat_params(raw_params, DIM_IN, DIM_H1, DIM_OUT)

    h, probs = gat_forward(x_pad, adj_bias, params, num_nodes=N, dim_out=DIM_OUT)
    jax.block_until_ready((h, probs))

    assert h.shape == (N, DIM_OUT) and probs.shape == (N, DIM_OUT)
    assert bool(jnp.all(jnp.isfinite(h))) and bool(jnp.all(jnp.isfinite(probs)))
    assert bool(jnp.allclose(jnp.sum(probs, axis=1), 1.0, atol=1e-5))
    print("KERNEL_OK")
</pallas_src>

<mosaic_0001>
module attributes {stable_mosaic.version = 11 : i64} {
  func.func @gat_project_kernel(%arg0: i32, %arg1: memref<128x8xf32, #tpu.memory_space<vmem>>, %arg2: memref<8x256xbf16, #tpu.memory_space<vmem>>, %arg3: memref<128x128xbf16, #tpu.memory_space<vmem>>, %arg4: memref<128x128xf32, #tpu.memory_space<vmem>>) attributes {dimension_semantics = [#tpu.dimension_semantics<parallel>], iteration_bounds = array<i64: 1>, scalar_prefetch = 0 : i64, scratch_operands = 0 : i64, tpu.core_type = #tpu.core_type<tc>, window_params = [{transform_indices = @transform_0, window_bounds = array<i64: 128, 8>}, {pipeline_mode = #tpu.pipeline_mode<synchronous>, transform_indices = @transform_1, window_bounds = array<i64: 8, 256>}, {transform_indices = @transform_2, window_bounds = array<i64: 128, 128>}, {transform_indices = @transform_3, window_bounds = array<i64: 128, 128>}]} {
    %c0 = arith.constant 0 : index
    %c0_0 = arith.constant 0 : index
    %0 = vector.load %arg1[%c0, %c0_0] : memref<128x8xf32, #tpu.memory_space<vmem>>, vector<128x8xf32>
    %1 = arith.truncf %0 : vector<128x8xf32> to vector<128x8xbf16>
    %c0_1 = arith.constant 0 : index
    %c0_2 = arith.constant 0 : index
    %2 = vector.load %arg2[%c0_1, %c0_2] : memref<8x256xbf16, #tpu.memory_space<vmem>>, vector<8x256xbf16>
    %cst = arith.constant dense<0.000000e+00> : vector<128x256xf32>
    %3 = tpu.matmul %1, %2, %cst {dimension_numbers = #tpu.dot_dimension_numbers<[1], [0], [0], [1], [0, 0, 1, 1], [], []>} : vector<128x8xbf16>, vector<8x256xbf16>, vector<128x256xf32> -> vector<128x256xf32>
    %4 = vector.extract_strided_slice %3 {offsets = [0, 0], sizes = [128, 128], strides = [1, 1]} : vector<128x256xf32> to vector<128x128xf32>
    %5 = arith.truncf %4 : vector<128x128xf32> to vector<128x128xbf16>
    %c0_3 = arith.constant 0 : index
    %c0_4 = arith.constant 0 : index
    %6 = vector.load %arg3[%c0_3, %c0_4] : memref<128x128xbf16, #tpu.memory_space<vmem>>, vector<128x128xbf16>
    tpu.vector_store %arg3[%c0_3, %c0_4], %5 {strides = array<i32>} : memref<128x128xbf16, #tpu.memory_space<vmem>>, vector<128x128xbf16>,
    %7 = vector.extract_strided_slice %3 {offsets = [0, 128], sizes = [128, 128], strides = [1, 1]} : vector<128x256xf32> to vector<128x128xf32>
    %c0_5 = arith.constant 0 : index
    %c0_6 = arith.constant 0 : index
    %8 = vector.load %arg4[%c0_5, %c0_6] : memref<128x128xf32, #tpu.memory_space<vmem>>, vector<128x128xf32>
    tpu.vector_store %arg4[%c0_5, %c0_6], %7 {strides = array<i32>} : memref<128x128xf32, #tpu.memory_space<vmem>>, vector<128x128xf32>,
    return
  }
  func.func @transform_0(%arg0: i32) -> (i32, i32) {
    %c0_i32 = arith.constant 0 : i32
    %c0_i32_0 = arith.constant 0 : i32
    return %arg0, %c0_i32 : i32, i32
  }
  func.func @transform_1(%arg0: i32) -> (i32, i32) {
    %c0_i32 = arith.constant 0 : i32
    %c0_i32_0 = arith.constant 0 : i32
    %c0_i32_1 = arith.constant 0 : i32
    return %c0_i32, %c0_i32_0 : i32, i32
  }
  func.func @transform_2(%arg0: i32) -> (i32, i32) {
    %c0_i32 = arith.constant 0 : i32
    %c0_i32_0 = arith.constant 0 : i32
    return %arg0, %c0_i32 : i32, i32
  }
  func.func @transform_3(%arg0: i32) -> (i32, i32) {
    %c0_i32 = arith.constant 0 : i32
    %c0_i32_0 = arith.constant 0 : i32
    return %arg0, %c0_i32 : i32, i32
  }
}

module attributes {stable_mosaic.version = 11 : i64} {
  func.func @gat_attn_relu_kernel(%arg0: i32, %arg1: i32, %arg2: memref<128x1xf32, #tpu.memory_space<vmem>>, %arg3: memref<1x128xf32, #tpu.memory_space<vmem>>, %arg4: memref<128x128xbf16, #tpu.memory_space<vmem>>, %arg5: memref<128x128xbf16, #tpu.memory_space<vmem>>, %arg6: memref<1x128xf32, #tpu.memory_space<vmem>>, %arg7: memref<128x128xf32, #tpu.memory_space<vmem>>, %arg8: memref<128x1xf32, #tpu.memory_space<vmem>>, %arg9: memref<128x1xf32, #tpu.memory_space<vmem>>, %arg10: memref<128x128xf32, #tpu.memory_space<vmem>>) attributes {dimension_semantics = [#tpu.dimension_semantics<parallel>, #tpu.dimension_semantics<arbitrary>], iteration_bounds = array<i64: 1, 1>, scalar_prefetch = 0 : i64, scratch_operands = 3 : i64, tpu.core_type = #tpu.core_type<tc>, window_params = [{transform_indices = @transform_0, window_bounds = array<i64: 128, 1>}, {transform_indices = @transform_1, window_bounds = array<i64: 1, 128>}, {transform_indices = @transform_2, window_bounds = array<i64: 128, 128>}, {transform_indices = @transform_3, window_bounds = array<i64: 128, 128>}, {pipeline_mode = #tpu.pipeline_mode<synchronous>, transform_indices = @transform_4, window_bounds = array<i64: 1, 128>}, {transform_indices = @transform_5, window_bounds = array<i64: 128, 128>}]} {
    %c0_i32 = arith.constant 0 : i32
    %0 = arith.cmpi eq, %arg1, %c0_i32 : i32
    %1 = arith.extui %0 : i1 to i32
    %c0_i32_0 = arith.constant 0 : i32
    %2 = arith.cmpi ne, %1, %c0_i32_0 : i32
    scf.if %2 {
      %cst_26 = arith.constant -1.000000e+30 : f32
      %43 = vector.broadcast %cst_26 : f32 to vector<128x1xf32>
      %c0_27 = arith.constant 0 : index
      %c0_28 = arith.constant 0 : index
      %44 = vector.load %arg8[%c0_27, %c0_28] : memref<128x1xf32, #tpu.memory_space<vmem>>, vector<128x1xf32>
      tpu.vector_store %arg8[%c0_27, %c0_28], %43 {strides = array<i32>} : memref<128x1xf32, #tpu.memory_space<vmem>>, vector<128x1xf32>,
      %cst_29 = arith.constant 0.000000e+00 : f32
      %45 = vector.broadcast %cst_29 : f32 to vector<128x1xf32>
      %c0_30 = arith.constant 0 : index
      %c0_31 = arith.constant 0 : index
      %46 = vector.load %arg9[%c0_30, %c0_31] : memref<128x1xf32, #tpu.memory_space<vmem>>, vector<128x1xf32>
      tpu.vector_store %arg9[%c0_30, %c0_31], %45 {strides = array<i32>} : memref<128x1xf32, #tpu.memory_space<vmem>>, vector<128x1xf32>,
      %cst_32 = arith.constant 0.000000e+00 : f32
      %47 = vector.broadcast %cst_32 : f32 to vector<128x128xf32>
      %c0_33 = arith.constant 0 : index
      %c0_34 = arith.constant 0 : index
      %48 = vector.load %arg10[%c0_33, %c0_34] : memref<128x128xf32, #tpu.memory_space<vmem>>, vector<128x128xf32>
      tpu.vector_store %arg10[%c0_33, %c0_34], %47 {strides = array<i32>} : memref<128x128xf32, #tpu.memory_space<vmem>>, vector<128x128xf32>,
    } else {
    }
    %c0 = arith.constant 0 : index
    %c0_1 = arith.constant 0 : index
    %3 = vector.load %arg2[%c0, %c0_1] : memref<128x1xf32, #tpu.memory_space<vmem>>, vector<128x1xf32>
    %c0_2 = arith.constant 0 : index
    %c0_3 = arith.constant 0 : index
    %4 = vector.load %arg3[%c0_2, %c0_3] : memref<1x128xf32, #tpu.memory_space<vmem>>, vector<1x128xf32>
    %5 = vector.broadcast %3 : vector<128x1xf32> to vector<128x128xf32>
    %6 = vector.broadcast %4 : vector<1x128xf32> to vector<128x128xf32>
    %7 = arith.addf %5, %6 : vector<128x128xf32>
    %cst = arith.constant 0.000000e+00 : f32
    %8 = vector.broadcast %cst : f32 to vector<128x128xf32>
    %9 = arith.cmpf ogt, %7, %8 : vector<128x128xf32>
    %cst_4 = arith.constant 2.000000e-01 : f32
    %10 = vector.broadcast %cst_4 : f32 to vector<128x128xf32>
    %11 = arith.mulf %10, %7 : vector<128x128xf32>
    %12 = arith.select %9, %7, %11 : vector<128x128xi1>, vector<128x128xf32>
    %c0_5 = arith.constant 0 : index
    %c0_6 = arith.constant 0 : index
    %13 = vector.load %arg4[%c0_5, %c0_6] : memref<128x128xbf16, #tpu.memory_space<vmem>>, vector<128x128xbf16>
    %14 = arith.extf %13 : vector<128x128xbf16> to vector<128x128xf32>
    %15 = arith.addf %12, %14 : vector<128x128xf32>
    %c0_7 = arith.constant 0 : index
    %c0_8 = arith.constant 0 : index
    %16 = vector.load %arg8[%c0_7, %c0_8] : memref<128x1xf32, #tpu.memory_space<vmem>>, vector<128x1xf32>
    %cst_9 = arith.constant dense<0xFF800000> : vector<128xf32>
    %17 = vector.multi_reduction <maximumf>, %15, %cst_9 [1] : vector<128x128xf32> to vector<128xf32>
    %18 = vector.shape_cast %17 : vector<128xf32> to vector<128x1xf32>
    %19 = arith.maximumf %16, %18 : vector<128x1xf32>
    %20 = arith.subf %16, %19 : vector<128x1xf32>
    %21 = math.exp %20 : vector<128x1xf32>
    %22 = vector.broadcast %19 : vector<128x1xf32> to vector<128x128xf32>
    %23 = arith.subf %15, %22 : vector<128x128xf32>
    %24 = math.exp %23 : vector<128x128xf32>
    %c0_10 = arith.constant 0 : index
    %c0_11 = arith.constant 0 : index
    %25 = vector.load %arg9[%c0_10, %c0_11] : memref<128x1xf32, #tpu.memory_space<vmem>>, vector<128x1xf32>
    %26 = arith.mulf %21, %25 : vector<128x1xf32>
    %cst_12 = arith.constant dense<0.000000e+00> : vector<128xf32>
    %27 = vector.multi_reduction <add>, %24, %cst_12 [1] : vector<128x128xf32> to vector<128xf32>
    %28 = vector.shape_cast %27 : vector<128xf32> to vector<128x1xf32>
    %29 = arith.addf %26, %28 : vector<128x1xf32>
    %c0_13 = arith.constant 0 : index
    %c0_14 = arith.constant 0 : index
    %30 = vector.load %arg9[%c0_13, %c0_14] : memref<128x1xf32, #tpu.memory_space<vmem>>, vector<128x1xf32>
    tpu.vector_store %arg9[%c0_13, %c0_14], %29 {strides = array<i32>} : memref<128x1xf32, #tpu.memory_space<vmem>>, vector<128x1xf32>,
    %c0_15 = arith.constant 0 : index
    %c0_16 = arith.constant 0 : index
    %31 = vector.load %arg10[%c0_15, %c0_16] : memref<128x128xf32, #tpu.memory_space<vmem>>, vector<128x128xf32>
    %32 = vector.broadcast %21 : vector<128x1xf32> to vector<128x128xf32>
    %33 = arith.mulf %32, %31 : vector<128x128xf32>
    %34 = arith.truncf %24 : vector<128x128xf32> to vector<128x128xbf16>
    %c0_17 = arith.constant 0 : index
    %c0_18 = arith.constant 0 : index
    %35 = vector.load %arg5[%c0_17, %c0_18] : memref<128x128xbf16, #tpu.memory_space<vmem>>, vector<128x128xbf16>
    %cst_19 = arith.constant dense<0.000000e+00> : vector<128x128xf32>
    %36 = tpu.matmul %34, %35, %cst_19 {dimension_numbers = #tpu.dot_dimension_numbers<[1], [0], [0], [1], [0, 0, 1, 1], [], []>} : vector<128x128xbf16>, vector<128x128xbf16>, vector<128x128xf32> -> vector<128x128xf32>
    %37 = arith.addf %33, %36 : vector<128x128xf32>
    %c0_20 = arith.constant 0 : index
    %c0_21 = arith.constant 0 : index
    %38 = vector.load %arg10[%c0_20, %c0_21] : memref<128x128xf32, #tpu.memory_space<vmem>>, vector<128x128xf32>
    tpu.vector_store %arg10[%c0_20, %c0_21], %37 {strides = array<i32>} : memref<128x128xf32, #tpu.memory_space<vmem>>, vector<128x128xf32>,
    %c0_22 = arith.constant 0 : index
    %c0_23 = arith.constant 0 : index
    %39 = vector.load %arg8[%c0_22, %c0_23] : memref<128x1xf32, #tpu.memory_space<vmem>>, vector<128x1xf32>
    tpu.vector_store %arg8[%c0_22, %c0_23], %19 {strides = array<i32>} : memref<128x1xf32, #tpu.memory_space<vmem>>, vector<128x1xf32>,
    %c0_i32_24 = arith.constant 0 : i32
    %40 = arith.cmpi eq, %arg1, %c0_i32_24 : i32
    %41 = arith.extui %40 : i1 to i32
    %c0_i32_25 = arith.constant 0 : i32
    %42 = arith.cmpi ne, %41, %c0_i32_25 : i32
    scf.if %42 {
      %c0_26 = arith.constant 0 : index
      %c0_27 = arith.constant 0 : index
      %43 = vector.load %arg10[%c0_26, %c0_27] : memref<128x128xf32, #tpu.memory_space<vmem>>, vector<128x128xf32>
      %c0_28 = arith.constant 0 : index
      %c0_29 = arith.constant 0 : index
      %44 = vector.load %arg9[%c0_28, %c0_29] : memref<128x1xf32, #tpu.memory_space<vmem>>, vector<128x1xf32>
      %45 = tpu.reciprocal %44 {approx = true} : vector<128x1xf32> -> vector<128x1xf32>
      %46 = vector.broadcast %45 : vector<128x1xf32> to vector<128x128xf32>
      %47 = arith.mulf %43, %46 : vector<128x128xf32>
      %c0_30 = arith.constant 0 : index
      %c0_31 = arith.constant 0 : index
      %48 = vector.load %arg6[%c0_30, %c0_31] : memref<1x128xf32, #tpu.memory_space<vmem>>, vector<1x128xf32>
      %49 = vector.broadcast %48 : vector<1x128xf32> to vector<128x128xf32>
      %50 = arith.addf %47, %49 : vector<128x128xf32>
      %cst_32 = arith.constant 0.000000e+00 : f32
      %51 = vector.broadcast %cst_32 : f32 to vector<128x128xf32>
      %52 = arith.maximumf %50, %51 : vector<128x128xf32>
      %c0_33 = arith.constant 0 : index
      %c0_34 = arith.constant 0 : index
      %53 = vector.load %arg7[%c0_33, %c0_34] : memref<128x128xf32, #tpu.memory_space<vmem>>, vector<128x128xf32>
      tpu.vector_store %arg7[%c0_33, %c0_34], %52 {strides = array<i32>} : memref<128x128xf32, #tpu.memory_space<vmem>>, vector<128x128xf32>,
    } else {
    }
    return
  }
  func.func @transform_0(%arg0: i32, %arg1: i32) -> (i32, i32) {
    %c0_i32 = arith.constant 0 : i32
    %c0_i32_0 = arith.constant 0 : i32
    return %arg0, %c0_i32 : i32, i32
  }
  func.func @transform_1(%arg0: i32, %arg1: i32) -> (i32, i32) {
    %c0_i32 = arith.constant 0 : i32
    %c0_i32_0 = arith.constant 0 : i32
    return %c0_i32, %arg1 : i32, i32
  }
  func.func @transform_2(%arg0: i32, %arg1: i32) -> (i32, i32) {
    %c0_i32 = arith.constant 0 : i32
    return %arg0, %arg1 : i32, i32
  }
  func.func @transform_3(%arg0: i32, %arg1: i32) -> (i32, i32) {
    %c0_i32 = arith.constant 0 : i32
    %c0_i32_0 = arith.constant 0 : i32
    return %arg1, %c0_i32 : i32, i32
  }
  func.func @transform_4(%arg0: i32, %arg1: i32) -> (i32, i32) {
    %c0_i32 = arith.constant 0 : i32
    %c0_i32_0 = arith.constant 0 : i32
    %c0_i32_1 = arith.constant 0 : i32
    return %c0_i32, %c0_i32_0 : i32, i32
  }
  func.func @transform_5(%arg0: i32, %arg1: i32) -> (i32, i32) {
    %c0_i32 = arith.constant 0 : i32
    %c0_i32_0 = arith.constant 0 : i32
    return %arg0, %c0_i32 : i32, i32
  }
}

module attributes {stable_mosaic.version = 11 : i64} {
  func.func @gat_project_kernel(%arg0: i32, %arg1: memref<128x128xf32, #tpu.memory_space<vmem>>, %arg2: memref<128x256xbf16, #tpu.memory_space<vmem>>, %arg3: memref<128x128xbf16, #tpu.memory_space<vmem>>, %arg4: memref<128x128xf32, #tpu.memory_space<vmem>>) attributes {dimension_semantics = [#tpu.dimension_semantics<parallel>], iteration_bounds = array<i64: 1>, scalar_prefetch = 0 : i64, scratch_operands = 0 : i64, tpu.core_type = #tpu.core_type<tc>, window_params = [{transform_indices = @transform_0, window_bounds = array<i64: 128, 128>}, {pipeline_mode = #tpu.pipeline_mode<synchronous>, transform_indices = @transform_1, window_bounds = array<i64: 128, 256>}, {transform_indices = @transform_2, window_bounds = array<i64: 128, 128>}, {transform_indices = @transform_3, window_bounds = array<i64: 128, 128>}]} {
    %c0 = arith.constant 0 : index
    %c0_0 = arith.constant 0 : index
    %0 = vector.load %arg1[%c0, %c0_0] : memref<128x128xf32, #tpu.memory_space<vmem>>, vector<128x128xf32>
    %1 = arith.truncf %0 : vector<128x128xf32> to vector<128x128xbf16>
    %c0_1 = arith.constant 0 : index
    %c0_2 = arith.constant 0 : index
    %2 = vector.load %arg2[%c0_1, %c0_2] : memref<128x256xbf16, #tpu.memory_space<vmem>>, vector<128x256xbf16>
    %cst = arith.constant dense<0.000000e+00> : vector<128x256xf32>
    %3 = tpu.matmul %1, %2, %cst {dimension_numbers = #tpu.dot_dimension_numbers<[1], [0], [0], [1], [0, 0, 1, 1], [], []>} : vector<128x128xbf16>, vector<128x256xbf16>, vector<128x256xf32> -> vector<128x256xf32>
    %4 = vector.extract_strided_slice %3 {offsets = [0, 0], sizes = [128, 128], strides = [1, 1]} : vector<128x256xf32> to vector<128x128xf32>
    %5 = arith.truncf %4 : vector<128x128xf32> to vector<128x128xbf16>
    %c0_3 = arith.constant 0 : index
    %c0_4 = arith.constant 0 : index
    %6 = vector.load %arg3[%c0_3, %c0_4] : memref<128x128xbf16, #tpu.memory_space<vmem>>, vector<128x128xbf16>
    tpu.vector_store %arg3[%c0_3, %c0_4], %5 {strides = array<i32>} : memref<128x128xbf16, #tpu.memory_space<vmem>>, vector<128x128xbf16>,
    %7 = vector.extract_strided_slice %3 {offsets = [0, 128], sizes = [128, 128], strides = [1, 1]} : vector<128x256xf32> to vector<128x128xf32>
    %c0_5 = arith.constant 0 : index
    %c0_6 = arith.constant 0 : index
    %8 = vector.load %arg4[%c0_5, %c0_6] : memref<128x128xf32, #tpu.memory_space<vmem>>, vector<128x128xf32>
    tpu.vector_store %arg4[%c0_5, %c0_6], %7 {strides = array<i32>} : memref<128x128xf32, #tpu.memory_space<vmem>>, vector<128x128xf32>,
    return
  }
  func.func @transform_0(%arg0: i32) -> (i32, i32) {
    %c0_i32 = arith.constant 0 : i32
    %c0_i32_0 = arith.constant 0 : i32
    return %arg0, %c0_i32 : i32, i32
  }
  func.func @transform_1(%arg0: i32) -> (i32, i32) {
    %c0_i32 = arith.constant 0 : i32
    %c0_i32_0 = arith.constant 0 : i32
    %c0_i32_1 = arith.constant 0 : i32
    return %c0_i32, %c0_i32_0 : i32, i32
  }
  func.func @transform_2(%arg0: i32) -> (i32, i32) {
    %c0_i32 = arith.constant 0 : i32
    %c0_i32_0 = arith.constant 0 : i32
    return %arg0, %c0_i32 : i32, i32
  }
  func.func @transform_3(%arg0: i32) -> (i32, i32) {
    %c0_i32 = arith.constant 0 : i32
    %c0_i32_0 = arith.constant 0 : i32
    return %arg0, %c0_i32 : i32, i32
  }
}

module attributes {stable_mosaic.version = 11 : i64} {
  func.func @gat_attn_final_kernel(%arg0: i32, %arg1: i32, %arg2: memref<128x1xf32, #tpu.memory_space<vmem>>, %arg3: memref<1x128xf32, #tpu.memory_space<vmem>>, %arg4: memref<128x128xbf16, #tpu.memory_space<vmem>>, %arg5: memref<128x128xbf16, #tpu.memory_space<vmem>>, %arg6: memref<1x128xf32, #tpu.memory_space<vmem>>, %arg7: memref<128x128xf32, #tpu.memory_space<vmem>>, %arg8: memref<128x128xf32, #tpu.memory_space<vmem>>, %arg9: memref<128x1xf32, #tpu.memory_space<vmem>>, %arg10: memref<128x1xf32, #tpu.memory_space<vmem>>, %arg11: memref<128x128xf32, #tpu.memory_space<vmem>>) attributes {dimension_semantics = [#tpu.dimension_semantics<parallel>, #tpu.dimension_semantics<arbitrary>], iteration_bounds = array<i64: 1, 1>, scalar_prefetch = 0 : i64, scratch_operands = 3 : i64, tpu.core_type = #tpu.core_type<tc>, window_params = [{transform_indices = @transform_0, window_bounds = array<i64: 128, 1>}, {transform_indices = @transform_1, window_bounds = array<i64: 1, 128>}, {transform_indices = @transform_2, window_bounds = array<i64: 128, 128>}, {transform_indices = @transform_3, window_bounds = array<i64: 128, 128>}, {pipeline_mode = #tpu.pipeline_mode<synchronous>, transform_indices = @transform_4, window_bounds = array<i64: 1, 128>}, {transform_indices = @transform_5, window_bounds = array<i64: 128, 128>}, {transform_indices = @transform_6, window_bounds = array<i64: 128, 128>}]} {
    %c0_i32 = arith.constant 0 : i32
    %0 = arith.cmpi eq, %arg1, %c0_i32 : i32
    %1 = arith.extui %0 : i1 to i32
    %c0_i32_0 = arith.constant 0 : i32
    %2 = arith.cmpi ne, %1, %c0_i32_0 : i32
    scf.if %2 {
      %cst_26 = arith.constant -1.000000e+30 : f32
      %43 = vector.broadcast %cst_26 : f32 to vector<128x1xf32>
      %c0_27 = arith.constant 0 : index
      %c0_28 = arith.constant 0 : index
      %44 = vector.load %arg9[%c0_27, %c0_28] : memref<128x1xf32, #tpu.memory_space<vmem>>, vector<128x1xf32>
      tpu.vector_store %arg9[%c0_27, %c0_28], %43 {strides = array<i32>} : memref<128x1xf32, #tpu.memory_space<vmem>>, vector<128x1xf32>,
      %cst_29 = arith.constant 0.000000e+00 : f32
      %45 = vector.broadcast %cst_29 : f32 to vector<128x1xf32>
      %c0_30 = arith.constant 0 : index
      %c0_31 = arith.constant 0 : index
      %46 = vector.load %arg10[%c0_30, %c0_31] : memref<128x1xf32, #tpu.memory_space<vmem>>, vector<128x1xf32>
      tpu.vector_store %arg10[%c0_30, %c0_31], %45 {strides = array<i32>} : memref<128x1xf32, #tpu.memory_space<vmem>>, vector<128x1xf32>,
      %cst_32 = arith.constant 0.000000e+00 : f32
      %47 = vector.broadcast %cst_32 : f32 to vector<128x128xf32>
      %c0_33 = arith.constant 0 : index
      %c0_34 = arith.constant 0 : index
      %48 = vector.load %arg11[%c0_33, %c0_34] : memref<128x128xf32, #tpu.memory_space<vmem>>, vector<128x128xf32>
      tpu.vector_store %arg11[%c0_33, %c0_34], %47 {strides = array<i32>} : memref<128x128xf32, #tpu.memory_space<vmem>>, vector<128x128xf32>,
    } else {
    }
    %c0 = arith.constant 0 : index
    %c0_1 = arith.constant 0 : index
    %3 = vector.load %arg2[%c0, %c0_1] : memref<128x1xf32, #tpu.memory_space<vmem>>, vector<128x1xf32>
    %c0_2 = arith.constant 0 : index
    %c0_3 = arith.constant 0 : index
    %4 = vector.load %arg3[%c0_2, %c0_3] : memref<1x128xf32, #tpu.memory_space<vmem>>, vector<1x128xf32>
    %5 = vector.broadcast %3 : vector<128x1xf32> to vector<128x128xf32>
    %6 = vector.broadcast %4 : vector<1x128xf32> to vector<128x128xf32>
    %7 = arith.addf %5, %6 : vector<128x128xf32>
    %cst = arith.constant 0.000000e+00 : f32
    %8 = vector.broadcast %cst : f32 to vector<128x128xf32>
    %9 = arith.cmpf ogt, %7, %8 : vector<128x128xf32>
    %cst_4 = arith.constant 2.000000e-01 : f32
    %10 = vector.broadcast %cst_4 : f32 to vector<128x128xf32>
    %11 = arith.mulf %10, %7 : vector<128x128xf32>
    %12 = arith.select %9, %7, %11 : vector<128x128xi1>, vector<128x128xf32>
    %c0_5 = arith.constant 0 : index
    %c0_6 = arith.constant 0 : index
    %13 = vector.load %arg4[%c0_5, %c0_6] : memref<128x128xbf16, #tpu.memory_space<vmem>>, vector<128x128xbf16>
    %14 = arith.extf %13 : vector<128x128xbf16> to vector<128x128xf32>
    %15 = arith.addf %12, %14 : vector<128x128xf32>
    %c0_7 = arith.constant 0 : index
    %c0_8 = arith.constant 0 : index
    %16 = vector.load %arg9[%c0_7, %c0_8] : memref<128x1xf32, #tpu.memory_space<vmem>>, vector<128x1xf32>
    %cst_9 = arith.constant dense<0xFF800000> : vector<128xf32>
    %17 = vector.multi_reduction <maximumf>, %15, %cst_9 [1] : vector<128x128xf32> to vector<128xf32>
    %18 = vector.shape_cast %17 : vector<128xf32> to vector<128x1xf32>
    %19 = arith.maximumf %16, %18 : vector<128x1xf32>
    %20 = arith.subf %16, %19 : vector<128x1xf32>
    %21 = math.exp %20 : vector<128x1xf32>
    %22 = vector.broadcast %19 : vector<128x1xf32> to vector<128x128xf32>
    %23 = arith.subf %15, %22 : vector<128x128xf32>
    %24 = math.exp %23 : vector<128x128xf32>
    %c0_10 = arith.constant 0 : index
    %c0_11 = arith.constant 0 : index
    %25 = vector.load %arg10[%c0_10, %c0_11] : memref<128x1xf32, #tpu.memory_space<vmem>>, vector<128x1xf32>
    %26 = arith.mulf %21, %25 : vector<128x1xf32>
    %cst_12 = arith.constant dense<0.000000e+00> : vector<128xf32>
    %27 = vector.multi_reduction <add>, %24, %cst_12 [1] : vector<128x128xf32> to vector<128xf32>
    %28 = vector.shape_cast %27 : vector<128xf32> to vector<128x1xf32>
    %29 = arith.addf %26, %28 : vector<128x1xf32>
    %c0_13 = arith.constant 0 : index
    %c0_14 = arith.constant 0 : index
    %30 = vector.load %arg10[%c0_13, %c0_14] : memref<128x1xf32, #tpu.memory_space<vmem>>, vector<128x1xf32>
    tpu.vector_store %arg10[%c0_13, %c0_14], %29 {strides = array<i32>} : memref<128x1xf32, #tpu.memory_space<vmem>>, vector<128x1xf32>,
    %c0_15 = arith.constant 0 : index
    %c0_16 = arith.constant 0 : index
    %31 = vector.load %arg11[%c0_15, %c0_16] : memref<128x128xf32, #tpu.memory_space<vmem>>, vector<128x128xf32>
    %32 = vector.broadcast %21 : vector<128x1xf32> to vector<128x128xf32>
    %33 = arith.mulf %32, %31 : vector<128x128xf32>
    %34 = arith.truncf %24 : vector<128x128xf32> to vector<128x128xbf16>
    %c0_17 = arith.constant 0 : index
    %c0_18 = arith.constant 0 : index
    %35 = vector.load %arg5[%c0_17, %c0_18] : memref<128x128xbf16, #tpu.memory_space<vmem>>, vector<128x128xbf16>
    %cst_19 = arith.constant dense<0.000000e+00> : vector<128x128xf32>
    %36 = tpu.matmul %34, %35, %cst_19 {dimension_numbers = #tpu.dot_dimension_numbers<[1], [0], [0], [1], [0, 0, 1, 1], [], []>} : vector<128x128xbf16>, vector<128x128xbf16>, vector<128x128xf32> -> vector<128x128xf32>
    %37 = arith.addf %33, %36 : vector<128x128xf32>
    %c0_20 = arith.constant 0 : index
    %c0_21 = arith.constant 0 : index
    %38 = vector.load %arg11[%c0_20, %c0_21] : memref<128x128xf32, #tpu.memory_space<vmem>>, vector<128x128xf32>
    tpu.vector_store %arg11[%c0_20, %c0_21], %37 {strides = array<i32>} : memref<128x128xf32, #tpu.memory_space<vmem>>, vector<128x128xf32>,
    %c0_22 = arith.constant 0 : index
    %c0_23 = arith.constant 0 : index
    %39 = vector.load %arg9[%c0_22, %c0_23] : memref<128x1xf32, #tpu.memory_space<vmem>>, vector<128x1xf32>
    tpu.vector_store %arg9[%c0_22, %c0_23], %19 {strides = array<i32>} : memref<128x1xf32, #tpu.memory_space<vmem>>, vector<128x1xf32>,
    %c0_i32_24 = arith.constant 0 : i32
    %40 = arith.cmpi eq, %arg1, %c0_i32_24 : i32
    %41 = arith.extui %40 : i1 to i32
    %c0_i32_25 = arith.constant 0 : i32
    %42 = arith.cmpi ne, %41, %c0_i32_25 : i32
    scf.if %42 {
      %c0_26 = arith.constant 0 : index
      %c0_27 = arith.constant 0 : index
      %43 = vector.load %arg11[%c0_26, %c0_27] : memref<128x128xf32, #tpu.memory_space<vmem>>, vector<128x128xf32>
      %c0_28 = arith.constant 0 : index
      %c0_29 = arith.constant 0 : index
      %44 = vector.load %arg10[%c0_28, %c0_29] : memref<128x1xf32, #tpu.memory_space<vmem>>, vector<128x1xf32>
      %45 = tpu.reciprocal %44 {approx = true} : vector<128x1xf32> -> vector<128x1xf32>
      %46 = vector.broadcast %45 : vector<128x1xf32> to vector<128x128xf32>
      %47 = arith.mulf %43, %46 : vector<128x128xf32>
      %c0_30 = arith.constant 0 : index
      %c0_31 = arith.constant 0 : index
      %48 = vector.load %arg6[%c0_30, %c0_31] : memref<1x128xf32, #tpu.memory_space<vmem>>, vector<1x128xf32>
      %49 = vector.broadcast %48 : vector<1x128xf32> to vector<128x128xf32>
      %50 = arith.addf %47, %49 : vector<128x128xf32>
      %c0_32 = arith.constant 0 : index
      %c0_33 = arith.constant 0 : index
      %51 = vector.load %arg7[%c0_32, %c0_33] : memref<128x128xf32, #tpu.memory_space<vmem>>, vector<128x128xf32>
      tpu.vector_store %arg7[%c0_32, %c0_33], %50 {strides = array<i32>} : memref<128x128xf32, #tpu.memory_space<vmem>>, vector<128x128xf32>,
      %52 = tpu.iota {dimensions = array<i32: 1>} : vector<128x128xi32>
      %c4_i32 = arith.constant 4 : i32
      %53 = vector.broadcast %c4_i32 : i32 to vector<128x128xi32>
      %54 = arith.cmpi slt, %52, %53 : vector<128x128xi32>
      %cst_34 = arith.constant -1.000000e+30 : f32
      %55 = vector.broadcast %cst_34 : f32 to vector<128x128xf32>
      %56 = arith.select %54, %50, %55 : vector<128x128xi1>, vector<128x128xf32>
      %cst_35 = arith.constant dense<0xFF800000> : vector<128xf32>
      %57 = vector.multi_reduction <maximumf>, %56, %cst_35 [1] : vector<128x128xf32> to vector<128xf32>
      %58 = vector.shape_cast %57 : vector<128xf32> to vector<128x1xf32>
      %59 = vector.broadcast %58 : vector<128x1xf32> to vector<128x128xf32>
      %60 = arith.subf %56, %59 : vector<128x128xf32>
      %61 = math.exp %60 : vector<128x128xf32>
      %cst_36 = arith.constant dense<0.000000e+00> : vector<128xf32>
      %62 = vector.multi_reduction <add>, %61, %cst_36 [1] : vector<128x128xf32> to vector<128xf32>
      %63 = vector.shape_cast %62 : vector<128xf32> to vector<128x1xf32>
      %64 = vector.broadcast %63 : vector<128x1xf32> to vector<128x128xf32>
      %65 = arith.divf %61, %64 : vector<128x128xf32>
      %c0_37 = arith.constant 0 : index
      %c0_38 = arith.constant 0 : index
      %66 = vector.load %arg8[%c0_37, %c0_38] : memref<128x128xf32, #tpu.memory_space<vmem>>, vector<128x128xf32>
      tpu.vector_store %arg8[%c0_37, %c0_38], %65 {strides = array<i32>} : memref<128x128xf32, #tpu.memory_space<vmem>>, vector<128x128xf32>,
    } else {
    }
    return
  }
  func.func @transform_0(%arg0: i32, %arg1: i32) -> (i32, i32) {
    %c0_i32 = arith.constant 0 : i32
    %c0_i32_0 = arith.constant 0 : i32
    return %arg0, %c0_i32 : i32, i32
  }
  func.func @transform_1(%arg0: i32, %arg1: i32) -> (i32, i32) {
    %c0_i32 = arith.constant 0 : i32
    %c0_i32_0 = arith.constant 0 : i32
    return %c0_i32, %arg1 : i32, i32
  }
  func.func @transform_2(%arg0: i32, %arg1: i32) -> (i32, i32) {
    %c0_i32 = arith.constant 0 : i32
    return %arg0, %arg1 : i32, i32
  }
  func.func @transform_3(%arg0: i32, %arg1: i32) -> (i32, i32) {
    %c0_i32 = arith.constant 0 : i32
    %c0_i32_0 = arith.constant 0 : i32
    return %arg1, %c0_i32 : i32, i32
  }
  func.func @transform_4(%arg0: i32, %arg1: i32) -> (i32, i32) {
    %c0_i32 = arith.constant 0 : i32
    %c0_i32_0 = arith.constant 0 : i32
    %c0_i32_1 = arith.constant 0 : i32
    return %c0_i32, %c0_i32_0 : i32, i32
  }
  func.func @transform_5(%arg0: i32, %arg1: i32) -> (i32, i32) {
    %c0_i32 = arith.constant 0 : i32
    %c0_i32_0 = arith.constant 0 : i32
    return %arg0, %c0_i32 : i32, i32
  }
  func.func @transform_6(%arg0: i32, %arg1: i32) -> (i32, i32) {
    %c0_i32 = arith.constant 0 : i32
    %c0_i32_0 = arith.constant 0 : i32
    return %arg0, %c0_i32 : i32, i32
  }
}

</mosaic_0001>

<llo_original>
// kernel: gat_forward.4
$region0: #{gat_forward.4}
  #allocation0 [shape = 'u32[]', space=smem, size = 0x4, offset = 0x4, fixed_abs, tag = 'smem constant byte address 0x4 - core index']
  #allocation1 [shape = 'u32[144,128]{1,0:T(1,128)}', space=vmem, size = 0x12000, scoped, tag = 'internal scratch']
  %s0 = inlined_call_operand.vmem [shape: f32[128,8], index: 0, kind: input, shape index: {}]
  %s1 = inlined_call_operand.vmem [shape: bf16[8,256], index: 1, kind: input, shape index: {}]
  %s2 = inlined_call_operand.vmem [shape: bf16[128,128], index: 2, kind: output, shape index: {0}]
  %s3 = inlined_call_operand.vmem [shape: f32[128,128], index: 3, kind: output, shape index: {1}]
  %4 = xla_tuple %s2, %s3
  %s5 = sld [smem:[#allocation0]]
  $region26: #{gat_forward.4} parent=0
    _
  %s7 = ssub.s32 1, %s5
  %s8 = scalar_select 0, %s7, %s5
  // Predicated region
  $region2: #{gat_forward.4} parent=0 // pred_check
    _
  $region3: #{gat_forward.4} parent=0 // pred_check_branch
    %10 = sbr.rel (0) target = $region5
  $region4: #{gat_forward.4} parent=0 // pred_region
    _
  $region5: #{gat_forward.4} parent=0 // pred_fallthru
    _
  // Predicated region
  $region6: #{gat_forward.4} parent=0 // pred_check
    _
  $region7: #{gat_forward.4} parent=0 // pred_check_branch
    %12 = sbr.rel (0) target = $region9
  $region8: #{gat_forward.4} parent=0 // pred_region
    _
  $region9: #{gat_forward.4} parent=0 // pred_fallthru
    _
  %v14 = vld [vmem:[%s0] sm:$0xff]
  %v15 = vld [vmem:[%s0 + $0x8] sm:$0xff]
  %v16 = vld [vmem:[%s0 + $0x10] sm:$0xff]
  %v17 = vld [vmem:[%s0 + $0x18] sm:$0xff]
  %v18 = vld [vmem:[%s0 + $0x20] sm:$0xff]
  %v19 = vld [vmem:[%s0 + $0x28] sm:$0xff]
  %v20 = vld [vmem:[%s0 + $0x30] sm:$0xff]
  %v21 = vld [vmem:[%s0 + $0x38] sm:$0xff]
  %v22 = vld [vmem:[%s0 + $0x40] sm:$0xff]
  %v23 = vld [vmem:[%s0 + $0x48] sm:$0xff]
  %v24 = vld [vmem:[%s0 + $0x50] sm:$0xff]
  %v25 = vld [vmem:[%s0 + $0x58] sm:$0xff]
  %v26 = vld [vmem:[%s0 + $0x60] sm:$0xff]
  %v27 = vld [vmem:[%s0 + $0x68] sm:$0xff]
  %v28 = vld [vmem:[%s0 + $0x70] sm:$0xff]
  %v29 = vld [vmem:[%s0 + $0x78] sm:$0xff]
  %v30 = vpack.c.bf16 %v15, %v14
  %v31 = vpack.c.bf16 %v17, %v16
  %v32 = vpack.c.bf16 %v19, %v18
  %v33 = vpack.c.bf16 %v21, %v20
  %v34 = vpack.c.bf16 %v23, %v22
  %v35 = vpack.c.bf16 %v25, %v24
  %v36 = vpack.c.bf16 %v27, %v26
  %v37 = vpack.c.bf16 %v29, %v28
  %v38 = vld [vmem:[%s1] sm:$0xff]
  %v40 = vunpack.c.l.b16 %v38
  %v41 = vunpack.c.h.b16 %v38
  %v42 = vpack.c.b16 %v40, %v40
  %v43 = vpack.c.b16 %v41, %v41
  %vm44 = vcmask 64512
  %v46 = vsel %vm44, %v30, 0
  %v49 = vsel %vm44, %v31, 0
  %v52 = vsel %vm44, %v32, 0
  %v55 = vsel %vm44, %v33, 0
  %v58 = vsel %vm44, %v34, 0
  %v61 = vsel %vm44, %v35, 0
  %v64 = vsel %vm44, %v36, 0
  %v67 = vsel %vm44, %v37, 0
  %vm69 = vcmask 1043456
  %v71 = vsel %vm69, %v42, 0
  %v74 = vsel %vm69, %v43, 0
  %76 = vmatprep.subr.bf16.mxu0 0
  %77 = vmatpush1.bf16.msra.mxu0 0
  %78 = vmatprep.subr.bf16.mxu0 0
  %79 = vmatpush1.bf16.msra.mxu0 0
  %80 = vmatprep.subr.bf16.mxu0 0
  %81 = vmatpush1.bf16.msra.mxu0 0
  %82 = vmatprep.subr.bf16.mxu0 0
  %83 = vmatpush1.bf16.msra.mxu0 0
  %84 = vmatprep.subr.bf16.mxu0 0
  %85 = vmatpush1.bf16.msra.mxu0 0
  %86 = vmatprep.subr.bf16.mxu0 0
  %87 = vmatpush1.bf16.msra.mxu0 0
  %88 = vmatprep.subr.bf16.mxu0 0
  %89 = vmatpush1.bf16.msra.mxu0 0
  %90 = vmatprep.subr.bf16.mxu0 %v74
  %91 = vmatpush1.bf16.msra.mxu0 %v71
  %92 = vmatprep.subr.bf16.mxu0 0
  %93 = vmatpush2.bf16.msra.mxu0 0
  %94 = vmatprep.subr.bf16.mxu0 0
  %95 = vmatpush2.bf16.msra.mxu0 0
  %96 = vmatprep.subr.bf16.mxu0 0
  %97 = vmatpush2.bf16.msra.mxu0 0
  %98 = vmatprep.subr.bf16.mxu0 0
  %99 = vmatpush2.bf16.msra.mxu0 0
  %100 = vmatprep.subr.bf16.mxu0 0
  %101 = vmatpush2.bf16.msra.mxu0 0
  %102 = vmatprep.subr.bf16.mxu0 0
  %103 = vmatpush2.bf16.msra.mxu0 0
  %104 = vmatprep.subr.bf16.mxu0 0
  %105 = vmatpush2.bf16.msra.mxu0 0
  %106 = vmatprep.subr.bf16.mxu0 0
  %107 = vmatpush2.bf16.msra.mxu0 0
  %108 = vmatprep.mubr.bf16.mxu0 0
  %109 = vmatmul.mubr.bf16.gmra.mxu0 %v46
  %v110 = vpop.f32.mrf.mxu0
  %v111 = vadd.f32 0.0, %v110
  %v112 = vpop.f32.mrf.mxu0
  %v113 = vadd.f32 0.0, %v112
  %v114 = vpop.f32.mrf.mxu0
  %v115 = vadd.f32 0.0, %v114
  %v116 = vpop.f32.mrf.mxu0
  %v117 = vadd.f32 0.0, %v116
  %118 = vmatprep.mubr.bf16.mxu0 0
  %119 = vmatmul.mubr.bf16.gmra.mxu0 %v49
  %v120 = vpop.f32.mrf.mxu0
  %v121 = vadd.f32 0.0, %v120
  %v122 = vpop.f32.mrf.mxu0
  %v123 = vadd.f32 0.0, %v122
  %v124 = vpop.f32.mrf.mxu0
  %v125 = vadd.f32 0.0, %v124
  %v126 = vpop.f32.mrf.mxu0
  %v127 = vadd.f32 0.0, %v126
  %128 = vmatprep.mubr.bf16.mxu0 0
  %129 = vmatmul.mubr.bf16.gmra.mxu0 %v52
  %v130 = vpop.f32.mrf.mxu0
  %v131 = vadd.f32 0.0, %v130
  %v132 = vpop.f32.mrf.mxu0
  %v133 = vadd.f32 0.0, %v132
  %v134 = vpop.f32.mrf.mxu0
  %v135 = vadd.f32 0.0, %v134
  %v136 = vpop.f32.mrf.mxu0
  %v137 = vadd.f32 0.0, %v136
  %138 = vmatprep.mubr.bf16.mxu0 0
  %139 = vmatmul.mubr.bf16.gmra.mxu0 %v55
  %v140 = vpop.f32.mrf.mxu0
  %v141 = vadd.f32 0.0, %v140
  %v142 = vpop.f32.mrf.mxu0
  %v143 = vadd.f32 0.0, %v142
  %v144 = vpop.f32.mrf.mxu0
  %v145 = vadd.f32 0.0, %v144
  %v146 = vpop.f32.mrf.mxu0
  %v147 = vadd.f32 0.0, %v146
  %148 = vmatprep.mubr.bf16.mxu0 0
  %149 = vmatmul.mubr.bf16.gmra.mxu0 %v58
  %v150 = vpop.f32.mrf.mxu0
  %v151 = vadd.f32 0.0, %v150
  %v152 = vpop.f32.mrf.mxu0
  %v153 = vadd.f32 0.0, %v152
  %v154 = vpop.f32.mrf.mxu0
  %v155 = vadd.f32 0.0, %v154
  %v156 = vpop.f32.mrf.mxu0
  %v157 = vadd.f32 0.0, %v156
  %158 = vmatprep.mubr.bf16.mxu0 0
  %159 = vmatmul.mubr.bf16.gmra.mxu0 %v61
  %v160 = vpop.f32.mrf.mxu0
  %v161 = vadd.f32 0.0, %v160
  %v162 = vpop.f32.mrf.mxu0
  %v163 = vadd.f32 0.0, %v162
  %v164 = vpop.f32.mrf.mxu0
  %v165 = vadd.f32 0.0, %v164
  %v166 = vpop.f32.mrf.mxu0
  %v167 = vadd.f32 0.0, %v166
  %168 = vmatprep.mubr.bf16.mxu0 0
  %169 = vmatmul.mubr.bf16.gmra.mxu0 %v64
  %v170 = vpop.f32.mrf.mxu0
  %v171 = vadd.f32 0.0, %v170
  %v172 = vpop.f32.mrf.mxu0
  %v173 = vadd.f32 0.0, %v172
  %v174 = vpop.f32.mrf.mxu0
  %v175 = vadd.f32 0.0, %v174
  %v176 = vpop.f32.mrf.mxu0
  %v177 = vadd.f32 0.0, %v176
  %178 = vmatprep.mubr.bf16.mxu0 0
  %179 = vmatmul.mubr.bf16.gmra.mxu0 %v67
  %v180 = vpop.f32.mrf.mxu0
  %v181 = vadd.f32 0.0, %v180
  %v182 = vpop.f32.mrf.mxu0
  %v183 = vadd.f32 0.0, %v182
  %v184 = vpop.f32.mrf.mxu0
  %v185 = vadd.f32 0.0, %v184
  %v186 = vpop.f32.mrf.mxu0
  %v187 = vadd.f32 0.0, %v186
  %188 = vdwg.mxu0
  %v189 = vpack.c.bf16 %v115, %v111
  %v190 = vpack.c.bf16 %v125, %v121
  %v191 = vpack.c.bf16 %v135, %v131
  %v192 = vpack.c.bf16 %v145, %v141
  %v193 = vpack.c.bf16 %v155, %v151
  %v194 = vpack.c.bf16 %v165, %v161
  %v195 = vpack.c.bf16 %v175, %v171
  %v196 = vpack.c.bf16 %v185, %v181
  %v205 = vunpack.c.l.b16 %v189
  %v206 = vunpack.c.h.b16 %v189
  %v207 = vunpack.c.l.b16 %v190
  %v208 = vunpack.c.h.b16 %v190
  %v209 = vunpack.c.l.b16 %v191
  %v210 = vunpack.c.h.b16 %v191
  %v211 = vunpack.c.l.b16 %v192
  %v212 = vunpack.c.h.b16 %v192
  %v213 = vunpack.c.l.b16 %v193
  %v214 = vunpack.c.h.b16 %v193
  %v215 = vunpack.c.l.b16 %v194
  %v216 = vunpack.c.h.b16 %v194
  %v217 = vunpack.c.l.b16 %v195
  %v218 = vunpack.c.h.b16 %v195
  %v219 = vunpack.c.l.b16 %v196
  %v220 = vunpack.c.h.b16 %v196
  %v221 = vpack.c.b16 %v205, %v205
  %v222 = vpack.c.b16 %v206, %v206
  %v223 = vpack.c.b16 %v207, %v207
  %v224 = vpack.c.b16 %v208, %v208
  %v225 = vpack.c.b16 %v209, %v209
  %v226 = vpack.c.b16 %v210, %v210
  %v227 = vpack.c.b16 %v211, %v211
  %v228 = vpack.c.b16 %v212, %v212
  %v229 = vpack.c.b16 %v213, %v213
  %v230 = vpack.c.b16 %v214, %v214
  %v231 = vpack.c.b16 %v215, %v215
  %v232 = vpack.c.b16 %v216, %v216
  %v233 = vpack.c.b16 %v217, %v217
  %v234 = vpack.c.b16 %v218, %v218
  %v235 = vpack.c.b16 %v219, %v219
  %v236 = vpack.c.b16 %v220, %v220
  %253 = vst [vmem:[%s2] sm:$0xf] %v221
  %254 = vst [vmem:[%s2 + $0x4] sm:$0xf] %v222
  %255 = vst [vmem:[%s2 + $0x8] sm:$0xf] %v223
  %256 = vst [vmem:[%s2 + $0xc] sm:$0xf] %v224
  %257 = vst [vmem:[%s2 + $0x10] sm:$0xf] %v225
  %258 = vst [vmem:[%s2 + $0x14] sm:$0xf] %v226
  %259 = vst [vmem:[%s2 + $0x18] sm:$0xf] %v227
  %260 = vst [vmem:[%s2 + $0x1c] sm:$0xf] %v228
  %261 = vst [vmem:[%s2 + $0x20] sm:$0xf] %v229
  %262 = vst [vmem:[%s2 + $0x24] sm:$0xf] %v230
  %263 = vst [vmem:[%s2 + $0x28] sm:$0xf] %v231
  %264 = vst [vmem:[%s2 + $0x2c] sm:$0xf] %v232
  %265 = vst [vmem:[%s2 + $0x30] sm:$0xf] %v233
  %266 = vst [vmem:[%s2 + $0x34] sm:$0xf] %v234
  %267 = vst [vmem:[%s2 + $0x38] sm:$0xf] %v235
  %268 = vst [vmem:[%s2 + $0x3c] sm:$0xf] %v236
  %269 = vst [vmem:[%s3] sm:$0xff] %v113
  %270 = vst [vmem:[%s3 + $0x8] sm:$0xff] %v117
  %271 = vst [vmem:[%s3 + $0x10] sm:$0xff] %v123
  %272 = vst [vmem:[%s3 + $0x18] sm:$0xff] %v127
  %273 = vst [vmem:[%s3 + $0x20] sm:$0xff] %v133
  %274 = vst [vmem:[%s3 + $0x28] sm:$0xff] %v137
  %275 = vst [vmem:[%s3 + $0x30] sm:$0xff] %v143
  %276 = vst [vmem:[%s3 + $0x38] sm:$0xff] %v147
  %277 = vst [vmem:[%s3 + $0x40] sm:$0xff] %v153
  %278 = vst [vmem:[%s3 + $0x48] sm:$0xff] %v157
  %279 = vst [vmem:[%s3 + $0x50] sm:$0xff] %v163
  %280 = vst [vmem:[%s3 + $0x58] sm:$0xff] %v167
  %281 = vst [vmem:[%s3 + $0x60] sm:$0xff] %v173
  %282 = vst [vmem:[%s3 + $0x68] sm:$0xff] %v177
  %283 = vst [vmem:[%s3 + $0x70] sm:$0xff] %v183
  %284 = vst [vmem:[%s3 + $0x78] sm:$0xff] %v187
  // Predicated region
  $region10: #{gat_forward.4} parent=0 // pred_check
    _
  $region11: #{gat_forward.4} parent=0 // pred_check_branch
    %286 = sbr.rel (0) target = $region13
  $region12: #{gat_forward.4} parent=0 // pred_region
    _
  $region13: #{gat_forward.4} parent=0 // pred_fallthru
    _
  // Predicated region
  $region14: #{gat_forward.4} parent=0 // pred_check
    _
  $region15: #{gat_forward.4} parent=0 // pred_check_branch
    %288 = sbr.rel (0) target = $region17
  $region16: #{gat_forward.4} parent=0 // pred_region
    _
  $region17: #{gat_forward.4} parent=0 // pred_fallthru
    _
  // Predicated region
  $region18: #{gat_forward.4} parent=0 // pred_check
    _
  $region19: #{gat_forward.4} parent=0 // pred_check_branch
    %290 = sbr.rel (0) target = $region21
  $region20: #{gat_forward.4} parent=0 // pred_region
    _
  $region21: #{gat_forward.4} parent=0 // pred_fallthru
    _
  // Predicated region
  $region22: #{gat_forward.4} parent=0 // pred_check
    _
  $region23: #{gat_forward.4} parent=0 // pred_check_branch
    %292 = sbr.rel (0) target = $region25
  $region24: #{gat_forward.4} parent=0 // pred_region
    _
  $region25: #{gat_forward.4} parent=0 // pred_fallthru
    _

// kernel: gat_forward.6
$region0: #{gat_forward.6}
  #allocation0 [shape = 'u32[]', space=smem, size = 0x4, offset = 0x4, fixed_abs, tag = 'smem constant byte address 0x4 - core index']
  #allocation1 [shape = 'u32[144,128]{1,0:T(1,128)}', space=vmem, size = 0x12000, scoped, tag = 'internal scratch']
  %s0 = inlined_call_operand.vmem [shape: f32[128,128], index: 0, kind: input, shape index: {}]
  %s1 = inlined_call_operand.vmem [shape: bf16[128,256], index: 1, kind: input, shape index: {}]
  %s2 = inlined_call_operand.vmem [shape: bf16[128,128], index: 2, kind: output, shape index: {0}]
  %s3 = inlined_call_operand.vmem [shape: f32[128,128], index: 3, kind: output, shape index: {1}]
  %4 = xla_tuple %s2, %s3
  %s5 = sld [smem:[#allocation0]]
  $region26: #{gat_forward.6} parent=0
    _
  %s7 = ssub.s32 1, %s5
  %s8 = scalar_select 0, %s7, %s5
  // Predicated region
  $region2: #{gat_forward.6} parent=0 // pred_check
    _
  $region3: #{gat_forward.6} parent=0 // pred_check_branch
    %10 = sbr.rel (0) target = $region5
  $region4: #{gat_forward.6} parent=0 // pred_region
    _
  $region5: #{gat_forward.6} parent=0 // pred_fallthru
    _
  // Predicated region
  $region6: #{gat_forward.6} parent=0 // pred_check
    _
  $region7: #{gat_forward.6} parent=0 // pred_check_branch
    %12 = sbr.rel (0) target = $region9
  $region8: #{gat_forward.6} parent=0 // pred_region
    _
  $region9: #{gat_forward.6} parent=0 // pred_fallthru
    _
  %v14 = vld [vmem:[%s0] sm:$0xff]
  %v15 = vld [vmem:[%s0 + $0x8] sm:$0xff]
  %v16 = vld [vmem:[%s0 + $0x10] sm:$0xff]
  %v17 = vld [vmem:[%s0 + $0x18] sm:$0xff]
  %v18 = vld [vmem:[%s0 + $0x20] sm:$0xff]
  %v19 = vld [vmem:[%s0 + $0x28] sm:$0xff]
  %v20 = vld [vmem:[%s0 + $0x30] sm:$0xff]
  %v21 = vld [vmem:[%s0 + $0x38] sm:$0xff]
  %v22 = vld [vmem:[%s0 + $0x40] sm:$0xff]
  %v23 = vld [vmem:[%s0 + $0x48] sm:$0xff]
  %v24 = vld [vmem:[%s0 + $0x50] sm:$0xff]
  %v25 = vld [vmem:[%s0 + $0x58] sm:$0xff]
  %v26 = vld [vmem:[%s0 + $0x60] sm:$0xff]
  %v27 = vld [vmem:[%s0 + $0x68] sm:$0xff]
  %v28 = vld [vmem:[%s0 + $0x70] sm:$0xff]
  %v29 = vld [vmem:[%s0 + $0x78] sm:$0xff]
  %v30 = vpack.c.bf16 %v15, %v14
  %v31 = vpack.c.bf16 %v17, %v16
  %v32 = vpack.c.bf16 %v19, %v18
  %v33 = vpack.c.bf16 %v21, %v20
  %v34 = vpack.c.bf16 %v23, %v22
  %v35 = vpack.c.bf16 %v25, %v24
  %v36 = vpack.c.bf16 %v27, %v26
  %v37 = vpack.c.bf16 %v29, %v28
  %v38 = vld [vmem:[%s1] sm:$0xff]
  %v39 = vld [vmem:[%s1 + $0x8] sm:$0xff]
  %v40 = vld [vmem:[%s1 + $0x10] sm:$0xff]
  %v41 = vld [vmem:[%s1 + $0x18] sm:$0xff]
  %v42 = vld [vmem:[%s1 + $0x20] sm:$0xff]
  %v43 = vld [vmem:[%s1 + $0x28] sm:$0xff]
  %v44 = vld [vmem:[%s1 + $0x30] sm:$0xff]
  %v45 = vld [vmem:[%s1 + $0x38] sm:$0xff]
  %v46 = vld [vmem:[%s1 + $0x40] sm:$0xff]
  %v47 = vld [vmem:[%s1 + $0x48] sm:$0xff]
  %v48 = vld [vmem:[%s1 + $0x50] sm:$0xff]
  %v49 = vld [vmem:[%s1 + $0x58] sm:$0xff]
  %v50 = vld [vmem:[%s1 + $0x60] sm:$0xff]
  %v51 = vld [vmem:[%s1 + $0x68] sm:$0xff]
  %v52 = vld [vmem:[%s1 + $0x70] sm:$0xff]
  %v53 = vld [vmem:[%s1 + $0x78] sm:$0xff]
  %v70 = vunpack.c.l.b16 %v38
  %v71 = vunpack.c.h.b16 %v38
  %v72 = vunpack.c.l.b16 %v39
  %v73 = vunpack.c.h.b16 %v39
  %v74 = vunpack.c.l.b16 %v40
  %v75 = vunpack.c.h.b16 %v40
  %v76 = vunpack.c.l.b16 %v41
  %v77 = vunpack.c.h.b16 %v41
  %v78 = vunpack.c.l.b16 %v42
  %v79 = vunpack.c.h.b16 %v42
  %v80 = vunpack.c.l.b16 %v43
  %v81 = vunpack.c.h.b16 %v43
  %v82 = vunpack.c.l.b16 %v44
  %v83 = vunpack.c.h.b16 %v44
  %v84 = vunpack.c.l.b16 %v45
  %v85 = vunpack.c.h.b16 %v45
  %v86 = vunpack.c.l.b16 %v46
  %v87 = vunpack.c.h.b16 %v46
  %v88 = vunpack.c.l.b16 %v47
  %v89 = vunpack.c.h.b16 %v47
  %v90 = vunpack.c.l.b16 %v48
  %v91 = vunpack.c.h.b16 %v48
  %v92 = vunpack.c.l.b16 %v49
  %v93 = vunpack.c.h.b16 %v49
  %v94 = vunpack.c.l.b16 %v50
  %v95 = vunpack.c.h.b16 %v50
  %v96 = vunpack.c.l.b16 %v51
  %v97 = vunpack.c.h.b16 %v51
  %v98 = vunpack.c.l.b16 %v52
  %v99 = vunpack.c.h.b16 %v52
  %v100 = vunpack.c.l.b16 %v53
  %v101 = vunpack.c.h.b16 %v53
  %v102 = vpack.c.b16 %v72, %v70
  %v103 = vpack.c.b16 %v73, %v71
  %v104 = vpack.c.b16 %v76, %v74
  %v105 = vpack.c.b16 %v77, %v75
  %v106 = vpack.c.b16 %v80, %v78
  %v107 = vpack.c.b16 %v81, %v79
  %v108 = vpack.c.b16 %v84, %v82
  %v109 = vpack.c.b16 %v85, %v83
  %v110 = vpack.c.b16 %v88, %v86
  %v111 = vpack.c.b16 %v89, %v87
  %v112 = vpack.c.b16 %v92, %v90
  %v113 = vpack.c.b16 %v93, %v91
  %v114 = vpack.c.b16 %v96, %v94
  %v115 = vpack.c.b16 %v97, %v95
  %v116 = vpack.c.b16 %v100, %v98
  %v117 = vpack.c.b16 %v101, %v99
  %134 = vmatprep.subr.bf16.mxu0 %v117
  %135 = vmatpush1.bf16.msra.mxu0 %v116
  %136 = vmatprep.subr.bf16.mxu0 %v115
  %137 = vmatpush1.bf16.msra.mxu0 %v114
  %138 = vmatprep.subr.bf16.mxu0 %v113
  %139 = vmatpush1.bf16.msra.mxu0 %v112
  %140 = vmatprep.subr.bf16.mxu0 %v111
  %141 = vmatpush1.bf16.msra.mxu0 %v110
  %142 = vmatprep.subr.bf16.mxu0 %v109
  %143 = vmatpush1.bf16.msra.mxu0 %v108
  %144 = vmatprep.subr.bf16.mxu0 %v107
  %145 = vmatpush1.bf16.msra.mxu0 %v106
  %146 = vmatprep.subr.bf16.mxu0 %v105
  %147 = vmatpush1.bf16.msra.mxu0 %v104
  %148 = vmatprep.subr.bf16.mxu0 %v103
  %149 = vmatpush1.bf16.msra.mxu0 %v102
  %150 = vmatprep.subr.bf16.mxu0 0
  %151 = vmatpush2.bf16.msra.mxu0 0
  %152 = vmatprep.subr.bf16.mxu0 0
  %153 = vmatpush2.bf16.msra.mxu0 0
  %154 = vmatprep.subr.bf16.mxu0 0
  %155 = vmatpush2.bf16.msra.mxu0 0
  %156 = vmatprep.subr.bf16.mxu0 0
  %157 = vmatpush2.bf16.msra.mxu0 0
  %158 = vmatprep.subr.bf16.mxu0 0
  %159 = vmatpush2.bf16.msra.mxu0 0
  %160 = vmatprep.subr.bf16.mxu0 0
  %161 = vmatpush2.bf16.msra.mxu0 0
  %162 = vmatprep.subr.bf16.mxu0 0
  %163 = vmatpush2.bf16.msra.mxu0 0
  %164 = vmatprep.subr.bf16.mxu0 0
  %165 = vmatpush2.bf16.msra.mxu0 0
  %166 = vmatprep.mubr.bf16.mxu0 0
  %167 = vmatmul.mubr.bf16.gmra.mxu0 %v30
  %v168 = vpop.f32.mrf.mxu0
  %v169 = vadd.f32 0.0, %v168
  %v170 = vpop.f32.mrf.mxu0
  %v171 = vadd.f32 0.0, %v170
  %v172 = vpop.f32.mrf.mxu0
  %v173 = vadd.f32 0.0, %v172
  %v174 = vpop.f32.mrf.mxu0
  %v175 = vadd.f32 0.0, %v174
  %176 = vmatprep.mubr.bf16.mxu0 0
  %177 = vmatmul.mubr.bf16.gmra.mxu0 %v31
  %v178 = vpop.f32.mrf.mxu0
  %v179 = vadd.f32 0.0, %v178
  %v180 = vpop.f32.mrf.mxu0
  %v181 = vadd.f32 0.0, %v180
  %v182 = vpop.f32.mrf.mxu0
  %v183 = vadd.f32 0.0, %v182
  %v184 = vpop.f32.mrf.mxu0
  %v185 = vadd.f32 0.0, %v184
  %186 = vmatprep.mubr.bf16.mxu0 0
  %187 = vmatmul.mubr.bf16.gmra.mxu0 %v32
  %v188 = vpop.f32.mrf.mxu0
  %v189 = vadd.f32 0.0, %v188
  %v190 = vpop.f32.mrf.mxu0
  %v191 = vadd.f32 0.0, %v190
  %v192 = vpop.f32.mrf.mxu0
  %v193 = vadd.f32 0.0, %v192
  %v194 = vpop.f32.mrf.mxu0
  %v195 = vadd.f32 0.0, %v194
  %196 = vmatprep.mubr.bf16.mxu0 0
  %197 = vmatmul.mubr.bf16.gmra.mxu0 %v33
  %v198 = vpop.f32.mrf.mxu0
  %v199 = vadd.f32 0.0, %v198
  %v200 = vpop.f32.mrf.mxu0
  %v201 = vadd.f32 0.0, %v200
  %v202 = vpop.f32.mrf.mxu0
  %v203 = vadd.f32 0.0, %v202
  %v204 = vpop.f32.mrf.mxu0
  %v205 = vadd.f32 0.0, %v204
  %206 = vmatprep.mubr.bf16.mxu0 0
  %207 = vmatmul.mubr.bf16.gmra.mxu0 %v34
  %v208 = vpop.f32.mrf.mxu0
  %v209 = vadd.f32 0.0, %v208
  %v210 = vpop.f32.mrf.mxu0
  %v211 = vadd.f32 0.0, %v210
  %v212 = vpop.f32.mrf.mxu0
  %v213 = vadd.f32 0.0, %v212
  %v214 = vpop.f32.mrf.mxu0
  %v215 = vadd.f32 0.0, %v214
  %216 = vmatprep.mubr.bf16.mxu0 0
  %217 = vmatmul.mubr.bf16.gmra.mxu0 %v35
  %v218 = vpop.f32.mrf.mxu0
  %v219 = vadd.f32 0.0, %v218
  %v220 = vpop.f32.mrf.mxu0
  %v221 = vadd.f32 0.0, %v220
  %v222 = vpop.f32.mrf.mxu0
  %v223 = vadd.f32 0.0, %v222
  %v224 = vpop.f32.mrf.mxu0
  %v225 = vadd.f32 0.0, %v224
  %226 = vmatprep.mubr.bf16.mxu0 0
  %227 = vmatmul.mubr.bf16.gmra.mxu0 %v36
  %v228 = vpop.f32.mrf.mxu0
  %v229 = vadd.f32 0.0, %v228
  %v230 = vpop.f32.mrf.mxu0
  %v231 = vadd.f32 0.0, %v230
  %v232 = vpop.f32.mrf.mxu0
  %v233 = vadd.f32 0.0, %v232
  %v234 = vpop.f32.mrf.mxu0
  %v235 = vadd.f32 0.0, %v234
  %236 = vmatprep.mubr.bf16.mxu0 0
  %237 = vmatmul.mubr.bf16.gmra.mxu0 %v37
  %v238 = vpop.f32.mrf.mxu0
  %v239 = vadd.f32 0.0, %v238
  %v240 = vpop.f32.mrf.mxu0
  %v241 = vadd.f32 0.0, %v240
  %v242 = vpop.f32.mrf.mxu0
  %v243 = vadd.f32 0.0, %v242
  %v244 = vpop.f32.mrf.mxu0
  %v245 = vadd.f32 0.0, %v244
  %246 = vdwg.mxu0
  %v247 = vpack.c.bf16 %v173, %v169
  %v248 = vpack.c.bf16 %v183, %v179
  %v249 = vpack.c.bf16 %v193, %v189
  %v250 = vpack.c.bf16 %v203, %v199
  %v251 = vpack.c.bf16 %v213, %v209
  %v252 = vpack.c.bf16 %v223, %v219
  %v253 = vpack.c.bf16 %v233, %v229
  %v254 = vpack.c.bf16 %v243, %v239
  %v263 = vunpack.c.l.b16 %v247
  %v264 = vunpack.c.h.b16 %v247
  %v265 = vunpack.c.l.b16 %v248
  %v266 = vunpack.c.h.b16 %v248
  %v267 = vunpack.c.l.b16 %v249
  %v268 = vunpack.c.h.b16 %v249
  %v269 = vunpack.c.l.b16 %v250
  %v270 = vunpack.c.h.b16 %v250
  %v271 = vunpack.c.l.b16 %v251
  %v272 = vunpack.c.h.b16 %v251
  %v273 = vunpack.c.l.b16 %v252
  %v274 = vunpack.c.h.b16 %v252
  %v275 = vunpack.c.l.b16 %v253
  %v276 = vunpack.c.h.b16 %v253
  %v277 = vunpack.c.l.b16 %v254
  %v278 = vunpack.c.h.b16 %v254
  %v279 = vpack.c.b16 %v263, %v263
  %v280 = vpack.c.b16 %v264, %v264
  %v281 = vpack.c.b16 %v265, %v265
  %v282 = vpack.c.b16 %v266, %v266
  %v283 = vpack.c.b16 %v267, %v267
  %v284 = vpack.c.b16 %v268, %v268
  %v285 = vpack.c.b16 %v269, %v269
  %v286 = vpack.c.b16 %v270, %v270
  %v287 = vpack.c.b16 %v271, %v271
  %v288 = vpack.c.b16 %v272, %v272
  %v289 = vpack.c.b16 %v273, %v273
  %v290 = vpack.c.b16 %v274, %v274
  %v291 = vpack.c.b16 %v275, %v275
  %v292 = vpack.c.b16 %v276, %v276
  %v293 = vpack.c.b16 %v277, %v277
  %v294 = vpack.c.b16 %v278, %v278
  %311 = vst [vmem:[%s2] sm:$0xf] %v279
  %312 = vst [vmem:[%s2 + $0x4] sm:$0xf] %v280
  %313 = vst [vmem:[%s2 + $0x8] sm:$0xf] %v281
  %314 = vst [vmem:[%s2 + $0xc] sm:$0xf] %v282
  %315 = vst [vmem:[%s2 + $0x10] sm:$0xf] %v283
  %316 = vst [vmem:[%s2 + $0x14] sm:$0xf] %v284
  %317 = vst [vmem:[%s2 + $0x18] sm:$0xf] %v285
  %318 = vst [vmem:[%s2 + $0x1c] sm:$0xf] %v286
  %319 = vst [vmem:[%s2 + $0x20] sm:$0xf] %v287
  %320 = vst [vmem:[%s2 + $0x24] sm:$0xf] %v288
  %321 = vst [vmem:[%s2 + $0x28] sm:$0xf] %v289
  %322 = vst [vmem:[%s2 + $0x2c] sm:$0xf] %v290
  %323 = vst [vmem:[%s2 + $0x30] sm:$0xf] %v291
  %324 = vst [vmem:[%s2 + $0x34] sm:$0xf] %v292
  %325 = vst [vmem:[%s2 + $0x38] sm:$0xf] %v293
  %326 = vst [vmem:[%s2 + $0x3c] sm:$0xf] %v294
  %327 = vst [vmem:[%s3] sm:$0xff] %v171
  %328 = vst [vmem:[%s3 + $0x8] sm:$0xff] %v175
  %329 = vst [vmem:[%s3 + $0x10] sm:$0xff] %v181
  %330 = vst [vmem:[%s3 + $0x18] sm:$0xff] %v185
  %331 = vst [vmem:[%s3 + $0x20] sm:$0xff] %v191
  %332 = vst [vmem:[%s3 + $0x28] sm:$0xff] %v195
  %333 = vst [vmem:[%s3 + $0x30] sm:$0xff] %v201
  %334 = vst [vmem:[%s3 + $0x38] sm:$0xff] %v205
  %335 = vst [vmem:[%s3 + $0x40] sm:$0xff] %v211
  %336 = vst [vmem:[%s3 + $0x48] sm:$0xff] %v215
  %337 = vst [vmem:[%s3 + $0x50] sm:$0xff] %v221
  %338 = vst [vmem:[%s3 + $0x58] sm:$0xff] %v225
  %339 = vst [vmem:[%s3 + $0x60] sm:$0xff] %v231
  %340 = vst [vmem:[%s3 + $0x68] sm:$0xff] %v235
  %341 = vst [vmem:[%s3 + $0x70] sm:$0xff] %v241
  %342 = vst [vmem:[%s3 + $0x78] sm:$0xff] %v245
  // Predicated region
  $region10: #{gat_forward.6} parent=0 // pred_check
    _
  $region11: #{gat_forward.6} parent=0 // pred_check_branch
    %344 = sbr.rel (0) target = $region13
  $region12: #{gat_forward.6} parent=0 // pred_region
    _
  $region13: #{gat_forward.6} parent=0 // pred_fallthru
    _
  // Predicated region
  $region14: #{gat_forward.6} parent=0 // pred_check
    _
  $region15: #{gat_forward.6} parent=0 // pred_check_branch
    %346 = sbr.rel (0) target = $region17
  $region16: #{gat_forward.6} parent=0 // pred_region
    _
  $region17: #{gat_forward.6} parent=0 // pred_fallthru
    _
  // Predicated region
  $region18: #{gat_forward.6} parent=0 // pred_check
    _
  $region19: #{gat_forward.6} parent=0 // pred_check_branch
    %348 = sbr.rel (0) target = $region21
  $region20: #{gat_forward.6} parent=0 // pred_region
    _
  $region21: #{gat_forward.6} parent=0 // pred_fallthru
    _
  // Predicated region
  $region22: #{gat_forward.6} parent=0 // pred_check
    _
  $region23: #{gat_forward.6} parent=0 // pred_check_branch
    %350 = sbr.rel (0) target = $region25
  $region24: #{gat_forward.6} parent=0 // pred_region
    _
  $region25: #{gat_forward.6} parent=0 // pred_fallthru
    _

// kernel: gat_forward.5
$region0: #{gat_forward.5}
  #allocation0 [shape = 'u32[]', space=smem, size = 0x4, offset = 0x4, fixed_abs, tag = 'smem constant byte address 0x4 - core index']
  #allocation1 [shape = 'u32[144,128]{1,0:T(1,128)}', space=vmem, size = 0x12000, scoped, tag = 'internal scratch']
  #allocation2 [shape = 'f32[128,1]{1,0:T(8,128)}', space=vmem, size = 0x10000, scoped, tag = 'scratch operand']
  #allocation3 [shape = 'f32[128,1]{1,0:T(8,128)}', space=vmem, size = 0x10000, scoped, tag = 'scratch operand']
  #allocation4 [shape = 'f32[128,128]{1,0:T(8,128)}', space=vmem, size = 0x10000, scoped, tag = 'scratch operand']
  %s0 = inlined_call_operand.vmem [shape: f32[128,1], index: 0, kind: input, shape index: {}]
  %s1 = inlined_call_operand.vmem [shape: f32[1,128], index: 1, kind: input, shape index: {}]
  %s2 = inlined_call_operand.vmem [shape: bf16[128,128], index: 2, kind: input, shape index: {}]
  %s3 = inlined_call_operand.vmem [shape: bf16[128,128], index: 3, kind: input, shape index: {}]
  %s4 = inlined_call_operand.vmem [shape: f32[1,128], index: 4, kind: input, shape index: {}]
  %s5 = inlined_call_operand.vmem [shape: f32[128,128], index: 5, kind: output, shape index: {}]
  %s6 = sld [smem:[#allocation0]]
  $region38: #{gat_forward.5} parent=0
    _
  %s8 = ssub.s32 1, %s6
  %s9 = scalar_select 0, %s8, %s6
  // Predicated region
  $region2: #{gat_forward.5} parent=0 // pred_check
    _
  $region3: #{gat_forward.5} parent=0 // pred_check_branch
    %11 = sbr.rel (0) target = $region5
  $region4: #{gat_forward.5} parent=0 // pred_region
    _
  $region5: #{gat_forward.5} parent=0 // pred_fallthru
    _
  // Predicated region
  $region6: #{gat_forward.5} parent=0 // pred_check
    _
  $region7: #{gat_forward.5} parent=0 // pred_check_branch
    %13 = sbr.rel (0) target = $region9
  $region8: #{gat_forward.5} parent=0 // pred_region
    _
  $region9: #{gat_forward.5} parent=0 // pred_fallthru
    _
  // Predicated region
  $region10: #{gat_forward.5} parent=0 // pred_check
    _
  $region11: #{gat_forward.5} parent=0 // pred_check_branch
    %15 = sbr.rel (0) target = $region13
  $region12: #{gat_forward.5} parent=0 // pred_region
    _
  $region13: #{gat_forward.5} parent=0 // pred_fallthru
    _
  // Predicated region
  $region14: #{gat_forward.5} parent=0 // pred_check
    _
  $region15: #{gat_forward.5} parent=0 // pred_check_branch
    %17 = sbr.rel (0) target = $region17
  $region16: #{gat_forward.5} parent=0 // pred_region
    _
  $region17: #{gat_forward.5} parent=0 // pred_fallthru
    _
  // Predicated region
  $region18: #{gat_forward.5} parent=0 // pred_check
    _
  $region19: #{gat_forward.5} parent=0 // pred_check_branch
    %19 = sbr.rel (0) target = $region21
  $region20: #{gat_forward.5} parent=0 // pred_region
    _
  $region21: #{gat_forward.5} parent=0 // pred_fallthru
    _
  %p21 = scmp.eq.s32.totalorder 0, 0
  // Predicated region
  $region22: #{gat_forward.5} parent=0 // pred_check
    %p22 = pneg %p21
  $region23: #{gat_forward.5} parent=0 // pred_check_branch
    %24 = sbr.rel (%p22) target = $region25
  $region24: #{gat_forward.5} parent=0 // pred_region
    %vm25 = vcmask 7168
    %26 = vst.msk [vmem:[#allocation2] sm:$0xff] %vm25, -1e+30
    %27 = vst.msk [vmem:[#allocation2 + $0x8] sm:$0xff] %vm25, -1e+30
    %28 = vst.msk [vmem:[#allocation2 + $0x10] sm:$0xff] %vm25, -1e+30
    %29 = vst.msk [vmem:[#allocation2 + $0x18] sm:$0xff] %vm25, -1e+30
    %30 = vst.msk [vmem:[#allocation2 + $0x20] sm:$0xff] %vm25, -1e+30
    %31 = vst.msk [vmem:[#allocation2 + $0x28] sm:$0xff] %vm25, -1e+30
    %32 = vst.msk [vmem:[#allocation2 + $0x30] sm:$0xff] %vm25, -1e+30
    %33 = vst.msk [vmem:[#allocation2 + $0x38] sm:$0xff] %vm25, -1e+30
    %34 = vst.msk [vmem:[#allocation2 + $0x40] sm:$0xff] %vm25, -1e+30
    %35 = vst.msk [vmem:[#allocation2 + $0x48] sm:$0xff] %vm25, -1e+30
    %36 = vst.msk [vmem:[#allocation2 + $0x50] sm:$0xff] %vm25, -1e+30
    %37 = vst.msk [vmem:[#allocation2 + $0x58] sm:$0xff] %vm25, -1e+30
    %38 = vst.msk [vmem:[#allocation2 + $0x60] sm:$0xff] %vm25, -1e+30
    %39 = vst.msk [vmem:[#allocation2 + $0x68] sm:$0xff] %vm25, -1e+30
    %40 = vst.msk [vmem:[#allocation2 + $0x70] sm:$0xff] %vm25, -1e+30
    %41 = vst.msk [vmem:[#allocation2 + $0x78] sm:$0xff] %vm25, -1e+30
    %42 = vst.msk [vmem:[#allocation3] sm:$0xff] %vm25, 0.0
    %43 = vst.msk [vmem:[#allocation3 + $0x8] sm:$0xff] %vm25, 0.0
    %44 = vst.msk [vmem:[#allocation3 + $0x10] sm:$0xff] %vm25, 0.0
    %45 = vst.msk [vmem:[#allocation3 + $0x18] sm:$0xff] %vm25, 0.0
    %46 = vst.msk [vmem:[#allocation3 + $0x20] sm:$0xff] %vm25, 0.0
    %47 = vst.msk [vmem:[#allocation3 + $0x28] sm:$0xff] %vm25, 0.0
    %48 = vst.msk [vmem:[#allocation3 + $0x30] sm:$0xff] %vm25, 0.0
    %49 = vst.msk [vmem:[#allocation3 + $0x38] sm:$0xff] %vm25, 0.0
    %50 = vst.msk [vmem:[#allocation3 + $0x40] sm:$0xff] %vm25, 0.0
    %51 = vst.msk [vmem:[#allocation3 + $0x48] sm:$0xff] %vm25, 0.0
    %52 = vst.msk [vmem:[#allocation3 + $0x50] sm:$0xff] %vm25, 0.0
    %53 = vst.msk [vmem:[#allocation3 + $0x58] sm:$0xff] %vm25, 0.0
    %54 = vst.msk [vmem:[#allocation3 + $0x60] sm:$0xff] %vm25, 0.0
    %55 = vst.msk [vmem:[#allocation3 + $0x68] sm:$0xff] %vm25, 0.0
    %56 = vst.msk [vmem:[#allocation3 + $0x70] sm:$0xff] %vm25, 0.0
    %57 = vst.msk [vmem:[#allocation3 + $0x78] sm:$0xff] %vm25, 0.0
    %58 = vst [vmem:[#allocation4] sm:$0xff] 0.0
    %59 = vst [vmem:[#allocation4 + $0x8] sm:$0xff] 0.0
    %60 = vst [vmem:[#allocation4 + $0x10] sm:$0xff] 0.0
    %61 = vst [vmem:[#allocation4 + $0x18] sm:$0xff] 0.0
    %62 = vst [vmem:[#allocation4 + $0x20] sm:$0xff] 0.0
    %63 = vst [vmem:[#allocation4 + $0x28] sm:$0xff] 0.0
    %64 = vst [vmem:[#allocation4 + $0x30] sm:$0xff] 0.0
    %65 = vst [vmem:[#allocation4 + $0x38] sm:$0xff] 0.0
    %66 = vst [vmem:[#allocation4 + $0x40] sm:$0xff] 0.0
    %67 = vst [vmem:[#allocation4 + $0x48] sm:$0xff] 0.0
    %68 = vst [vmem:[#allocation4 + $0x50] sm:$0xff] 0.0
    %69 = vst [vmem:[#allocation4 + $0x58] sm:$0xff] 0.0
    %70 = vst [vmem:[#allocation4 + $0x60] sm:$0xff] 0.0
    %71 = vst [vmem:[#allocation4 + $0x68] sm:$0xff] 0.0
    %72 = vst [vmem:[#allocation4 + $0x70] sm:$0xff] 0.0
    %73 = vst [vmem:[#allocation4 + $0x78] sm:$0xff] 0.0
  $region25: #{gat_forward.5} parent=0 // pred_fallthru
    _
  %v74 = vld [vmem:[%s0] sm:$0xff]
  %v75 = vld [vmem:[%s0 + $0x8] sm:$0xff]
  %v76 = vld [vmem:[%s0 + $0x10] sm:$0xff]
  %v77 = vld [vmem:[%s0 + $0x18] sm:$0xff]
  %v78 = vld [vmem:[%s0 + $0x20] sm:$0xff]
  %v79 = vld [vmem:[%s0 + $0x28] sm:$0xff]
  %v80 = vld [vmem:[%s0 + $0x30] sm:$0xff]
  %v81 = vld [vmem:[%s0 + $0x38] sm:$0xff]
  %v82 = vld [vmem:[%s0 + $0x40] sm:$0xff]
  %v83 = vld [vmem:[%s0 + $0x48] sm:$0xff]
  %v84 = vld [vmem:[%s0 + $0x50] sm:$0xff]
  %v85 = vld [vmem:[%s0 + $0x58] sm:$0xff]
  %v86 = vld [vmem:[%s0 + $0x60] sm:$0xff]
  %v87 = vld [vmem:[%s0 + $0x68] sm:$0xff]
  %v88 = vld [vmem:[%s0 + $0x70] sm:$0xff]
  %v89 = vld [vmem:[%s0 + $0x78] sm:$0xff]
  %v90 = vld [vmem:[%s1] sm:$0x1]
  %92 = vset.pattern.permute.xlu0 0
  %93 = vperm.xlu0 %92, %v74
  %v94 = vpop.permute.xlu0 %93
  %97 = vset.pattern.permute.xlu0 0
  %98 = vperm.xlu0 %97, %v75
  %v99 = vpop.permute.xlu0 %98
  %102 = vset.pattern.permute.xlu0 0
  %103 = vperm.xlu0 %102, %v76
  %v104 = vpop.permute.xlu0 %103
  %107 = vset.pattern.permute.xlu0 0
  %108 = vperm.xlu0 %107, %v77
  %v109 = vpop.permute.xlu0 %108
  %112 = vset.pattern.permute.xlu0 0
  %113 = vperm.xlu0 %112, %v78
  %v114 = vpop.permute.xlu0 %113
  %117 = vset.pattern.permute.xlu0 0
  %118 = vperm.xlu0 %117, %v79
  %v119 = vpop.permute.xlu0 %118
  %122 = vset.pattern.permute.xlu0 0
  %123 = vperm.xlu0 %122, %v80
  %v124 = vpop.permute.xlu0 %123
  %127 = vset.pattern.permute.xlu0 0
  %128 = vperm.xlu0 %127, %v81
  %v129 = vpop.permute.xlu0 %128
  %132 = vset.pattern.permute.xlu0 0
  %133 = vperm.xlu0 %132, %v82
  %v134 = vpop.permute.xlu0 %133
  %137 = vset.pattern.permute.xlu0 0
  %138 = vperm.xlu0 %137, %v83
  %v139 = vpop.permute.xlu0 %138
  %142 = vset.pattern.permute.xlu0 0
  %143 = vperm.xlu0 %142, %v84
  %v144 = vpop.permute.xlu0 %143
  %147 = vset.pattern.permute.xlu0 0
  %148 = vperm.xlu0 %147, %v85
  %v149 = vpop.permute.xlu0 %148
  %152 = vset.pattern.permute.xlu0 0
  %153 = vperm.xlu0 %152, %v86
  %v154 = vpop.permute.xlu0 %153
  %157 = vset.pattern.permute.xlu0 0
  %158 = vperm.xlu0 %157, %v87
  %v159 = vpop.permute.xlu0 %158
  %162 = vset.pattern.permute.xlu0 0
  %163 = vperm.xlu0 %162, %v88
  %v164 = vpop.permute.xlu0 %163
  %167 = vset.pattern.permute.xlu0 0
  %168 = vperm.xlu0 %167, %v89
  %v169 = vpop.permute.xlu0 %168
  %v172 = vlaneseq
  %v173 = vshrl.u32 %v172, 7
  %v174 = vsub.s32 0, %v173
  %v175 = vrot.slane %v90, %v174
  %v177 = vadd.f32 %v94, %v175
  %v178 = vadd.f32 %v99, %v175
  %v179 = vadd.f32 %v104, %v175
  %v180 = vadd.f32 %v109, %v175
  %v181 = vadd.f32 %v114, %v175
  %v182 = vadd.f32 %v119, %v175
  %v183 = vadd.f32 %v124, %v175
  %v184 = vadd.f32 %v129, %v175
  %v185 = vadd.f32 %v134, %v175
  %v186 = vadd.f32 %v139, %v175
  %v187 = vadd.f32 %v144, %v175
  %v188 = vadd.f32 %v149, %v175
  %v189 = vadd.f32 %v154, %v175
  %v190 = vadd.f32 %v159, %v175
  %v191 = vadd.f32 %v164, %v175
  %v192 = vadd.f32 %v169, %v175
  %vm193 = vcmp.gt.f32.partialorder %v177, 0.0
  %vm194 = vcmp.gt.f32.partialorder %v178, 0.0
  %vm195 = vcmp.gt.f32.partialorder %v179, 0.0
  %vm196 = vcmp.gt.f32.partialorder %v180, 0.0
  %vm197 = vcmp.gt.f32.partialorder %v181, 0.0
  %vm198 = vcmp.gt.f32.partialorder %v182, 0.0
  %vm199 = vcmp.gt.f32.partialorder %v183, 0.0
  %vm200 = vcmp.gt.f32.partialorder %v184, 0.0
  %vm201 = vcmp.gt.f32.partialorder %v185, 0.0
  %vm202 = vcmp.gt.f32.partialorder %v186, 0.0
  %vm203 = vcmp.gt.f32.partialorder %v187, 0.0
  %vm204 = vcmp.gt.f32.partialorder %v188, 0.0
  %vm205 = vcmp.gt.f32.partialorder %v189, 0.0
  %vm206 = vcmp.gt.f32.partialorder %v190, 0.0
  %vm207 = vcmp.gt.f32.partialorder %v191, 0.0
  %vm208 = vcmp.gt.f32.partialorder %v192, 0.0
  %v209 = vmul.f32 %v177, 0.2
  %v210 = vmul.f32 %v178, 0.2
  %v211 = vmul.f32 %v179, 0.2
  %v212 = vmul.f32 %v180, 0.2
  %v213 = vmul.f32 %v181, 0.2
  %v214 = vmul.f32 %v182, 0.2
  %v215 = vmul.f32 %v183, 0.2
  %v216 = vmul.f32 %v184, 0.2
  %v217 = vmul.f32 %v185, 0.2
  %v218 = vmul.f32 %v186, 0.2
  %v219 = vmul.f32 %v187, 0.2
  %v220 = vmul.f32 %v188, 0.2
  %v221 = vmul.f32 %v189, 0.2
  %v222 = vmul.f32 %v190, 0.2
  %v223 = vmul.f32 %v191, 0.2
  %v224 = vmul.f32 %v192, 0.2
  %v225 = vsel %vm193, %v177, %v209
  %v226 = vsel %vm194, %v178, %v210
  %v227 = vsel %vm195, %v179, %v211
  %v228 = vsel %vm196, %v180, %v212
  %v229 = vsel %vm197, %v181, %v213
  %v230 = vsel %vm198, %v182, %v214
  %v231 = vsel %vm199, %v183, %v215
  %v232 = vsel %vm200, %v184, %v216
  %v233 = vsel %vm201, %v185, %v217
  %v234 = vsel %vm202, %v186, %v218
  %v235 = vsel %vm203, %v187, %v219
  %v236 = vsel %vm204, %v188, %v220
  %v237 = vsel %vm205, %v189, %v221
  %v238 = vsel %vm206, %v190, %v222
  %v239 = vsel %vm207, %v191, %v223
  %v240 = vsel %vm208, %v192, %v224
  %v241 = vld [vmem:[%s2] sm:$0xf]
  %v242 = vld [vmem:[%s2 + $0x4] sm:$0xf]
  %v243 = vld [vmem:[%s2 + $0x8] sm:$0xf]
  %v244 = vld [vmem:[%s2 + $0xc] sm:$0xf]
  %v245 = vld [vmem:[%s2 + $0x10] sm:$0xf]
  %v246 = vld [vmem:[%s2 + $0x14] sm:$0xf]
  %v247 = vld [vmem:[%s2 + $0x18] sm:$0xf]
  %v248 = vld [vmem:[%s2 + $0x1c] sm:$0xf]
  %v249 = vld [vmem:[%s2 + $0x20] sm:$0xf]
  %v250 = vld [vmem:[%s2 + $0x24] sm:$0xf]
  %v251 = vld [vmem:[%s2 + $0x28] sm:$0xf]
  %v252 = vld [vmem:[%s2 + $0x2c] sm:$0xf]
  %v253 = vld [vmem:[%s2 + $0x30] sm:$0xf]
  %v254 = vld [vmem:[%s2 + $0x34] sm:$0xf]
  %v255 = vld [vmem:[%s2 + $0x38] sm:$0xf]
  %v256 = vld [vmem:[%s2 + $0x3c] sm:$0xf]
  %v257 = vunpack.c.l.bf16 %v241
  %v258 = vunpack.c.l.bf16 %v242
  %v259 = vunpack.c.l.bf16 %v243
  %v260 = vunpack.c.l.bf16 %v244
  %v261 = vunpack.c.l.bf16 %v245
  %v262 = vunpack.c.l.bf16 %v246
  %v263 = vunpack.c.l.bf16 %v247
  %v264 = vunpack.c.l.bf16 %v248
  %v265 = vunpack.c.l.bf16 %v249
  %v266 = vunpack.c.l.bf16 %v250
  %v267 = vunpack.c.l.bf16 %v251
  %v268 = vunpack.c.l.bf16 %v252
  %v269 = vunpack.c.l.bf16 %v253
  %v270 = vunpack.c.l.bf16 %v254
  %v271 = vunpack.c.l.bf16 %v255
  %v272 = vunpack.c.l.bf16 %v256
  %v273 = vadd.f32 %v225, %v257
  %v274 = vadd.f32 %v226, %v258
  %v275 = vadd.f32 %v227, %v259
  %v276 = vadd.f32 %v228, %v260
  %v277 = vadd.f32 %v229, %v261
  %v278 = vadd.f32 %v230, %v262
  %v279 = vadd.f32 %v231, %v263
  %v280 = vadd.f32 %v232, %v264
  %v281 = vadd.f32 %v233, %v265
  %v282 = vadd.f32 %v234, %v266
  %v283 = vadd.f32 %v235, %v267
  %v284 = vadd.f32 %v236, %v268
  %v285 = vadd.f32 %v237, %v269
  %v286 = vadd.f32 %v238, %v270
  %v287 = vadd.f32 %v239, %v271
  %v288 = vadd.f32 %v240, %v272
  %v289 = vld [vmem:[#allocation2] sm:$0xff]
  %v290 = vld [vmem:[#allocation2 + $0x8] sm:$0xff]
  %v291 = vld [vmem:[#allocation2 + $0x10] sm:$0xff]
  %v292 = vld [vmem:[#allocation2 + $0x18] sm:$0xff]
  %v293 = vld [vmem:[#allocation2 + $0x20] sm:$0xff]
  %v294 = vld [vmem:[#allocation2 + $0x28] sm:$0xff]
  %v295 = vld [vmem:[#allocation2 + $0x30] sm:$0xff]
  %v296 = vld [vmem:[#allocation2 + $0x38] sm:$0xff]
  %v297 = vld [vmem:[#allocation2 + $0x40] sm:$0xff]
  %v298 = vld [vmem:[#allocation2 + $0x48] sm:$0xff]
  %v299 = vld [vmem:[#allocation2 + $0x50] sm:$0xff]
  %v300 = vld [vmem:[#allocation2 + $0x58] sm:$0xff]
  %v301 = vld [vmem:[#allocation2 + $0x60] sm:$0xff]
  %v302 = vld [vmem:[#allocation2 + $0x68] sm:$0xff]
  %v303 = vld [vmem:[#allocation2 + $0x70] sm:$0xff]
  %v304 = vld [vmem:[#allocation2 + $0x78] sm:$0xff]
  %305 = vmax.xlane.f32.xlu0 %v273
  %v306 = vpop.xlane.xlu0 %305
  %307 = vmax.xlane.f32.xlu0 %v274
  %v308 = vpop.xlane.xlu0 %307
  %309 = vmax.xlane.f32.xlu0 %v275
  %v310 = vpop.xlane.xlu0 %309
  %311 = vmax.xlane.f32.xlu0 %v276
  %v312 = vpop.xlane.xlu0 %311
  %313 = vmax.xlane.f32.xlu0 %v277
  %v314 = vpop.xlane.xlu0 %313
  %315 = vmax.xlane.f32.xlu0 %v278
  %v316 = vpop.xlane.xlu0 %315
  %317 = vmax.xlane.f32.xlu0 %v279
  %v318 = vpop.xlane.xlu0 %317
  %319 = vmax.xlane.f32.xlu0 %v280
  %v320 = vpop.xlane.xlu0 %319
  %321 = vmax.xlane.f32.xlu0 %v281
  %v322 = vpop.xlane.xlu0 %321
  %323 = vmax.xlane.f32.xlu0 %v282
  %v324 = vpop.xlane.xlu0 %323
  %325 = vmax.xlane.f32.xlu0 %v283
  %v326 = vpop.xlane.xlu0 %325
  %327 = vmax.xlane.f32.xlu0 %v284
  %v328 = vpop.xlane.xlu0 %327
  %329 = vmax.xlane.f32.xlu0 %v285
  %v330 = vpop.xlane.xlu0 %329
  %331 = vmax.xlane.f32.xlu0 %v286
  %v332 = vpop.xlane.xlu0 %331
  %333 = vmax.xlane.f32.xlu0 %v287
  %v334 = vpop.xlane.xlu0 %333
  %335 = vmax.xlane.f32.xlu0 %v288
  %v336 = vpop.xlane.xlu0 %335
  %v337 = vmax.f32 %v289, %v306
  %v338 = vmax.f32 %v290, %v308
  %v339 = vmax.f32 %v291, %v310
  %v340 = vmax.f32 %v292, %v312
  %v341 = vmax.f32 %v293, %v314
  %v342 = vmax.f32 %v294, %v316
  %v343 = vmax.f32 %v295, %v318
  %v344 = vmax.f32 %v296, %v320
  %v345 = vmax.f32 %v297, %v322
  %v346 = vmax.f32 %v298, %v324
  %v347 = vmax.f32 %v299, %v326
  %v348 = vmax.f32 %v300, %v328
  %v349 = vmax.f32 %v301, %v330
  %v350 = vmax.f32 %v302, %v332
  %v351 = vmax.f32 %v303, %v334
  %v352 = vmax.f32 %v304, %v336
  %v353 = vsub.f32 %v289, %v337
  %v354 = vsub.f32 %v290, %v338
  %v355 = vsub.f32 %v291, %v339
  %v356 = vsub.f32 %v292, %v340
  %v357 = vsub.f32 %v293, %v341
  %v358 = vsub.f32 %v294, %v342
  %v359 = vsub.f32 %v295, %v343
  %v360 = vsub.f32 %v296, %v344
  %v361 = vsub.f32 %v297, %v345
  %v362 = vsub.f32 %v298, %v346
  %v363 = vsub.f32 %v299, %v347
  %v364 = vsub.f32 %v300, %v348
  %v365 = vsub.f32 %v301, %v349
  %v366 = vsub.f32 %v302, %v350
  %v367 = vsub.f32 %v303, %v351
  %v368 = vsub.f32 %v304, %v352
  %v369 = vmul.f32 %v353, 1.442695
  %v370 = vpow.pop %v369
  %v371 = vmul.f32 %v354, 1.442695
  %v372 = vpow.pop %v371
  %v373 = vmul.f32 %v355, 1.442695
  %v374 = vpow.pop %v373
  %v375 = vmul.f32 %v356, 1.442695
  %v376 = vpow.pop %v375
  %v377 = vmul.f32 %v357, 1.442695
  %v378 = vpow.pop %v377
  %v379 = vmul.f32 %v358, 1.442695
  %v380 = vpow.pop %v379
  %v381 = vmul.f32 %v359, 1.442695
  %v382 = vpow.pop %v381
  %v383 = vmul.f32 %v360, 1.442695
  %v384 = vpow.pop %v383
  %v385 = vmul.f32 %v361, 1.442695
  %v386 = vpow.pop %v385
  %v387 = vmul.f32 %v362, 1.442695
  %v388 = vpow.pop %v387
  %v389 = vmul.f32 %v363, 1.442695
  %v390 = vpow.pop %v389
  %v391 = vmul.f32 %v364, 1.442695
  %v392 = vpow.pop %v391
  %v393 = vmul.f32 %v365, 1.442695
  %v394 = vpow.pop %v393
  %v395 = vmul.f32 %v366, 1.442695
  %v396 = vpow.pop %v395
  %v397 = vmul.f32 %v367, 1.442695
  %v398 = vpow.pop %v397
  %v399 = vmul.f32 %v368, 1.442695
  %v400 = vpow.pop %v399
  %402 = vset.pattern.permute.xlu0 0
  %403 = vperm.xlu0 %402, %v337
  %v404 = vpop.permute.xlu0 %403
  %407 = vset.pattern.permute.xlu0 0
  %408 = vperm.xlu0 %407, %v338
  %v409 = vpop.permute.xlu0 %408
  %412 = vset.pattern.permute.xlu0 0
  %413 = vperm.xlu0 %412, %v339
  %v414 = vpop.permute.xlu0 %413
  %417 = vset.pattern.permute.xlu0 0
  %418 = vperm.xlu0 %417, %v340
  %v419 = vpop.permute.xlu0 %418
  %422 = vset.pattern.permute.xlu0 0
  %423 = vperm.xlu0 %422, %v341
  %v424 = vpop.permute.xlu0 %423
  %427 = vset.pattern.permute.xlu0 0
  %428 = vperm.xlu0 %427, %v342
  %v429 = vpop.permute.xlu0 %428
  %432 = vset.pattern.permute.xlu0 0
  %433 = vperm.xlu0 %432, %v343
  %v434 = vpop.permute.xlu0 %433
  %437 = vset.pattern.permute.xlu0 0
  %438 = vperm.xlu0 %437, %v344
  %v439 = vpop.permute.xlu0 %438
  %442 = vset.pattern.permute.xlu0 0
  %443 = vperm.xlu0 %442, %v345
  %v444 = vpop.permute.xlu0 %443
  %447 = vset.pattern.permute.xlu0 0
  %448 = vperm.xlu0 %447, %v346
  %v449 = vpop.permute.xlu0 %448
  %452 = vset.pattern.permute.xlu0 0
  %453 = vperm.xlu0 %452, %v347
  %v454 = vpop.permute.xlu0 %453
  %457 = vset.pattern.permute.xlu0 0
  %458 = vperm.xlu0 %457, %v348
  %v459 = vpop.permute.xlu0 %458
  %462 = vset.pattern.permute.xlu0 0
  %463 = vperm.xlu0 %462, %v349
  %v464 = vpop.permute.xlu0 %463
  %467 = vset.pattern.permute.xlu0 0
  %468 = vperm.xlu0 %467, %v350
  %v469 = vpop.permute.xlu0 %468
  %472 = vset.pattern.permute.xlu0 0
  %473 = vperm.xlu0 %472, %v351
  %v474 = vpop.permute.xlu0 %473
  %477 = vset.pattern.permute.xlu0 0
  %478 = vperm.xlu0 %477, %v352
  %v479 = vpop.permute.xlu0 %478
  %v481 = vsub.f32 %v273, %v404
  %v482 = vsub.f32 %v274, %v409
  %v483 = vsub.f32 %v275, %v414
  %v484 = vsub.f32 %v276, %v419
  %v485 = vsub.f32 %v277, %v424
  %v486 = vsub.f32 %v278, %v429
  %v487 = vsub.f32 %v279, %v434
  %v488 = vsub.f32 %v280, %v439
  %v489 = vsub.f32 %v281, %v444
  %v490 = vsub.f32 %v282, %v449
  %v491 = vsub.f32 %v283, %v454
  %v492 = vsub.f32 %v284, %v459
  %v493 = vsub.f32 %v285, %v464
  %v494 = vsub.f32 %v286, %v469
  %v495 = vsub.f32 %v287, %v474
  %v496 = vsub.f32 %v288, %v479
  %v497 = vmul.f32 %v481, 1.442695
  %v498 = vpow.pop %v497
  %v499 = vmul.f32 %v482, 1.442695
  %v500 = vpow.pop %v499
  %v501 = vmul.f32 %v483, 1.442695
  %v502 = vpow.pop %v501
  %v503 = vmul.f32 %v484, 1.442695
  %v504 = vpow.pop %v503
  %v505 = vmul.f32 %v485, 1.442695
  %v506 = vpow.pop %v505
  %v507 = vmul.f32 %v486, 1.442695
  %v508 = vpow.pop %v507
  %v509 = vmul.f32 %v487, 1.442695
  %v510 = vpow.pop %v509
  %v511 = vmul.f32 %v488, 1.442695
  %v512 = vpow.pop %v511
  %v513 = vmul.f32 %v489, 1.442695
  %v514 = vpow.pop %v513
  %v515 = vmul.f32 %v490, 1.442695
  %v516 = vpow.pop %v515
  %v517 = vmul.f32 %v491, 1.442695
  %v518 = vpow.pop %v517
  %v519 = vmul.f32 %v492, 1.442695
  %v520 = vpow.pop %v519
  %v521 = vmul.f32 %v493, 1.442695
  %v522 = vpow.pop %v521
  %v523 = vmul.f32 %v494, 1.442695
  %v524 = vpow.pop %v523
  %v525 = vmul.f32 %v495, 1.442695
  %v526 = vpow.pop %v525
  %v527 = vmul.f32 %v496, 1.442695
  %v528 = vpow.pop %v527
  %v529 = vld [vmem:[#allocation3] sm:$0xff]
  %v530 = vld [vmem:[#allocation3 + $0x8] sm:$0xff]
  %v531 = vld [vmem:[#allocation3 + $0x10] sm:$0xff]
  %v532 = vld [vmem:[#allocation3 + $0x18] sm:$0xff]
  %v533 = vld [vmem:[#allocation3 + $0x20] sm:$0xff]
  %v534 = vld [vmem:[#allocation3 + $0x28] sm:$0xff]
  %v535 = vld [vmem:[#allocation3 + $0x30] sm:$0xff]
  %v536 = vld [vmem:[#allocation3 + $0x38] sm:$0xff]
  %v537 = vld [vmem:[#allocation3 + $0x40] sm:$0xff]
  %v538 = vld [vmem:[#allocation3 + $0x48] sm:$0xff]
  %v539 = vld [vmem:[#allocation3 + $0x50] sm:$0xff]
  %v540 = vld [vmem:[#allocation3 + $0x58] sm:$0xff]
  %v541 = vld [vmem:[#allocation3 + $0x60] sm:$0xff]
  %v542 = vld [vmem:[#allocation3 + $0x68] sm:$0xff]
  %v543 = vld [vmem:[#allocation3 + $0x70] sm:$0xff]
  %v544 = vld [vmem:[#allocation3 + $0x78] sm:$0xff]
  %v545 = vmul.f32 %v370, %v529
  %v546 = vmul.f32 %v372, %v530
  %v547 = vmul.f32 %v374, %v531
  %v548 = vmul.f32 %v376, %v532
  %v549 = vmul.f32 %v378, %v533
  %v550 = vmul.f32 %v380, %v534
  %v551 = vmul.f32 %v382, %v535
  %v552 = vmul.f32 %v384, %v536
  %v553 = vmul.f32 %v386, %v537
  %v554 = vmul.f32 %v388, %v538
  %v555 = vmul.f32 %v390, %v539
  %v556 = vmul.f32 %v392, %v540
  %v557 = vmul.f32 %v394, %v541
  %v558 = vmul.f32 %v396, %v542
  %v559 = vmul.f32 %v398, %v543
  %v560 = vmul.f32 %v400, %v544
  %561 = vadd.xlane.f32.xlu0 %v498
  %v562 = vpop.xlane.xlu0 %561
  %563 = vadd.xlane.f32.xlu0 %v500
  %v564 = vpop.xlane.xlu0 %563
  %565 = vadd.xlane.f32.xlu0 %v502
  %v566 = vpop.xlane.xlu0 %565
  %567 = vadd.xlane.f32.xlu0 %v504
  %v568 = vpop.xlane.xlu0 %567
  %569 = vadd.xlane.f32.xlu0 %v506
  %v570 = vpop.xlane.xlu0 %569
  %571 = vadd.xlane.f32.xlu0 %v508
  %v572 = vpop.xlane.xlu0 %571
  %573 = vadd.xlane.f32.xlu0 %v510
  %v574 = vpop.xlane.xlu0 %573
  %575 = vadd.xlane.f32.xlu0 %v512
  %v576 = vpop.xlane.xlu0 %575
  %577 = vadd.xlane.f32.xlu0 %v514
  %v578 = vpop.xlane.xlu0 %577
  %579 = vadd.xlane.f32.xlu0 %v516
  %v580 = vpop.xlane.xlu0 %579
  %581 = vadd.xlane.f32.xlu0 %v518
  %v582 = vpop.xlane.xlu0 %581
  %583 = vadd.xlane.f32.xlu0 %v520
  %v584 = vpop.xlane.xlu0 %583
  %585 = vadd.xlane.f32.xlu0 %v522
  %v586 = vpop.xlane.xlu0 %585
  %587 = vadd.xlane.f32.xlu0 %v524
  %v588 = vpop.xlane.xlu0 %587
  %589 = vadd.xlane.f32.xlu0 %v526
  %v590 = vpop.xlane.xlu0 %589
  %591 = vadd.xlane.f32.xlu0 %v528
  %v592 = vpop.xlane.xlu0 %591
  %v593 = vadd.f32 %v545, %v562
  %v594 = vadd.f32 %v546, %v564
  %v595 = vadd.f32 %v547, %v566
  %v596 = vadd.f32 %v548, %v568
  %v597 = vadd.f32 %v549, %v570
  %v598 = vadd.f32 %v550, %v572
  %v599 = vadd.f32 %v551, %v574
  %v600 = vadd.f32 %v552, %v576
  %v601 = vadd.f32 %v553, %v578
  %v602 = vadd.f32 %v554, %v580
  %v603 = vadd.f32 %v555, %v582
  %v604 = vadd.f32 %v556, %v584
  %v605 = vadd.f32 %v557, %v586
  %v606 = vadd.f32 %v558, %v588
  %v607 = vadd.f32 %v559, %v590
  %v608 = vadd.f32 %v560, %v592
  %vm609 = vcmask 7168
  %610 = vst.msk [vmem:[#allocation3] sm:$0xff] %vm609, %v593
  %611 = vst.msk [vmem:[#allocation3 + $0x8] sm:$0xff] %vm609, %v594
  %612 = vst.msk [vmem:[#allocation3 + $0x10] sm:$0xff] %vm609, %v595
  %613 = vst.msk [vmem:[#allocation3 + $0x18] sm:$0xff] %vm609, %v596
  %614 = vst.msk [vmem:[#allocation3 + $0x20] sm:$0xff] %vm609, %v597
  %615 = vst.msk [vmem:[#allocation3 + $0x28] sm:$0xff] %vm609, %v598
  %616 = vst.msk [vmem:[#allocation3 + $0x30] sm:$0xff] %vm609, %v599
  %617 = vst.msk [vmem:[#allocation3 + $0x38] sm:$0xff] %vm609, %v600
  %618 = vst.msk [vmem:[#allocation3 + $0x40] sm:$0xff] %vm609, %v601
  %619 = vst.msk [vmem:[#allocation3 + $0x48] sm:$0xff] %vm609, %v602
  %620 = vst.msk [vmem:[#allocation3 + $0x50] sm:$0xff] %vm609, %v603
  %621 = vst.msk [vmem:[#allocation3 + $0x58] sm:$0xff] %vm609, %v604
  %622 = vst.msk [vmem:[#allocation3 + $0x60] sm:$0xff] %vm609, %v605
  %623 = vst.msk [vmem:[#allocation3 + $0x68] sm:$0xff] %vm609, %v606
  %624 = vst.msk [vmem:[#allocation3 + $0x70] sm:$0xff] %vm609, %v607
  %625 = vst.msk [vmem:[#allocation3 + $0x78] sm:$0xff] %vm609, %v608
  %v626 = vld [vmem:[#allocation4] sm:$0xff]
  %v627 = vld [vmem:[#allocation4 + $0x8] sm:$0xff]
  %v628 = vld [vmem:[#allocation4 + $0x10] sm:$0xff]
  %v629 = vld [vmem:[#allocation4 + $0x18] sm:$0xff]
  %v630 = vld [vmem:[#allocation4 + $0x20] sm:$0xff]
  %v631 = vld [vmem:[#allocation4 + $0x28] sm:$0xff]
  %v632 = vld [vmem:[#allocation4 + $0x30] sm:$0xff]
  %v633 = vld [vmem:[#allocation4 + $0x38] sm:$0xff]
  %v634 = vld [vmem:[#allocation4 + $0x40] sm:$0xff]
  %v635 = vld [vmem:[#allocation4 + $0x48] sm:$0xff]
  %v636 = vld [vmem:[#allocation4 + $0x50] sm:$0xff]
  %v637 = vld [vmem:[#allocation4 + $0x58] sm:$0xff]
  %v638 = vld [vmem:[#allocation4 + $0x60] sm:$0xff]
  %v639 = vld [vmem:[#allocation4 + $0x68] sm:$0xff]
  %v640 = vld [vmem:[#allocation4 + $0x70] sm:$0xff]
  %v641 = vld [vmem:[#allocation4 + $0x78] sm:$0xff]
  %643 = vset.pattern.permute.xlu0 0
  %644 = vperm.xlu0 %643, %v370
  %v645 = vpop.permute.xlu0 %644
  %648 = vset.pattern.permute.xlu0 0
  %649 = vperm.xlu0 %648, %v372
  %v650 = vpop.permute.xlu0 %649
  %653 = vset.pattern.permute.xlu0 0
  %654 = vperm.xlu0 %653, %v374
  %v655 = vpop.permute.xlu0 %654
  %658 = vset.pattern.permute.xlu0 0
  %659 = vperm.xlu0 %658, %v376
  %v660 = vpop.permute.xlu0 %659
  %663 = vset.pattern.permute.xlu0 0
  %664 = vperm.xlu0 %663, %v378
  %v665 = vpop.permute.xlu0 %664
  %668 = vset.pattern.permute.xlu0 0
  %669 = vperm.xlu0 %668, %v380
  %v670 = vpop.permute.xlu0 %669
  %673 = vset.pattern.permute.xlu0 0
  %674 = vperm.xlu0 %673, %v382
  %v675 = vpop.permute.xlu0 %674
  %678 = vset.pattern.permute.xlu0 0
  %679 = vperm.xlu0 %678, %v384
  %v680 = vpop.permute.xlu0 %679
  %683 = vset.pattern.permute.xlu0 0
  %684 = vperm.xlu0 %683, %v386
  %v685 = vpop.permute.xlu0 %684
  %688 = vset.pattern.permute.xlu0 0
  %689 = vperm.xlu0 %688, %v388
  %v690 = vpop.permute.xlu0 %689
  %693 = vset.pattern.permute.xlu0 0
  %694 = vperm.xlu0 %693, %v390
  %v695 = vpop.permute.xlu0 %694
  %698 = vset.pattern.permute.xlu0 0
  %699 = vperm.xlu0 %698, %v392
  %v700 = vpop.permute.xlu0 %699
  %703 = vset.pattern.permute.xlu0 0
  %704 = vperm.xlu0 %703, %v394
  %v705 = vpop.permute.xlu0 %704
  %708 = vset.pattern.permute.xlu0 0
  %709 = vperm.xlu0 %708, %v396
  %v710 = vpop.permute.xlu0 %709
  %713 = vset.pattern.permute.xlu0 0
  %714 = vperm.xlu0 %713, %v398
  %v715 = vpop.permute.xlu0 %714
  %718 = vset.pattern.permute.xlu0 0
  %719 = vperm.xlu0 %718, %v400
  %v720 = vpop.permute.xlu0 %719
  %v722 = vmul.f32 %v645, %v626
  %v723 = vmul.f32 %v650, %v627
  %v724 = vmul.f32 %v655, %v628
  %v725 = vmul.f32 %v660, %v629
  %v726 = vmul.f32 %v665, %v630
  %v727 = vmul.f32 %v670, %v631
  %v728 = vmul.f32 %v675, %v632
  %v729 = vmul.f32 %v680, %v633
  %v730 = vmul.f32 %v685, %v634
  %v731 = vmul.f32 %v690, %v635
  %v732 = vmul.f32 %v695, %v636
  %v733 = vmul.f32 %v700, %v637
  %v734 = vmul.f32 %v705, %v638
  %v735 = vmul.f32 %v710, %v639
  %v736 = vmul.f32 %v715, %v640
  %v737 = vmul.f32 %v720, %v641
  %v738 = vpack.c.bf16 %v500, %v498
  %v739 = vpack.c.bf16 %v504, %v502
  %v740 = vpack.c.bf16 %v508, %v506
  %v741 = vpack.c.bf16 %v512, %v510
  %v742 = vpack.c.bf16 %v516, %v514
  %v743 = vpack.c.bf16 %v520, %v518
  %v744 = vpack.c.bf16 %v524, %v522
  %v745 = vpack.c.bf16 %v528, %v526
  %v746 = vld [vmem:[%s3] sm:$0xf]
  %v747 = vld [vmem:[%s3 + $0x4] sm:$0xf]
  %v748 = vld [vmem:[%s3 + $0x8] sm:$0xf]
  %v749 = vld [vmem:[%s3 + $0xc] sm:$0xf]
  %v750 = vld [vmem:[%s3 + $0x10] sm:$0xf]
  %v751 = vld [vmem:[%s3 + $0x14] sm:$0xf]
  %v752 = vld [vmem:[%s3 + $0x18] sm:$0xf]
  %v753 = vld [vmem:[%s3 + $0x1c] sm:$0xf]
  %v754 = vld [vmem:[%s3 + $0x20] sm:$0xf]
  %v755 = vld [vmem:[%s3 + $0x24] sm:$0xf]
  %v756 = vld [vmem:[%s3 + $0x28] sm:$0xf]
  %v757 = vld [vmem:[%s3 + $0x2c] sm:$0xf]
  %v758 = vld [vmem:[%s3 + $0x30] sm:$0xf]
  %v759 = vld [vmem:[%s3 + $0x34] sm:$0xf]
  %v760 = vld [vmem:[%s3 + $0x38] sm:$0xf]
  %v761 = vld [vmem:[%s3 + $0x3c] sm:$0xf]
  %v778 = vunpack.c.l.b16 %v746
  %v779 = vunpack.c.l.b16 %v747
  %v780 = vunpack.c.l.b16 %v748
  %v781 = vunpack.c.l.b16 %v749
  %v782 = vunpack.c.l.b16 %v750
  %v783 = vunpack.c.l.b16 %v751
  %v784 = vunpack.c.l.b16 %v752
  %v785 = vunpack.c.l.b16 %v753
  %v786 = vunpack.c.l.b16 %v754
  %v787 = vunpack.c.l.b16 %v755
  %v788 = vunpack.c.l.b16 %v756
  %v789 = vunpack.c.l.b16 %v757
  %v790 = vunpack.c.l.b16 %v758
  %v791 = vunpack.c.l.b16 %v759
  %v792 = vunpack.c.l.b16 %v760
  %v793 = vunpack.c.l.b16 %v761
  %v794 = vpack.c.b16 %v779, %v778
  %v795 = vpack.c.b16 %v781, %v780
  %v796 = vpack.c.b16 %v783, %v782
  %v797 = vpack.c.b16 %v785, %v784
  %v798 = vpack.c.b16 %v787, %v786
  %v799 = vpack.c.b16 %v789, %v788
  %v800 = vpack.c.b16 %v791, %v790
  %v801 = vpack.c.b16 %v793, %v792
  %810 = vmatprep.subr.bf16.mxu0 0
  %811 = vmatpush1.bf16.msra.mxu0 %v801
  %812 = vmatprep.subr.bf16.mxu0 0
  %813 = vmatpush1.bf16.msra.mxu0 %v800
  %814 = vmatprep.subr.bf16.mxu0 0
  %815 = vmatpush1.bf16.msra.mxu0 %v799
  %816 = vmatprep.subr.bf16.mxu0 0
  %817 = vmatpush1.bf16.msra.mxu0 %v798
  %818 = vmatprep.subr.bf16.mxu0 0
  %819 = vmatpush1.bf16.msra.mxu0 %v797
  %820 = vmatprep.subr.bf16.mxu0 0
  %821 = vmatpush1.bf16.msra.mxu0 %v796
  %822 = vmatprep.subr.bf16.mxu0 0
  %823 = vmatpush1.bf16.msra.mxu0 %v795
  %824 = vmatprep.subr.bf16.mxu0 0
  %825 = vmatpush1.bf16.msra.mxu0 %v794
  %826 = vmatprep.subr.bf16.mxu0 0
  %827 = vmatpush2.bf16.msra.mxu0 0
  %828 = vmatprep.subr.bf16.mxu0 0
  %829 = vmatpush2.bf16.msra.mxu0 0
  %830 = vmatprep.subr.bf16.mxu0 0
  %831 = vmatpush2.bf16.msra.mxu0 0
  %832 = vmatprep.subr.bf16.mxu0 0
  %833 = vmatpush2.bf16.msra.mxu0 0
  %834 = vmatprep.subr.bf16.mxu0 0
  %835 = vmatpush2.bf16.msra.mxu0 0
  %836 = vmatprep.subr.bf16.mxu0 0
  %837 = vmatpush2.bf16.msra.mxu0 0
  %838 = vmatprep.subr.bf16.mxu0 0
  %839 = vmatpush2.bf16.msra.mxu0 0
  %840 = vmatprep.subr.bf16.mxu0 0
  %841 = vmatpush2.bf16.msra.mxu0 0
  %842 = vmatprep.mubr.bf16.mxu0 0
  %843 = vmatmul.mubr.bf16.gmra.mxu0 %v738
  %v844 = vpop.f32.mrf.mxu0
  %v845 = vadd.f32 0.0, %v844
  %v846 = vpop.f32.mrf.mxu0
  %v847 = vpop.f32.mrf.mxu0
  %v848 = vadd.f32 0.0, %v847
  %v849 = vpop.f32.mrf.mxu0
  %850 = vmatprep.mubr.bf16.mxu0 0
  %851 = vmatmul.mubr.bf16.gmra.mxu0 %v739
  %v852 = vpop.f32.mrf.mxu0
  %v853 = vadd.f32 0.0, %v852
  %v854 = vpop.f32.mrf.mxu0
  %v855 = vpop.f32.mrf.mxu0
  %v856 = vadd.f32 0.0, %v855
  %v857 = vpop.f32.mrf.mxu0
  %858 = vmatprep.mubr.bf16.mxu0 0
  %859 = vmatmul.mubr.bf16.gmra.mxu0 %v740
  %v860 = vpop.f32.mrf.mxu0
  %v861 = vadd.f32 0.0, %v860
  %v862 = vpop.f32.mrf.mxu0
  %v863 = vpop.f32.mrf.mxu0
  %v864 = vadd.f32 0.0, %v863
  %v865 = vpop.f32.mrf.mxu0
  %866 = vmatprep.mubr.bf16.mxu0 0
  %867 = vmatmul.mubr.bf16.gmra.mxu0 %v741
  %v868 = vpop.f32.mrf.mxu0
  %v869 = vadd.f32 0.0, %v868
  %v870 = vpop.f32.mrf.mxu0
  %v871 = vpop.f32.mrf.mxu0
  %v872 = vadd.f32 0.0, %v871
  %v873 = vpop.f32.mrf.mxu0
  %874 = vmatprep.mubr.bf16.mxu0 0
  %875 = vmatmul.mubr.bf16.gmra.mxu0 %v742
  %v876 = vpop.f32.mrf.mxu0
  %v877 = vadd.f32 0.0, %v876
  %v878 = vpop.f32.mrf.mxu0
  %v879 = vpop.f32.mrf.mxu0
  %v880 = vadd.f32 0.0, %v879
  %v881 = vpop.f32.mrf.mxu0
  %882 = vmatprep.mubr.bf16.mxu0 0
  %883 = vmatmul.mubr.bf16.gmra.mxu0 %v743
  %v884 = vpop.f32.mrf.mxu0
  %v885 = vadd.f32 0.0, %v884
  %v886 = vpop.f32.mrf.mxu0
  %v887 = vpop.f32.mrf.mxu0
  %v888 = vadd.f32 0.0, %v887
  %v889 = vpop.f32.mrf.mxu0
  %890 = vmatprep.mubr.bf16.mxu0 0
  %891 = vmatmul.mubr.bf16.gmra.mxu0 %v744
  %v892 = vpop.f32.mrf.mxu0
  %v893 = vadd.f32 0.0, %v892
  %v894 = vpop.f32.mrf.mxu0
  %v895 = vpop.f32.mrf.mxu0
  %v896 = vadd.f32 0.0, %v895
  %v897 = vpop.f32.mrf.mxu0
  %898 = vmatprep.mubr.bf16.mxu0 0
  %899 = vmatmul.mubr.bf16.gmra.mxu0 %v745
  %v900 = vpop.f32.mrf.mxu0
  %v901 = vadd.f32 0.0, %v900
  %v902 = vpop.f32.mrf.mxu0
  %v903 = vpop.f32.mrf.mxu0
  %v904 = vadd.f32 0.0, %v903
  %v905 = vpop.f32.mrf.mxu0
  %906 = vdwg.mxu0
  %v907 = vadd.f32 %v722, %v845
  %v908 = vadd.f32 %v723, %v848
  %v909 = vadd.f32 %v724, %v853
  %v910 = vadd.f32 %v725, %v856
  %v911 = vadd.f32 %v726, %v861
  %v912 = vadd.f32 %v727, %v864
  %v913 = vadd.f32 %v728, %v869
  %v914 = vadd.f32 %v729, %v872
  %v915 = vadd.f32 %v730, %v877
  %v916 = vadd.f32 %v731, %v880
  %v917 = vadd.f32 %v732, %v885
  %v918 = vadd.f32 %v733, %v888
  %v919 = vadd.f32 %v734, %v893
  %v920 = vadd.f32 %v735, %v896
  %v921 = vadd.f32 %v736, %v901
  %v922 = vadd.f32 %v737, %v904
  %923 = vst [vmem:[#allocation4] sm:$0xff] %v907
  %924 = vst [vmem:[#allocation4 + $0x8] sm:$0xff] %v908
  %925 = vst [vmem:[#allocation4 + $0x10] sm:$0xff] %v909
  %926 = vst [vmem:[#allocation4 + $0x18] sm:$0xff] %v910
  %927 = vst [vmem:[#allocation4 + $0x20] sm:$0xff] %v911
  %928 = vst [vmem:[#allocation4 + $0x28] sm:$0xff] %v912
  %929 = vst [vmem:[#allocation4 + $0x30] sm:$0xff] %v913
  %930 = vst [vmem:[#allocation4 + $0x38] sm:$0xff] %v914
  %931 = vst [vmem:[#allocation4 + $0x40] sm:$0xff] %v915
  %932 = vst [vmem:[#allocation4 + $0x48] sm:$0xff] %v916
  %933 = vst [vmem:[#allocation4 + $0x50] sm:$0xff] %v917
  %934 = vst [vmem:[#allocation4 + $0x58] sm:$0xff] %v918
  %935 = vst [vmem:[#allocation4 + $0x60] sm:$0xff] %v919
  %936 = vst [vmem:[#allocation4 + $0x68] sm:$0xff] %v920
  %937 = vst [vmem:[#allocation4 + $0x70] sm:$0xff] %v921
  %938 = vst [vmem:[#allocation4 + $0x78] sm:$0xff] %v922
  %939 = vst.msk [vmem:[#allocation2] sm:$0xff] %vm609, %v337
  %940 = vst.msk [vmem:[#allocation2 + $0x8] sm:$0xff] %vm609, %v338
  %941 = vst.msk [vmem:[#allocation2 + $0x10] sm:$0xff] %vm609, %v339
  %942 = vst.msk [vmem:[#allocation2 + $0x18] sm:$0xff] %vm609, %v340
  %943 = vst.msk [vmem:[#allocation2 + $0x20] sm:$0xff] %vm609, %v341
  %944 = vst.msk [vmem:[#allocation2 + $0x28] sm:$0xff] %vm609, %v342
  %945 = vst.msk [vmem:[#allocation2 + $0x30] sm:$0xff] %vm609, %v343
  %946 = vst.msk [vmem:[#allocation2 + $0x38] sm:$0xff] %vm609, %v344
  %947 = vst.msk [vmem:[#allocation2 + $0x40] sm:$0xff] %vm609, %v345
  %948 = vst.msk [vmem:[#allocation2 + $0x48] sm:$0xff] %vm609, %v346
  %949 = vst.msk [vmem:[#allocation2 + $0x50] sm:$0xff] %vm609, %v347
  %950 = vst.msk [vmem:[#allocation2 + $0x58] sm:$0xff] %vm609, %v348
  %951 = vst.msk [vmem:[#allocation2 + $0x60] sm:$0xff] %vm609, %v349
  %952 = vst.msk [vmem:[#allocation2 + $0x68] sm:$0xff] %vm609, %v350
  %953 = vst.msk [vmem:[#allocation2 + $0x70] sm:$0xff] %vm609, %v351
  %954 = vst.msk [vmem:[#allocation2 + $0x78] sm:$0xff] %vm609, %v352
  // Predicated region
  $region26: #{gat_forward.5} parent=0 // pred_check
    %p955 = pneg %p21
  $region27: #{gat_forward.5} parent=0 // pred_check_branch
    %957 = sbr.rel (%p955) target = $region29
  $region28: #{gat_forward.5} parent=0 // pred_region
    %v958 = vld [vmem:[#allocation4] sm:$0xff]
    %v959 = vld [vmem:[#allocation4 + $0x8] sm:$0xff]
    %v960 = vld [vmem:[#allocation4 + $0x10] sm:$0xff]
    %v961 = vld [vmem:[#allocation4 + $0x18] sm:$0xff]
    %v962 = vld [vmem:[#allocation4 + $0x20] sm:$0xff]
    %v963 = vld [vmem:[#allocation4 + $0x28] sm:$0xff]
    %v964 = vld [vmem:[#allocation4 + $0x30] sm:$0xff]
    %v965 = vld [vmem:[#allocation4 + $0x38] sm:$0xff]
    %v966 = vld [vmem:[#allocation4 + $0x40] sm:$0xff]
    %v967 = vld [vmem:[#allocation4 + $0x48] sm:$0xff]
    %v968 = vld [vmem:[#allocation4 + $0x50] sm:$0xff]
    %v969 = vld [vmem:[#allocation4 + $0x58] sm:$0xff]
    %v970 = vld [vmem:[#allocation4 + $0x60] sm:$0xff]
    %v971 = vld [vmem:[#allocation4 + $0x68] sm:$0xff]
    %v972 = vld [vmem:[#allocation4 + $0x70] sm:$0xff]
    %v973 = vld [vmem:[#allocation4 + $0x78] sm:$0xff]
    %v974 = vld [vmem:[#allocation3] sm:$0xff]
    %v975 = vld [vmem:[#allocation3 + $0x8] sm:$0xff]
    %v976 = vld [vmem:[#allocation3 + $0x10] sm:$0xff]
    %v977 = vld [vmem:[#allocation3 + $0x18] sm:$0xff]
    %v978 = vld [vmem:[#allocation3 + $0x20] sm:$0xff]
    %v979 = vld [vmem:[#allocation3 + $0x28] sm:$0xff]
    %v980 = vld [vmem:[#allocation3 + $0x30] sm:$0xff]
    %v981 = vld [vmem:[#allocation3 + $0x38] sm:$0xff]
    %v982 = vld [vmem:[#allocation3 + $0x40] sm:$0xff]
    %v983 = vld [vmem:[#allocation3 + $0x48] sm:$0xff]
    %v984 = vld [vmem:[#allocation3 + $0x50] sm:$0xff]
    %v985 = vld [vmem:[#allocation3 + $0x58] sm:$0xff]
    %v986 = vld [vmem:[#allocation3 + $0x60] sm:$0xff]
    %v987 = vld [vmem:[#allocation3 + $0x68] sm:$0xff]
    %v988 = vld [vmem:[#allocation3 + $0x70] sm:$0xff]
    %v989 = vld [vmem:[#allocation3 + $0x78] sm:$0xff]
    %v990 = vrcp.pop %v974
    %v991 = vrcp.pop %v975
    %v992 = vrcp.pop %v976
    %v993 = vrcp.pop %v977
    %v994 = vrcp.pop %v978
    %v995 = vrcp.pop %v979
    %v996 = vrcp.pop %v980
    %v997 = vrcp.pop %v981
    %v998 = vrcp.pop %v982
    %v999 = vrcp.pop %v983
    %v1000 = vrcp.pop %v984
    %v1001 = vrcp.pop %v985
    %v1002 = vrcp.pop %v986
    %v1003 = vrcp.pop %v987
    %v1004 = vrcp.pop %v988
    %v1005 = vrcp.pop %v989
    %1007 = vset.pattern.permute.xlu0 0
    %1008 = vperm.xlu0 %1007, %v990
    %v1009 = vpop.permute.xlu0 %1008
    %1012 = vset.pattern.permute.xlu0 0
    %1013 = vperm.xlu0 %1012, %v991
    %v1014 = vpop.permute.xlu0 %1013
    %1017 = vset.pattern.permute.xlu0 0
    %1018 = vperm.xlu0 %1017, %v992
    %v1019 = vpop.permute.xlu0 %1018
    %1022 = vset.pattern.permute.xlu0 0
    %1023 = vperm.xlu0 %1022, %v993
    %v1024 = vpop.permute.xlu0 %1023
    %1027 = vset.pattern.permute.xlu0 0
    %1028 = vperm.xlu0 %1027, %v994
    %v1029 = vpop.permute.xlu0 %1028
    %1032 = vset.pattern.permute.xlu0 0
    %1033 = vperm.xlu0 %1032, %v995
    %v1034 = vpop.permute.xlu0 %1033
    %1037 = vset.pattern.permute.xlu0 0
    %1038 = vperm.xlu0 %1037, %v996
    %v1039 = vpop.permute.xlu0 %1038
    %1042 = vset.pattern.permute.xlu0 0
    %1043 = vperm.xlu0 %1042, %v997
    %v1044 = vpop.permute.xlu0 %1043
    %1047 = vset.pattern.permute.xlu0 0
    %1048 = vperm.xlu0 %1047, %v998
    %v1049 = vpop.permute.xlu0 %1048
    %1052 = vset.pattern.permute.xlu0 0
    %1053 = vperm.xlu0 %1052, %v999
    %v1054 = vpop.permute.xlu0 %1053
    %1057 = vset.pattern.permute.xlu0 0
    %1058 = vperm.xlu0 %1057, %v1000
    %v1059 = vpop.permute.xlu0 %1058
    %1062 = vset.pattern.permute.xlu0 0
    %1063 = vperm.xlu0 %1062, %v1001
    %v1064 = vpop.permute.xlu0 %1063
    %1067 = vset.pattern.permute.xlu0 0
    %1068 = vperm.xlu0 %1067, %v1002
    %v1069 = vpop.permute.xlu0 %1068
    %1072 = vset.pattern.permute.xlu0 0
    %1073 = vperm.xlu0 %1072, %v1003
    %v1074 = vpop.permute.xlu0 %1073
    %1077 = vset.pattern.permute.xlu0 0
    %1078 = vperm.xlu0 %1077, %v1004
    %v1079 = vpop.permute.xlu0 %1078
    %1082 = vset.pattern.permute.xlu0 0
    %1083 = vperm.xlu0 %1082, %v1005
    %v1084 = vpop.permute.xlu0 %1083
    %v1086 = vmul.f32 %v958, %v1009
    %v1087 = vmul.f32 %v959, %v1014
    %v1088 = vmul.f32 %v960, %v1019
    %v1089 = vmul.f32 %v961, %v1024
    %v1090 = vmul.f32 %v962, %v1029
    %v1091 = vmul.f32 %v963, %v1034
    %v1092 = vmul.f32 %v964, %v1039
    %v1093 = vmul.f32 %v965, %v1044
    %v1094 = vmul.f32 %v966, %v1049
    %v1095 = vmul.f32 %v967, %v1054
    %v1096 = vmul.f32 %v968, %v1059
    %v1097 = vmul.f32 %v969, %v1064
    %v1098 = vmul.f32 %v970, %v1069
    %v1099 = vmul.f32 %v971, %v1074
    %v1100 = vmul.f32 %v972, %v1079
    %v1101 = vmul.f32 %v973, %v1084
    %v1102 = vld [vmem:[%s4] sm:$0x1]
    %v1104 = vlaneseq
    %v1105 = vshrl.u32 %v1104, 7
    %v1106 = vsub.s32 0, %v1105
    %v1107 = vrot.slane %v1102, %v1106
    %v1109 = vadd.f32 %v1086, %v1107
    %v1110 = vadd.f32 %v1087, %v1107
    %v1111 = vadd.f32 %v1088, %v1107
    %v1112 = vadd.f32 %v1089, %v1107
    %v1113 = vadd.f32 %v1090, %v1107
    %v1114 = vadd.f32 %v1091, %v1107
    %v1115 = vadd.f32 %v1092, %v1107
    %v1116 = vadd.f32 %v1093, %v1107
    %v1117 = vadd.f32 %v1094, %v1107
    %v1118 = vadd.f32 %v1095, %v1107
    %v1119 = vadd.f32 %v1096, %v1107
    %v1120 = vadd.f32 %v1097, %v1107
    %v1121 = vadd.f32 %v1098, %v1107
    %v1122 = vadd.f32 %v1099, %v1107
    %v1123 = vadd.f32 %v1100, %v1107
    %v1124 = vadd.f32 %v1101, %v1107
    %v1125 = vmax.f32 %v1109, 0.0
    %v1126 = vmax.f32 %v1110, 0.0
    %v1127 = vmax.f32 %v1111, 0.0
    %v1128 = vmax.f32 %v1112, 0.0
    %v1129 = vmax.f32 %v1113, 0.0
    %v1130 = vmax.f32 %v1114, 0.0
    %v1131 = vmax.f32 %v1115, 0.0
    %v1132 = vmax.f32 %v1116, 0.0
    %v1133 = vmax.f32 %v1117, 0.0
    %v1134 = vmax.f32 %v1118, 0.0
    %v1135 = vmax.f32 %v1119, 0.0
    %v1136 = vmax.f32 %v1120, 0.0
    %v1137 = vmax.f32 %v1121, 0.0
    %v1138 = vmax.f32 %v1122, 0.0
    %v1139 = vmax.f32 %v1123, 0.0
    %v1140 = vmax.f32 %v1124, 0.0
    %1141 = vst [vmem:[%s5] sm:$0xff] %v1125
    %1142 = vst [vmem:[%s5 + $0x8] sm:$0xff] %v1126
    %1143 = vst [vmem:[%s5 + $0x10] sm:$0xff] %v1127
    %1144 = vst [vmem:[%s5 + $0x18] sm:$0xff] %v1128
    %1145 = vst [vmem:[%s5 + $0x20] sm:$0xff] %v1129
    %1146 = vst [vmem:[%s5 + $0x28] sm:$0xff] %v1130
    %1147 = vst [vmem:[%s5 + $0x30] sm:$0xff] %v1131
    %1148 = vst [vmem:[%s5 + $0x38] sm:$0xff] %v1132
    %1149 = vst [vmem:[%s5 + $0x40] sm:$0xff] %v1133
    %1150 = vst [vmem:[%s5 + $0x48] sm:$0xff] %v1134
    %1151 = vst [vmem:[%s5 + $0x50] sm:$0xff] %v1135
    %1152 = vst [vmem:[%s5 + $0x58] sm:$0xff] %v1136
    %1153 = vst [vmem:[%s5 + $0x60] sm:$0xff] %v1137
    %1154 = vst [vmem:[%s5 + $0x68] sm:$0xff] %v1138
    %1155 = vst [vmem:[%s5 + $0x70] sm:$0xff] %v1139
    %1156 = vst [vmem:[%s5 + $0x78] sm:$0xff] %v1140
  $region29: #{gat_forward.5} parent=0 // pred_fallthru
    _
  // Predicated region
  $region30: #{gat_forward.5} parent=0 // pred_check
    _
  $region31: #{gat_forward.5} parent=0 // pred_check_branch
    %1158 = sbr.rel (0) target = $region33
  $region32: #{gat_forward.5} parent=0 // pred_region
    _
  $region33: #{gat_forward.5} parent=0 // pred_fallthru
    _
  // Predicated region
  $region34: #{gat_forward.5} parent=0 // pred_check
    _
  $region35: #{gat_forward.5} parent=0 // pred_check_branch
    %1160 = sbr.rel (0) target = $region37
  $region36: #{gat_forward.5} parent=0 // pred_region
    _
  $region37: #{gat_forward.5} parent=0 // pred_fallthru
    _

// kernel: gat_forward.7
$region0: #{gat_forward.7}
  #allocation0 [shape = 'u32[]', space=smem, size = 0x4, offset = 0x4, fixed_abs, tag = 'smem constant byte address 0x4 - core index']
  #allocation1 [shape = 'u32[144,128]{1,0:T(1,128)}', space=vmem, size = 0x12000, scoped, tag = 'internal scratch']
  #allocation2 [shape = 'f32[128,1]{1,0:T(8,128)}', space=vmem, size = 0x10000, scoped, tag = 'scratch operand']
  #allocation3 [shape = 'f32[128,1]{1,0:T(8,128)}', space=vmem, size = 0x10000, scoped, tag = 'scratch operand']
  #allocation4 [shape = 'f32[128,128]{1,0:T(8,128)}', space=vmem, size = 0x10000, scoped, tag = 'scratch operand']
  %s0 = inlined_call_operand.vmem [shape: f32[128,1], index: 0, kind: input, shape index: {}]
  %s1 = inlined_call_operand.vmem [shape: f32[1,128], index: 1, kind: input, shape index: {}]
  %s2 = inlined_call_operand.vmem [shape: bf16[128,128], index: 2, kind: input, shape index: {}]
  %s3 = inlined_call_operand.vmem [shape: bf16[128,128], index: 3, kind: input, shape index: {}]
  %s4 = inlined_call_operand.vmem [shape: f32[1,128], index: 4, kind: input, shape index: {}]
  %s5 = inlined_call_operand.vmem [shape: f32[128,128], index: 5, kind: output, shape index: {0}]
  %s6 = inlined_call_operand.vmem [shape: f32[128,128], index: 6, kind: output, shape index: {1}]
  %7 = xla_tuple %s5, %s6
  %s8 = sld [smem:[#allocation0]]
  $region46: #{gat_forward.7} parent=0
    _
  %s10 = ssub.s32 1, %s8
  %s11 = scalar_select 0, %s10, %s8
  // Predicated region
  $region2: #{gat_forward.7} parent=0 // pred_check
    _
  $region3: #{gat_forward.7} parent=0 // pred_check_branch
    %13 = sbr.rel (0) target = $region5
  $region4: #{gat_forward.7} parent=0 // pred_region
    _
  $region5: #{gat_forward.7} parent=0 // pred_fallthru
    _
  // Predicated region
  $region6: #{gat_forward.7} parent=0 // pred_check
    _
  $region7: #{gat_forward.7} parent=0 // pred_check_branch
    %15 = sbr.rel (0) target = $region9
  $region8: #{gat_forward.7} parent=0 // pred_region
    _
  $region9: #{gat_forward.7} parent=0 // pred_fallthru
    _
  // Predicated region
  $region10: #{gat_forward.7} parent=0 // pred_check
    _
  $region11: #{gat_forward.7} parent=0 // pred_check_branch
    %17 = sbr.rel (0) target = $region13
  $region12: #{gat_forward.7} parent=0 // pred_region
    _
  $region13: #{gat_forward.7} parent=0 // pred_fallthru
    _
  // Predicated region
  $region14: #{gat_forward.7} parent=0 // pred_check
    _
  $region15: #{gat_forward.7} parent=0 // pred_check_branch
    %19 = sbr.rel (0) target = $region17
  $region16: #{gat_forward.7} parent=0 // pred_region
    _
  $region17: #{gat_forward.7} parent=0 // pred_fallthru
    _
  // Predicated region
  $region18: #{gat_forward.7} parent=0 // pred_check
    _
  $region19: #{gat_forward.7} parent=0 // pred_check_branch
    %21 = sbr.rel (0) target = $region21
  $region20: #{gat_forward.7} parent=0 // pred_region
    _
  $region21: #{gat_forward.7} parent=0 // pred_fallthru
    _
  %p23 = scmp.eq.s32.totalorder 0, 0
  // Predicated region
  $region22: #{gat_forward.7} parent=0 // pred_check
    %p24 = pneg %p23
  $region23: #{gat_forward.7} parent=0 // pred_check_branch
    %26 = sbr.rel (%p24) target = $region25
  $region24: #{gat_forward.7} parent=0 // pred_region
    %vm27 = vcmask 7168
    %28 = vst.msk [vmem:[#allocation2] sm:$0xff] %vm27, -1e+30
    %29 = vst.msk [vmem:[#allocation2 + $0x8] sm:$0xff] %vm27, -1e+30
    %30 = vst.msk [vmem:[#allocation2 + $0x10] sm:$0xff] %vm27, -1e+30
    %31 = vst.msk [vmem:[#allocation2 + $0x18] sm:$0xff] %vm27, -1e+30
    %32 = vst.msk [vmem:[#allocation2 + $0x20] sm:$0xff] %vm27, -1e+30
    %33 = vst.msk [vmem:[#allocation2 + $0x28] sm:$0xff] %vm27, -1e+30
    %34 = vst.msk [vmem:[#allocation2 + $0x30] sm:$0xff] %vm27, -1e+30
    %35 = vst.msk [vmem:[#allocation2 + $0x38] sm:$0xff] %vm27, -1e+30
    %36 = vst.msk [vmem:[#allocation2 + $0x40] sm:$0xff] %vm27, -1e+30
    %37 = vst.msk [vmem:[#allocation2 + $0x48] sm:$0xff] %vm27, -1e+30
    %38 = vst.msk [vmem:[#allocation2 + $0x50] sm:$0xff] %vm27, -1e+30
    %39 = vst.msk [vmem:[#allocation2 + $0x58] sm:$0xff] %vm27, -1e+30
    %40 = vst.msk [vmem:[#allocation2 + $0x60] sm:$0xff] %vm27, -1e+30
    %41 = vst.msk [vmem:[#allocation2 + $0x68] sm:$0xff] %vm27, -1e+30
    %42 = vst.msk [vmem:[#allocation2 + $0x70] sm:$0xff] %vm27, -1e+30
    %43 = vst.msk [vmem:[#allocation2 + $0x78] sm:$0xff] %vm27, -1e+30
    %44 = vst.msk [vmem:[#allocation3] sm:$0xff] %vm27, 0.0
    %45 = vst.msk [vmem:[#allocation3 + $0x8] sm:$0xff] %vm27, 0.0
    %46 = vst.msk [vmem:[#allocation3 + $0x10] sm:$0xff] %vm27, 0.0
    %47 = vst.msk [vmem:[#allocation3 + $0x18] sm:$0xff] %vm27, 0.0
    %48 = vst.msk [vmem:[#allocation3 + $0x20] sm:$0xff] %vm27, 0.0
    %49 = vst.msk [vmem:[#allocation3 + $0x28] sm:$0xff] %vm27, 0.0
    %50 = vst.msk [vmem:[#allocation3 + $0x30] sm:$0xff] %vm27, 0.0
    %51 = vst.msk [vmem:[#allocation3 + $0x38] sm:$0xff] %vm27, 0.0
    %52 = vst.msk [vmem:[#allocation3 + $0x40] sm:$0xff] %vm27, 0.0
    %53 = vst.msk [vmem:[#allocation3 + $0x48] sm:$0xff] %vm27, 0.0
    %54 = vst.msk [vmem:[#allocation3 + $0x50] sm:$0xff] %vm27, 0.0
    %55 = vst.msk [vmem:[#allocation3 + $0x58] sm:$0xff] %vm27, 0.0
    %56 = vst.msk [vmem:[#allocation3 + $0x60] sm:$0xff] %vm27, 0.0
    %57 = vst.msk [vmem:[#allocation3 + $0x68] sm:$0xff] %vm27, 0.0
    %58 = vst.msk [vmem:[#allocation3 + $0x70] sm:$0xff] %vm27, 0.0
    %59 = vst.msk [vmem:[#allocation3 + $0x78] sm:$0xff] %vm27, 0.0
    %60 = vst [vmem:[#allocation4] sm:$0xff] 0.0
    %61 = vst [vmem:[#allocation4 + $0x8] sm:$0xff] 0.0
    %62 = vst [vmem:[#allocation4 + $0x10] sm:$0xff] 0.0
    %63 = vst [vmem:[#allocation4 + $0x18] sm:$0xff] 0.0
    %64 = vst [vmem:[#allocation4 + $0x20] sm:$0xff] 0.0
    %65 = vst [vmem:[#allocation4 + $0x28] sm:$0xff] 0.0
    %66 = vst [vmem:[#allocation4 + $0x30] sm:$0xff] 0.0
    %67 = vst [vmem:[#allocation4 + $0x38] sm:$0xff] 0.0
    %68 = vst [vmem:[#allocation4 + $0x40] sm:$0xff] 0.0
    %69 = vst [vmem:[#allocation4 + $0x48] sm:$0xff] 0.0
    %70 = vst [vmem:[#allocation4 + $0x50] sm:$0xff] 0.0
    %71 = vst [vmem:[#allocation4 + $0x58] sm:$0xff] 0.0
    %72 = vst [vmem:[#allocation4 + $0x60] sm:$0xff] 0.0
    %73 = vst [vmem:[#allocation4 + $0x68] sm:$0xff] 0.0
    %74 = vst [vmem:[#allocation4 + $0x70] sm:$0xff] 0.0
    %75 = vst [vmem:[#allocation4 + $0x78] sm:$0xff] 0.0
  $region25: #{gat_forward.7} parent=0 // pred_fallthru
    _
  %v76 = vld [vmem:[%s0] sm:$0xff]
  %v77 = vld [vmem:[%s0 + $0x8] sm:$0xff]
  %v78 = vld [vmem:[%s0 + $0x10] sm:$0xff]
  %v79 = vld [vmem:[%s0 + $0x18] sm:$0xff]
  %v80 = vld [vmem:[%s0 + $0x20] sm:$0xff]
  %v81 = vld [vmem:[%s0 + $0x28] sm:$0xff]
  %v82 = vld [vmem:[%s0 + $0x30] sm:$0xff]
  %v83 = vld [vmem:[%s0 + $0x38] sm:$0xff]
  %v84 = vld [vmem:[%s0 + $0x40] sm:$0xff]
  %v85 = vld [vmem:[%s0 + $0x48] sm:$0xff]
  %v86 = vld [vmem:[%s0 + $0x50] sm:$0xff]
  %v87 = vld [vmem:[%s0 + $0x58] sm:$0xff]
  %v88 = vld [vmem:[%s0 + $0x60] sm:$0xff]
  %v89 = vld [vmem:[%s0 + $0x68] sm:$0xff]
  %v90 = vld [vmem:[%s0 + $0x70] sm:$0xff]
  %v91 = vld [vmem:[%s0 + $0x78] sm:$0xff]
  %v92 = vld [vmem:[%s1] sm:$0x1]
  %94 = vset.pattern.permute.xlu0 0
  %95 = vperm.xlu0 %94, %v76
  %v96 = vpop.permute.xlu0 %95
  %99 = vset.pattern.permute.xlu0 0
  %100 = vperm.xlu0 %99, %v77
  %v101 = vpop.permute.xlu0 %100
  %104 = vset.pattern.permute.xlu0 0
  %105 = vperm.xlu0 %104, %v78
  %v106 = vpop.permute.xlu0 %105
  %109 = vset.pattern.permute.xlu0 0
  %110 = vperm.xlu0 %109, %v79
  %v111 = vpop.permute.xlu0 %110
  %114 = vset.pattern.permute.xlu0 0
  %115 = vperm.xlu0 %114, %v80
  %v116 = vpop.permute.xlu0 %115
  %119 = vset.pattern.permute.xlu0 0
  %120 = vperm.xlu0 %119, %v81
  %v121 = vpop.permute.xlu0 %120
  %124 = vset.pattern.permute.xlu0 0
  %125 = vperm.xlu0 %124, %v82
  %v126 = vpop.permute.xlu0 %125
  %129 = vset.pattern.permute.xlu0 0
  %130 = vperm.xlu0 %129, %v83
  %v131 = vpop.permute.xlu0 %130
  %134 = vset.pattern.permute.xlu0 0
  %135 = vperm.xlu0 %134, %v84
  %v136 = vpop.permute.xlu0 %135
  %139 = vset.pattern.permute.xlu0 0
  %140 = vperm.xlu0 %139, %v85
  %v141 = vpop.permute.xlu0 %140
  %144 = vset.pattern.permute.xlu0 0
  %145 = vperm.xlu0 %144, %v86
  %v146 = vpop.permute.xlu0 %145
  %149 = vset.pattern.permute.xlu0 0
  %150 = vperm.xlu0 %149, %v87
  %v151 = vpop.permute.xlu0 %150
  %154 = vset.pattern.permute.xlu0 0
  %155 = vperm.xlu0 %154, %v88
  %v156 = vpop.permute.xlu0 %155
  %159 = vset.pattern.permute.xlu0 0
  %160 = vperm.xlu0 %159, %v89
  %v161 = vpop.permute.xlu0 %160
  %164 = vset.pattern.permute.xlu0 0
  %165 = vperm.xlu0 %164, %v90
  %v166 = vpop.permute.xlu0 %165
  %169 = vset.pattern.permute.xlu0 0
  %170 = vperm.xlu0 %169, %v91
  %v171 = vpop.permute.xlu0 %170
  %v174 = vlaneseq
  %v175 = vshrl.u32 %v174, 7
  %v176 = vsub.s32 0, %v175
  %v177 = vrot.slane %v92, %v176
  %v179 = vadd.f32 %v96, %v177
  %v180 = vadd.f32 %v101, %v177
  %v181 = vadd.f32 %v106, %v177
  %v182 = vadd.f32 %v111, %v177
  %v183 = vadd.f32 %v116, %v177
  %v184 = vadd.f32 %v121, %v177
  %v185 = vadd.f32 %v126, %v177
  %v186 = vadd.f32 %v131, %v177
  %v187 = vadd.f32 %v136, %v177
  %v188 = vadd.f32 %v141, %v177
  %v189 = vadd.f32 %v146, %v177
  %v190 = vadd.f32 %v151, %v177
  %v191 = vadd.f32 %v156, %v177
  %v192 = vadd.f32 %v161, %v177
  %v193 = vadd.f32 %v166, %v177
  %v194 = vadd.f32 %v171, %v177
  %vm195 = vcmp.gt.f32.partialorder %v179, 0.0
  %vm196 = vcmp.gt.f32.partialorder %v180, 0.0
  %vm197 = vcmp.gt.f32.partialorder %v181, 0.0
  %vm198 = vcmp.gt.f32.partialorder %v182, 0.0
  %vm199 = vcmp.gt.f32.partialorder %v183, 0.0
  %vm200 = vcmp.gt.f32.partialorder %v184, 0.0
  %vm201 = vcmp.gt.f32.partialorder %v185, 0.0
  %vm202 = vcmp.gt.f32.partialorder %v186, 0.0
  %vm203 = vcmp.gt.f32.partialorder %v187, 0.0
  %vm204 = vcmp.gt.f32.partialorder %v188, 0.0
  %vm205 = vcmp.gt.f32.partialorder %v189, 0.0
  %vm206 = vcmp.gt.f32.partialorder %v190, 0.0
  %vm207 = vcmp.gt.f32.partialorder %v191, 0.0
  %vm208 = vcmp.gt.f32.partialorder %v192, 0.0
  %vm209 = vcmp.gt.f32.partialorder %v193, 0.0
  %vm210 = vcmp.gt.f32.partialorder %v194, 0.0
  %v211 = vmul.f32 %v179, 0.2
  %v212 = vmul.f32 %v180, 0.2
  %v213 = vmul.f32 %v181, 0.2
  %v214 = vmul.f32 %v182, 0.2
  %v215 = vmul.f32 %v183, 0.2
  %v216 = vmul.f32 %v184, 0.2
  %v217 = vmul.f32 %v185, 0.2
  %v218 = vmul.f32 %v186, 0.2
  %v219 = vmul.f32 %v187, 0.2
  %v220 = vmul.f32 %v188, 0.2
  %v221 = vmul.f32 %v189, 0.2
  %v222 = vmul.f32 %v190, 0.2
  %v223 = vmul.f32 %v191, 0.2
  %v224 = vmul.f32 %v192, 0.2
  %v225 = vmul.f32 %v193, 0.2
  %v226 = vmul.f32 %v194, 0.2
  %v227 = vsel %vm195, %v179, %v211
  %v228 = vsel %vm196, %v180, %v212
  %v229 = vsel %vm197, %v181, %v213
  %v230 = vsel %vm198, %v182, %v214
  %v231 = vsel %vm199, %v183, %v215
  %v232 = vsel %vm200, %v184, %v216
  %v233 = vsel %vm201, %v185, %v217
  %v234 = vsel %vm202, %v186, %v218
  %v235 = vsel %vm203, %v187, %v219
  %v236 = vsel %vm204, %v188, %v220
  %v237 = vsel %vm205, %v189, %v221
  %v238 = vsel %vm206, %v190, %v222
  %v239 = vsel %vm207, %v191, %v223
  %v240 = vsel %vm208, %v192, %v224
  %v241 = vsel %vm209, %v193, %v225
  %v242 = vsel %vm210, %v194, %v226
  %v243 = vld [vmem:[%s2] sm:$0xf]
  %v244 = vld [vmem:[%s2 + $0x4] sm:$0xf]
  %v245 = vld [vmem:[%s2 + $0x8] sm:$0xf]
  %v246 = vld [vmem:[%s2 + $0xc] sm:$0xf]
  %v247 = vld [vmem:[%s2 + $0x10] sm:$0xf]
  %v248 = vld [vmem:[%s2 + $0x14] sm:$0xf]
  %v249 = vld [vmem:[%s2 + $0x18] sm:$0xf]
  %v250 = vld [vmem:[%s2 + $0x1c] sm:$0xf]
  %v251 = vld [vmem:[%s2 + $0x20] sm:$0xf]
  %v252 = vld [vmem:[%s2 + $0x24] sm:$0xf]
  %v253 = vld [vmem:[%s2 + $0x28] sm:$0xf]
  %v254 = vld [vmem:[%s2 + $0x2c] sm:$0xf]
  %v255 = vld [vmem:[%s2 + $0x30] sm:$0xf]
  %v256 = vld [vmem:[%s2 + $0x34] sm:$0xf]
  %v257 = vld [vmem:[%s2 + $0x38] sm:$0xf]
  %v258 = vld [vmem:[%s2 + $0x3c] sm:$0xf]
  %v259 = vunpack.c.l.bf16 %v243
  %v260 = vunpack.c.l.bf16 %v244
  %v261 = vunpack.c.l.bf16 %v245
  %v262 = vunpack.c.l.bf16 %v246
  %v263 = vunpack.c.l.bf16 %v247
  %v264 = vunpack.c.l.bf16 %v248
  %v265 = vunpack.c.l.bf16 %v249
  %v266 = vunpack.c.l.bf16 %v250
  %v267 = vunpack.c.l.bf16 %v251
  %v268 = vunpack.c.l.bf16 %v252
  %v269 = vunpack.c.l.bf16 %v253
  %v270 = vunpack.c.l.bf16 %v254
  %v271 = vunpack.c.l.bf16 %v255
  %v272 = vunpack.c.l.bf16 %v256
  %v273 = vunpack.c.l.bf16 %v257
  %v274 = vunpack.c.l.bf16 %v258
  %v275 = vadd.f32 %v227, %v259
  %v276 = vadd.f32 %v228, %v260
  %v277 = vadd.f32 %v229, %v261
  %v278 = vadd.f32 %v230, %v262
  %v279 = vadd.f32 %v231, %v263
  %v280 = vadd.f32 %v232, %v264
  %v281 = vadd.f32 %v233, %v265
  %v282 = vadd.f32 %v234, %v266
  %v283 = vadd.f32 %v235, %v267
  %v284 = vadd.f32 %v236, %v268
  %v285 = vadd.f32 %v237, %v269
  %v286 = vadd.f32 %v238, %v270
  %v287 = vadd.f32 %v239, %v271
  %v288 = vadd.f32 %v240, %v272
  %v289 = vadd.f32 %v241, %v273
  %v290 = vadd.f32 %v242, %v274
  %v291 = vld [vmem:[#allocation2] sm:$0xff]
  %v292 = vld [vmem:[#allocation2 + $0x8] sm:$0xff]
  %v293 = vld [vmem:[#allocation2 + $0x10] sm:$0xff]
  %v294 = vld [vmem:[#allocation2 + $0x18] sm:$0xff]
  %v295 = vld [vmem:[#allocation2 + $0x20] sm:$0xff]
  %v296 = vld [vmem:[#allocation2 + $0x28] sm:$0xff]
  %v297 = vld [vmem:[#allocation2 + $0x30] sm:$0xff]
  %v298 = vld [vmem:[#allocation2 + $0x38] sm:$0xff]
  %v299 = vld [vmem:[#allocation2 + $0x40] sm:$0xff]
  %v300 = vld [vmem:[#allocation2 + $0x48] sm:$0xff]
  %v301 = vld [vmem:[#allocation2 + $0x50] sm:$0xff]
  %v302 = vld [vmem:[#allocation2 + $0x58] sm:$0xff]
  %v303 = vld [vmem:[#allocation2 + $0x60] sm:$0xff]
  %v304 = vld [vmem:[#allocation2 + $0x68] sm:$0xff]
  %v305 = vld [vmem:[#allocation2 + $0x70] sm:$0xff]
  %v306 = vld [vmem:[#allocation2 + $0x78] sm:$0xff]
  %307 = vmax.xlane.f32.xlu0 %v275
  %v308 = vpop.xlane.xlu0 %307
  %309 = vmax.xlane.f32.xlu0 %v276
  %v310 = vpop.xlane.xlu0 %309
  %311 = vmax.xlane.f32.xlu0 %v277
  %v312 = vpop.xlane.xlu0 %311
  %313 = vmax.xlane.f32.xlu0 %v278
  %v314 = vpop.xlane.xlu0 %313
  %315 = vmax.xlane.f32.xlu0 %v279
  %v316 = vpop.xlane.xlu0 %315
  %317 = vmax.xlane.f32.xlu0 %v280
  %v318 = vpop.xlane.xlu0 %317
  %319 = vmax.xlane.f32.xlu0 %v281
  %v320 = vpop.xlane.xlu0 %319
  %321 = vmax.xlane.f32.xlu0 %v282
  %v322 = vpop.xlane.xlu0 %321
  %323 = vmax.xlane.f32.xlu0 %v283
  %v324 = vpop.xlane.xlu0 %323
  %325 = vmax.xlane.f32.xlu0 %v284
  %v326 = vpop.xlane.xlu0 %325
  %327 = vmax.xlane.f32.xlu0 %v285
  %v328 = vpop.xlane.xlu0 %327
  %329 = vmax.xlane.f32.xlu0 %v286
  %v330 = vpop.xlane.xlu0 %329
  %331 = vmax.xlane.f32.xlu0 %v287
  %v332 = vpop.xlane.xlu0 %331
  %333 = vmax.xlane.f32.xlu0 %v288
  %v334 = vpop.xlane.xlu0 %333
  %335 = vmax.xlane.f32.xlu0 %v289
  %v336 = vpop.xlane.xlu0 %335
  %337 = vmax.xlane.f32.xlu0 %v290
  %v338 = vpop.xlane.xlu0 %337
  %v339 = vmax.f32 %v291, %v308
  %v340 = vmax.f32 %v292, %v310
  %v341 = vmax.f32 %v293, %v312
  %v342 = vmax.f32 %v294, %v314
  %v343 = vmax.f32 %v295, %v316
  %v344 = vmax.f32 %v296, %v318
  %v345 = vmax.f32 %v297, %v320
  %v346 = vmax.f32 %v298, %v322
  %v347 = vmax.f32 %v299, %v324
  %v348 = vmax.f32 %v300, %v326
  %v349 = vmax.f32 %v301, %v328
  %v350 = vmax.f32 %v302, %v330
  %v351 = vmax.f32 %v303, %v332
  %v352 = vmax.f32 %v304, %v334
  %v353 = vmax.f32 %v305, %v336
  %v354 = vmax.f32 %v306, %v338
  %v355 = vsub.f32 %v291, %v339
  %v356 = vsub.f32 %v292, %v340
  %v357 = vsub.f32 %v293, %v341
  %v358 = vsub.f32 %v294, %v342
  %v359 = vsub.f32 %v295, %v343
  %v360 = vsub.f32 %v296, %v344
  %v361 = vsub.f32 %v297, %v345
  %v362 = vsub.f32 %v298, %v346
  %v363 = vsub.f32 %v299, %v347
  %v364 = vsub.f32 %v300, %v348
  %v365 = vsub.f32 %v301, %v349
  %v366 = vsub.f32 %v302, %v350
  %v367 = vsub.f32 %v303, %v351
  %v368 = vsub.f32 %v304, %v352
  %v369 = vsub.f32 %v305, %v353
  %v370 = vsub.f32 %v306, %v354
  %v371 = vmul.f32 %v355, 1.442695
  %v372 = vpow.pop %v371
  %v373 = vmul.f32 %v356, 1.442695
  %v374 = vpow.pop %v373
  %v375 = vmul.f32 %v357, 1.442695
  %v376 = vpow.pop %v375
  %v377 = vmul.f32 %v358, 1.442695
  %v378 = vpow.pop %v377
  %v379 = vmul.f32 %v359, 1.442695
  %v380 = vpow.pop %v379
  %v381 = vmul.f32 %v360, 1.442695
  %v382 = vpow.pop %v381
  %v383 = vmul.f32 %v361, 1.442695
  %v384 = vpow.pop %v383
  %v385 = vmul.f32 %v362, 1.442695
  %v386 = vpow.pop %v385
  %v387 = vmul.f32 %v363, 1.442695
  %v388 = vpow.pop %v387
  %v389 = vmul.f32 %v364, 1.442695
  %v390 = vpow.pop %v389
  %v391 = vmul.f32 %v365, 1.442695
  %v392 = vpow.pop %v391
  %v393 = vmul.f32 %v366, 1.442695
  %v394 = vpow.pop %v393
  %v395 = vmul.f32 %v367, 1.442695
  %v396 = vpow.pop %v395
  %v397 = vmul.f32 %v368, 1.442695
  %v398 = vpow.pop %v397
  %v399 = vmul.f32 %v369, 1.442695
  %v400 = vpow.pop %v399
  %v401 = vmul.f32 %v370, 1.442695
  %v402 = vpow.pop %v401
  %404 = vset.pattern.permute.xlu0 0
  %405 = vperm.xlu0 %404, %v339
  %v406 = vpop.permute.xlu0 %405
  %409 = vset.pattern.permute.xlu0 0
  %410 = vperm.xlu0 %409, %v340
  %v411 = vpop.permute.xlu0 %410
  %414 = vset.pattern.permute.xlu0 0
  %415 = vperm.xlu0 %414, %v341
  %v416 = vpop.permute.xlu0 %415
  %419 = vset.pattern.permute.xlu0 0
  %420 = vperm.xlu0 %419, %v342
  %v421 = vpop.permute.xlu0 %420
  %424 = vset.pattern.permute.xlu0 0
  %425 = vperm.xlu0 %424, %v343
  %v426 = vpop.permute.xlu0 %425
  %429 = vset.pattern.permute.xlu0 0
  %430 = vperm.xlu0 %429, %v344
  %v431 = vpop.permute.xlu0 %430
  %434 = vset.pattern.permute.xlu0 0
  %435 = vperm.xlu0 %434, %v345
  %v436 = vpop.permute.xlu0 %435
  %439 = vset.pattern.permute.xlu0 0
  %440 = vperm.xlu0 %439, %v346
  %v441 = vpop.permute.xlu0 %440
  %444 = vset.pattern.permute.xlu0 0
  %445 = vperm.xlu0 %444, %v347
  %v446 = vpop.permute.xlu0 %445
  %449 = vset.pattern.permute.xlu0 0
  %450 = vperm.xlu0 %449, %v348
  %v451 = vpop.permute.xlu0 %450
  %454 = vset.pattern.permute.xlu0 0
  %455 = vperm.xlu0 %454, %v349
  %v456 = vpop.permute.xlu0 %455
  %459 = vset.pattern.permute.xlu0 0
  %460 = vperm.xlu0 %459, %v350
  %v461 = vpop.permute.xlu0 %460
  %464 = vset.pattern.permute.xlu0 0
  %465 = vperm.xlu0 %464, %v351
  %v466 = vpop.permute.xlu0 %465
  %469 = vset.pattern.permute.xlu0 0
  %470 = vperm.xlu0 %469, %v352
  %v471 = vpop.permute.xlu0 %470
  %474 = vset.pattern.permute.xlu0 0
  %475 = vperm.xlu0 %474, %v353
  %v476 = vpop.permute.xlu0 %475
  %479 = vset.pattern.permute.xlu0 0
  %480 = vperm.xlu0 %479, %v354
  %v481 = vpop.permute.xlu0 %480
  %v483 = vsub.f32 %v275, %v406
  %v484 = vsub.f32 %v276, %v411
  %v485 = vsub.f32 %v277, %v416
  %v486 = vsub.f32 %v278, %v421
  %v487 = vsub.f32 %v279, %v426
  %v488 = vsub.f32 %v280, %v431
  %v489 = vsub.f32 %v281, %v436
  %v490 = vsub.f32 %v282, %v441
  %v491 = vsub.f32 %v283, %v446
  %v492 = vsub.f32 %v284, %v451
  %v493 = vsub.f32 %v285, %v456
  %v494 = vsub.f32 %v286, %v461
  %v495 = vsub.f32 %v287, %v466
  %v496 = vsub.f32 %v288, %v471
  %v497 = vsub.f32 %v289, %v476
  %v498 = vsub.f32 %v290, %v481
  %v499 = vmul.f32 %v483, 1.442695
  %v500 = vpow.pop %v499
  %v501 = vmul.f32 %v484, 1.442695
  %v502 = vpow.pop %v501
  %v503 = vmul.f32 %v485, 1.442695
  %v504 = vpow.pop %v503
  %v505 = vmul.f32 %v486, 1.442695
  %v506 = vpow.pop %v505
  %v507 = vmul.f32 %v487, 1.442695
  %v508 = vpow.pop %v507
  %v509 = vmul.f32 %v488, 1.442695
  %v510 = vpow.pop %v509
  %v511 = vmul.f32 %v489, 1.442695
  %v512 = vpow.pop %v511
  %v513 = vmul.f32 %v490, 1.442695
  %v514 = vpow.pop %v513
  %v515 = vmul.f32 %v491, 1.442695
  %v516 = vpow.pop %v515
  %v517 = vmul.f32 %v492, 1.442695
  %v518 = vpow.pop %v517
  %v519 = vmul.f32 %v493, 1.442695
  %v520 = vpow.pop %v519
  %v521 = vmul.f32 %v494, 1.442695
  %v522 = vpow.pop %v521
  %v523 = vmul.f32 %v495, 1.442695
  %v524 = vpow.pop %v523
  %v525 = vmul.f32 %v496, 1.442695
  %v526 = vpow.pop %v525
  %v527 = vmul.f32 %v497, 1.442695
  %v528 = vpow.pop %v527
  %v529 = vmul.f32 %v498, 1.442695
  %v530 = vpow.pop %v529
  %v531 = vld [vmem:[#allocation3] sm:$0xff]
  %v532 = vld [vmem:[#allocation3 + $0x8] sm:$0xff]
  %v533 = vld [vmem:[#allocation3 + $0x10] sm:$0xff]
  %v534 = vld [vmem:[#allocation3 + $0x18] sm:$0xff]
  %v535 = vld [vmem:[#allocation3 + $0x20] sm:$0xff]
  %v536 = vld [vmem:[#allocation3 + $0x28] sm:$0xff]
  %v537 = vld [vmem:[#allocation3 + $0x30] sm:$0xff]
  %v538 = vld [vmem:[#allocation3 + $0x38] sm:$0xff]
  %v539 = vld [vmem:[#allocation3 + $0x40] sm:$0xff]
  %v540 = vld [vmem:[#allocation3 + $0x48] sm:$0xff]
  %v541 = vld [vmem:[#allocation3 + $0x50] sm:$0xff]
  %v542 = vld [vmem:[#allocation3 + $0x58] sm:$0xff]
  %v543 = vld [vmem:[#allocation3 + $0x60] sm:$0xff]
  %v544 = vld [vmem:[#allocation3 + $0x68] sm:$0xff]
  %v545 = vld [vmem:[#allocation3 + $0x70] sm:$0xff]
  %v546 = vld [vmem:[#allocation3 + $0x78] sm:$0xff]
  %v547 = vmul.f32 %v372, %v531
  %v548 = vmul.f32 %v374, %v532
  %v549 = vmul.f32 %v376, %v533
  %v550 = vmul.f32 %v378, %v534
  %v551 = vmul.f32 %v380, %v535
  %v552 = vmul.f32 %v382, %v536
  %v553 = vmul.f32 %v384, %v537
  %v554 = vmul.f32 %v386, %v538
  %v555 = vmul.f32 %v388, %v539
  %v556 = vmul.f32 %v390, %v540
  %v557 = vmul.f32 %v392, %v541
  %v558 = vmul.f32 %v394, %v542
  %v559 = vmul.f32 %v396, %v543
  %v560 = vmul.f32 %v398, %v544
  %v561 = vmul.f32 %v400, %v545
  %v562 = vmul.f32 %v402, %v546
  %563 = vadd.xlane.f32.xlu0 %v500
  %v564 = vpop.xlane.xlu0 %563
  %565 = vadd.xlane.f32.xlu0 %v502
  %v566 = vpop.xlane.xlu0 %565
  %567 = vadd.xlane.f32.xlu0 %v504
  %v568 = vpop.xlane.xlu0 %567
  %569 = vadd.xlane.f32.xlu0 %v506
  %v570 = vpop.xlane.xlu0 %569
  %571 = vadd.xlane.f32.xlu0 %v508
  %v572 = vpop.xlane.xlu0 %571
  %573 = vadd.xlane.f32.xlu0 %v510
  %v574 = vpop.xlane.xlu0 %573
  %575 = vadd.xlane.f32.xlu0 %v512
  %v576 = vpop.xlane.xlu0 %575
  %577 = vadd.xlane.f32.xlu0 %v514
  %v578 = vpop.xlane.xlu0 %577
  %579 = vadd.xlane.f32.xlu0 %v516
  %v580 = vpop.xlane.xlu0 %579
  %581 = vadd.xlane.f32.xlu0 %v518
  %v582 = vpop.xlane.xlu0 %581
  %583 = vadd.xlane.f32.xlu0 %v520
  %v584 = vpop.xlane.xlu0 %583
  %585 = vadd.xlane.f32.xlu0 %v522
  %v586 = vpop.xlane.xlu0 %585
  %587 = vadd.xlane.f32.xlu0 %v524
  %v588 = vpop.xlane.xlu0 %587
  %589 = vadd.xlane.f32.xlu0 %v526
  %v590 = vpop.xlane.xlu0 %589
  %591 = vadd.xlane.f32.xlu0 %v528
  %v592 = vpop.xlane.xlu0 %591
  %593 = vadd.xlane.f32.xlu0 %v530
  %v594 = vpop.xlane.xlu0 %593
  %v595 = vadd.f32 %v547, %v564
  %v596 = vadd.f32 %v548, %v566
  %v597 = vadd.f32 %v549, %v568
  %v598 = vadd.f32 %v550, %v570
  %v599 = vadd.f32 %v551, %v572
  %v600 = vadd.f32 %v552, %v574
  %v601 = vadd.f32 %v553, %v576
  %v602 = vadd.f32 %v554, %v578
  %v603 = vadd.f32 %v555, %v580
  %v604 = vadd.f32 %v556, %v582
  %v605 = vadd.f32 %v557, %v584
  %v606 = vadd.f32 %v558, %v586
  %v607 = vadd.f32 %v559, %v588
  %v608 = vadd.f32 %v560, %v590
  %v609 = vadd.f32 %v561, %v592
  %v610 = vadd.f32 %v562, %v594
  %vm611 = vcmask 7168
  %612 = vst.msk [vmem:[#allocation3] sm:$0xff] %vm611, %v595
  %613 = vst.msk [vmem:[#allocation3 + $0x8] sm:$0xff] %vm611, %v596
  %614 = vst.msk [vmem:[#allocation3 + $0x10] sm:$0xff] %vm611, %v597
  %615 = vst.msk [vmem:[#allocation3 + $0x18] sm:$0xff] %vm611, %v598
  %616 = vst.msk [vmem:[#allocation3 + $0x20] sm:$0xff] %vm611, %v599
  %617 = vst.msk [vmem:[#allocation3 + $0x28] sm:$0xff] %vm611, %v600
  %618 = vst.msk [vmem:[#allocation3 + $0x30] sm:$0xff] %vm611, %v601
  %619 = vst.msk [vmem:[#allocation3 + $0x38] sm:$0xff] %vm611, %v602
  %620 = vst.msk [vmem:[#allocation3 + $0x40] sm:$0xff] %vm611, %v603
  %621 = vst.msk [vmem:[#allocation3 + $0x48] sm:$0xff] %vm611, %v604
  %622 = vst.msk [vmem:[#allocation3 + $0x50] sm:$0xff] %vm611, %v605
  %623 = vst.msk [vmem:[#allocation3 + $0x58] sm:$0xff] %vm611, %v606
  %624 = vst.msk [vmem:[#allocation3 + $0x60] sm:$0xff] %vm611, %v607
  %625 = vst.msk [vmem:[#allocation3 + $0x68] sm:$0xff] %vm611, %v608
  %626 = vst.msk [vmem:[#allocation3 + $0x70] sm:$0xff] %vm611, %v609
  %627 = vst.msk [vmem:[#allocation3 + $0x78] sm:$0xff] %vm611, %v610
  %v628 = vld [vmem:[#allocation4] sm:$0xff]
  %v629 = vld [vmem:[#allocation4 + $0x8] sm:$0xff]
  %v630 = vld [vmem:[#allocation4 + $0x10] sm:$0xff]
  %v631 = vld [vmem:[#allocation4 + $0x18] sm:$0xff]
  %v632 = vld [vmem:[#allocation4 + $0x20] sm:$0xff]
  %v633 = vld [vmem:[#allocation4 + $0x28] sm:$0xff]
  %v634 = vld [vmem:[#allocation4 + $0x30] sm:$0xff]
  %v635 = vld [vmem:[#allocation4 + $0x38] sm:$0xff]
  %v636 = vld [vmem:[#allocation4 + $0x40] sm:$0xff]
  %v637 = vld [vmem:[#allocation4 + $0x48] sm:$0xff]
  %v638 = vld [vmem:[#allocation4 + $0x50] sm:$0xff]
  %v639 = vld [vmem:[#allocation4 + $0x58] sm:$0xff]
  %v640 = vld [vmem:[#allocation4 + $0x60] sm:$0xff]
  %v641 = vld [vmem:[#allocation4 + $0x68] sm:$0xff]
  %v642 = vld [vmem:[#allocation4 + $0x70] sm:$0xff]
  %v643 = vld [vmem:[#allocation4 + $0x78] sm:$0xff]
  %645 = vset.pattern.permute.xlu0 0
  %646 = vperm.xlu0 %645, %v372
  %v647 = vpop.permute.xlu0 %646
  %650 = vset.pattern.permute.xlu0 0
  %651 = vperm.xlu0 %650, %v374
  %v652 = vpop.permute.xlu0 %651
  %655 = vset.pattern.permute.xlu0 0
  %656 = vperm.xlu0 %655, %v376
  %v657 = vpop.permute.xlu0 %656
  %660 = vset.pattern.permute.xlu0 0
  %661 = vperm.xlu0 %660, %v378
  %v662 = vpop.permute.xlu0 %661
  %665 = vset.pattern.permute.xlu0 0
  %666 = vperm.xlu0 %665, %v380
  %v667 = vpop.permute.xlu0 %666
  %670 = vset.pattern.permute.xlu0 0
  %671 = vperm.xlu0 %670, %v382
  %v672 = vpop.permute.xlu0 %671
  %675 = vset.pattern.permute.xlu0 0
  %676 = vperm.xlu0 %675, %v384
  %v677 = vpop.permute.xlu0 %676
  %680 = vset.pattern.permute.xlu0 0
  %681 = vperm.xlu0 %680, %v386
  %v682 = vpop.permute.xlu0 %681
  %685 = vset.pattern.permute.xlu0 0
  %686 = vperm.xlu0 %685, %v388
  %v687 = vpop.permute.xlu0 %686
  %690 = vset.pattern.permute.xlu0 0
  %691 = vperm.xlu0 %690, %v390
  %v692 = vpop.permute.xlu0 %691
  %695 = vset.pattern.permute.xlu0 0
  %696 = vperm.xlu0 %695, %v392
  %v697 = vpop.permute.xlu0 %696
  %700 = vset.pattern.permute.xlu0 0
  %701 = vperm.xlu0 %700, %v394
  %v702 = vpop.permute.xlu0 %701
  %705 = vset.pattern.permute.xlu0 0
  %706 = vperm.xlu0 %705, %v396
  %v707 = vpop.permute.xlu0 %706
  %710 = vset.pattern.permute.xlu0 0
  %711 = vperm.xlu0 %710, %v398
  %v712 = vpop.permute.xlu0 %711
  %715 = vset.pattern.permute.xlu0 0
  %716 = vperm.xlu0 %715, %v400
  %v717 = vpop.permute.xlu0 %716
  %720 = vset.pattern.permute.xlu0 0
  %721 = vperm.xlu0 %720, %v402
  %v722 = vpop.permute.xlu0 %721
  %v724 = vmul.f32 %v647, %v628
  %v725 = vmul.f32 %v652, %v629
  %v726 = vmul.f32 %v657, %v630
  %v727 = vmul.f32 %v662, %v631
  %v728 = vmul.f32 %v667, %v632
  %v729 = vmul.f32 %v672, %v633
  %v730 = vmul.f32 %v677, %v634
  %v731 = vmul.f32 %v682, %v635
  %v732 = vmul.f32 %v687, %v636
  %v733 = vmul.f32 %v692, %v637
  %v734 = vmul.f32 %v697, %v638
  %v735 = vmul.f32 %v702, %v639
  %v736 = vmul.f32 %v707, %v640
  %v737 = vmul.f32 %v712, %v641
  %v738 = vmul.f32 %v717, %v642
  %v739 = vmul.f32 %v722, %v643
  %v740 = vpack.c.bf16 %v502, %v500
  %v741 = vpack.c.bf16 %v506, %v504
  %v742 = vpack.c.bf16 %v510, %v508
  %v743 = vpack.c.bf16 %v514, %v512
  %v744 = vpack.c.bf16 %v518, %v516
  %v745 = vpack.c.bf16 %v522, %v520
  %v746 = vpack.c.bf16 %v526, %v524
  %v747 = vpack.c.bf16 %v530, %v528
  %v748 = vld [vmem:[%s3] sm:$0xf]
  %v749 = vld [vmem:[%s3 + $0x4] sm:$0xf]
  %v750 = vld [vmem:[%s3 + $0x8] sm:$0xf]
  %v751 = vld [vmem:[%s3 + $0xc] sm:$0xf]
  %v752 = vld [vmem:[%s3 + $0x10] sm:$0xf]
  %v753 = vld [vmem:[%s3 + $0x14] sm:$0xf]
  %v754 = vld [vmem:[%s3 + $0x18] sm:$0xf]
  %v755 = vld [vmem:[%s3 + $0x1c] sm:$0xf]
  %v756 = vld [vmem:[%s3 + $0x20] sm:$0xf]
  %v757 = vld [vmem:[%s3 + $0x24] sm:$0xf]
  %v758 = vld [vmem:[%s3 + $0x28] sm:$0xf]
  %v759 = vld [vmem:[%s3 + $0x2c] sm:$0xf]
  %v760 = vld [vmem:[%s3 + $0x30] sm:$0xf]
  %v761 = vld [vmem:[%s3 + $0x34] sm:$0xf]
  %v762 = vld [vmem:[%s3 + $0x38] sm:$0xf]
  %v763 = vld [vmem:[%s3 + $0x3c] sm:$0xf]
  %v780 = vunpack.c.l.b16 %v748
  %v781 = vunpack.c.l.b16 %v749
  %v782 = vunpack.c.l.b16 %v750
  %v783 = vunpack.c.l.b16 %v751
  %v784 = vunpack.c.l.b16 %v752
  %v785 = vunpack.c.l.b16 %v753
  %v786 = vunpack.c.l.b16 %v754
  %v787 = vunpack.c.l.b16 %v755
  %v788 = vunpack.c.l.b16 %v756
  %v789 = vunpack.c.l.b16 %v757
  %v790 = vunpack.c.l.b16 %v758
  %v791 = vunpack.c.l.b16 %v759
  %v792 = vunpack.c.l.b16 %v760
  %v793 = vunpack.c.l.b16 %v761
  %v794 = vunpack.c.l.b16 %v762
  %v795 = vunpack.c.l.b16 %v763
  %v796 = vpack.c.b16 %v781, %v780
  %v797 = vpack.c.b16 %v783, %v782
  %v798 = vpack.c.b16 %v785, %v784
  %v799 = vpack.c.b16 %v787, %v786
  %v800 = vpack.c.b16 %v789, %v788
  %v801 = vpack.c.b16 %v791, %v790
  %v802 = vpack.c.b16 %v793, %v792
  %v803 = vpack.c.b16 %v795, %v794
  %812 = vmatprep.subr.bf16.mxu0 0
  %813 = vmatpush1.bf16.msra.mxu0 %v803
  %814 = vmatprep.subr.bf16.mxu0 0
  %815 = vmatpush1.bf16.msra.mxu0 %v802
  %816 = vmatprep.subr.bf16.mxu0 0
  %817 = vmatpush1.bf16.msra.mxu0 %v801
  %818 = vmatprep.subr.bf16.mxu0 0
  %819 = vmatpush1.bf16.msra.mxu0 %v800
  %820 = vmatprep.subr.bf16.mxu0 0
  %821 = vmatpush1.bf16.msra.mxu0 %v799
  %822 = vmatprep.subr.bf16.mxu0 0
  %823 = vmatpush1.bf16.msra.mxu0 %v798
  %824 = vmatprep.subr.bf16.mxu0 0
  %825 = vmatpush1.bf16.msra.mxu0 %v797
  %826 = vmatprep.subr.bf16.mxu0 0
  %827 = vmatpush1.bf16.msra.mxu0 %v796
  %828 = vmatprep.subr.bf16.mxu0 0
  %829 = vmatpush2.bf16.msra.mxu0 0
  %830 = vmatprep.subr.bf16.mxu0 0
  %831 = vmatpush2.bf16.msra.mxu0 0
  %832 = vmatprep.subr.bf16.mxu0 0
  %833 = vmatpush2.bf16.msra.mxu0 0
  %834 = vmatprep.subr.bf16.mxu0 0
  %835 = vmatpush2.bf16.msra.mxu0 0
  %836 = vmatprep.subr.bf16.mxu0 0
  %837 = vmatpush2.bf16.msra.mxu0 0
  %838 = vmatprep.subr.bf16.mxu0 0
  %839 = vmatpush2.bf16.msra.mxu0 0
  %840 = vmatprep.subr.bf16.mxu0 0
  %841 = vmatpush2.bf16.msra.mxu0 0
  %842 = vmatprep.subr.bf16.mxu0 0
  %843 = vmatpush2.bf16.msra.mxu0 0
  %844 = vmatprep.mubr.bf16.mxu0 0
  %845 = vmatmul.mubr.bf16.gmra.mxu0 %v740
  %v846 = vpop.f32.mrf.mxu0
  %v847 = vadd.f32 0.0, %v846
  %v848 = vpop.f32.mrf.mxu0
  %v849 = vpop.f32.mrf.mxu0
  %v850 = vadd.f32 0.0, %v849
  %v851 = vpop.f32.mrf.mxu0
  %852 = vmatprep.mubr.bf16.mxu0 0
  %853 = vmatmul.mubr.bf16.gmra.mxu0 %v741
  %v854 = vpop.f32.mrf.mxu0
  %v855 = vadd.f32 0.0, %v854
  %v856 = vpop.f32.mrf.mxu0
  %v857 = vpop.f32.mrf.mxu0
  %v858 = vadd.f32 0.0, %v857
  %v859 = vpop.f32.mrf.mxu0
  %860 = vmatprep.mubr.bf16.mxu0 0
  %861 = vmatmul.mubr.bf16.gmra.mxu0 %v742
  %v862 = vpop.f32.mrf.mxu0
  %v863 = vadd.f32 0.0, %v862
  %v864 = vpop.f32.mrf.mxu0
  %v865 = vpop.f32.mrf.mxu0
  %v866 = vadd.f32 0.0, %v865
  %v867 = vpop.f32.mrf.mxu0
  %868 = vmatprep.mubr.bf16.mxu0 0
  %869 = vmatmul.mubr.bf16.gmra.mxu0 %v743
  %v870 = vpop.f32.mrf.mxu0
  %v871 = vadd.f32 0.0, %v870
  %v872 = vpop.f32.mrf.mxu0
  %v873 = vpop.f32.mrf.mxu0
  %v874 = vadd.f32 0.0, %v873
  %v875 = vpop.f32.mrf.mxu0
  %876 = vmatprep.mubr.bf16.mxu0 0
  %877 = vmatmul.mubr.bf16.gmra.mxu0 %v744
  %v878 = vpop.f32.mrf.mxu0
  %v879 = vadd.f32 0.0, %v878
  %v880 = vpop.f32.mrf.mxu0
  %v881 = vpop.f32.mrf.mxu0
  %v882 = vadd.f32 0.0, %v881
  %v883 = vpop.f32.mrf.mxu0
  %884 = vmatprep.mubr.bf16.mxu0 0
  %885 = vmatmul.mubr.bf16.gmra.mxu0 %v745
  %v886 = vpop.f32.mrf.mxu0
  %v887 = vadd.f32 0.0, %v886
  %v888 = vpop.f32.mrf.mxu0
  %v889 = vpop.f32.mrf.mxu0
  %v890 = vadd.f32 0.0, %v889
  %v891 = vpop.f32.mrf.mxu0
  %892 = vmatprep.mubr.bf16.mxu0 0
  %893 = vmatmul.mubr.bf16.gmra.mxu0 %v746
  %v894 = vpop.f32.mrf.mxu0
  %v895 = vadd.f32 0.0, %v894
  %v896 = vpop.f32.mrf.mxu0
  %v897 = vpop.f32.mrf.mxu0
  %v898 = vadd.f32 0.0, %v897
  %v899 = vpop.f32.mrf.mxu0
  %900 = vmatprep.mubr.bf16.mxu0 0
  %901 = vmatmul.mubr.bf16.gmra.mxu0 %v747
  %v902 = vpop.f32.mrf.mxu0
  %v903 = vadd.f32 0.0, %v902
  %v904 = vpop.f32.mrf.mxu0
  %v905 = vpop.f32.mrf.mxu0
  %v906 = vadd.f32 0.0, %v905
  %v907 = vpop.f32.mrf.mxu0
  %908 = vdwg.mxu0
  %v909 = vadd.f32 %v724, %v847
  %v910 = vadd.f32 %v725, %v850
  %v911 = vadd.f32 %v726, %v855
  %v912 = vadd.f32 %v727, %v858
  %v913 = vadd.f32 %v728, %v863
  %v914 = vadd.f32 %v729, %v866
  %v915 = vadd.f32 %v730, %v871
  %v916 = vadd.f32 %v731, %v874
  %v917 = vadd.f32 %v732, %v879
  %v918 = vadd.f32 %v733, %v882
  %v919 = vadd.f32 %v734, %v887
  %v920 = vadd.f32 %v735, %v890
  %v921 = vadd.f32 %v736, %v895
  %v922 = vadd.f32 %v737, %v898
  %v923 = vadd.f32 %v738, %v903
  %v924 = vadd.f32 %v739, %v906
  %925 = vst [vmem:[#allocation4] sm:$0xff] %v909
  %926 = vst [vmem:[#allocation4 + $0x8] sm:$0xff] %v910
  %927 = vst [vmem:[#allocation4 + $0x10] sm:$0xff] %v911
  %928 = vst [vmem:[#allocation4 + $0x18] sm:$0xff] %v912
  %929 = vst [vmem:[#allocation4 + $0x20] sm:$0xff] %v913
  %930 = vst [vmem:[#allocation4 + $0x28] sm:$0xff] %v914
  %931 = vst [vmem:[#allocation4 + $0x30] sm:$0xff] %v915
  %932 = vst [vmem:[#allocation4 + $0x38] sm:$0xff] %v916
  %933 = vst [vmem:[#allocation4 + $0x40] sm:$0xff] %v917
  %934 = vst [vmem:[#allocation4 + $0x48] sm:$0xff] %v918
  %935 = vst [vmem:[#allocation4 + $0x50] sm:$0xff] %v919
  %936 = vst [vmem:[#allocation4 + $0x58] sm:$0xff] %v920
  %937 = vst [vmem:[#allocation4 + $0x60] sm:$0xff] %v921
  %938 = vst [vmem:[#allocation4 + $0x68] sm:$0xff] %v922
  %939 = vst [vmem:[#allocation4 + $0x70] sm:$0xff] %v923
  %940 = vst [vmem:[#allocation4 + $0x78] sm:$0xff] %v924
  %941 = vst.msk [vmem:[#allocation2] sm:$0xff] %vm611, %v339
  %942 = vst.msk [vmem:[#allocation2 + $0x8] sm:$0xff] %vm611, %v340
  %943 = vst.msk [vmem:[#allocation2 + $0x10] sm:$0xff] %vm611, %v341
  %944 = vst.msk [vmem:[#allocation2 + $0x18] sm:$0xff] %vm611, %v342
  %945 = vst.msk [vmem:[#allocation2 + $0x20] sm:$0xff] %vm611, %v343
  %946 = vst.msk [vmem:[#allocation2 + $0x28] sm:$0xff] %vm611, %v344
  %947 = vst.msk [vmem:[#allocation2 + $0x30] sm:$0xff] %vm611, %v345
  %948 = vst.msk [vmem:[#allocation2 + $0x38] sm:$0xff] %vm611, %v346
  %949 = vst.msk [vmem:[#allocation2 + $0x40] sm:$0xff] %vm611, %v347
  %950 = vst.msk [vmem:[#allocation2 + $0x48] sm:$0xff] %vm611, %v348
  %951 = vst.msk [vmem:[#allocation2 + $0x50] sm:$0xff] %vm611, %v349
  %952 = vst.msk [vmem:[#allocation2 + $0x58] sm:$0xff] %vm611, %v350
  %953 = vst.msk [vmem:[#allocation2 + $0x60] sm:$0xff] %vm611, %v351
  %954 = vst.msk [vmem:[#allocation2 + $0x68] sm:$0xff] %vm611, %v352
  %955 = vst.msk [vmem:[#allocation2 + $0x70] sm:$0xff] %vm611, %v353
  %956 = vst.msk [vmem:[#allocation2 + $0x78] sm:$0xff] %vm611, %v354
  // Predicated region
  $region26: #{gat_forward.7} parent=0 // pred_check
    %p957 = pneg %p23
  $region27: #{gat_forward.7} parent=0 // pred_check_branch
    %959 = sbr.rel (%p957) target = $region29
  $region28: #{gat_forward.7} parent=0 // pred_region
    %v960 = vld [vmem:[#allocation4] sm:$0xff]
    %v961 = vld [vmem:[#allocation4 + $0x8] sm:$0xff]
    %v962 = vld [vmem:[#allocation4 + $0x10] sm:$0xff]
    %v963 = vld [vmem:[#allocation4 + $0x18] sm:$0xff]
    %v964 = vld [vmem:[#allocation4 + $0x20] sm:$0xff]
    %v965 = vld [vmem:[#allocation4 + $0x28] sm:$0xff]
    %v966 = vld [vmem:[#allocation4 + $0x30] sm:$0xff]
    %v967 = vld [vmem:[#allocation4 + $0x38] sm:$0xff]
    %v968 = vld [vmem:[#allocation4 + $0x40] sm:$0xff]
    %v969 = vld [vmem:[#allocation4 + $0x48] sm:$0xff]
    %v970 = vld [vmem:[#allocation4 + $0x50] sm:$0xff]
    %v971 = vld [vmem:[#allocation4 + $0x58] sm:$0xff]
    %v972 = vld [vmem:[#allocation4 + $0x60] sm:$0xff]
    %v973 = vld [vmem:[#allocation4 + $0x68] sm:$0xff]
    %v974 = vld [vmem:[#allocation4 + $0x70] sm:$0xff]
    %v975 = vld [vmem:[#allocation4 + $0x78] sm:$0xff]
    %v976 = vld [vmem:[#allocation3] sm:$0xff]
    %v977 = vld [vmem:[#allocation3 + $0x8] sm:$0xff]
    %v978 = vld [vmem:[#allocation3 + $0x10] sm:$0xff]
    %v979 = vld [vmem:[#allocation3 + $0x18] sm:$0xff]
    %v980 = vld [vmem:[#allocation3 + $0x20] sm:$0xff]
    %v981 = vld [vmem:[#allocation3 + $0x28] sm:$0xff]
    %v982 = vld [vmem:[#allocation3 + $0x30] sm:$0xff]
    %v983 = vld [vmem:[#allocation3 + $0x38] sm:$0xff]
    %v984 = vld [vmem:[#allocation3 + $0x40] sm:$0xff]
    %v985 = vld [vmem:[#allocation3 + $0x48] sm:$0xff]
    %v986 = vld [vmem:[#allocation3 + $0x50] sm:$0xff]
    %v987 = vld [vmem:[#allocation3 + $0x58] sm:$0xff]
    %v988 = vld [vmem:[#allocation3 + $0x60] sm:$0xff]
    %v989 = vld [vmem:[#allocation3 + $0x68] sm:$0xff]
    %v990 = vld [vmem:[#allocation3 + $0x70] sm:$0xff]
    %v991 = vld [vmem:[#allocation3 + $0x78] sm:$0xff]
    %v992 = vrcp.pop %v976
    %v993 = vrcp.pop %v977
    %v994 = vrcp.pop %v978
    %v995 = vrcp.pop %v979
    %v996 = vrcp.pop %v980
    %v997 = vrcp.pop %v981
    %v998 = vrcp.pop %v982
    %v999 = vrcp.pop %v983
    %v1000 = vrcp.pop %v984
    %v1001 = vrcp.pop %v985
    %v1002 = vrcp.pop %v986
    %v1003 = vrcp.pop %v987
    %v1004 = vrcp.pop %v988
    %v1005 = vrcp.pop %v989
    %v1006 = vrcp.pop %v990
    %v1007 = vrcp.pop %v991
    %1009 = vset.pattern.permute.xlu0 0
    %1010 = vperm.xlu0 %1009, %v992
    %v1011 = vpop.permute.xlu0 %1010
    %1014 = vset.pattern.permute.xlu0 0
    %1015 = vperm.xlu0 %1014, %v993
    %v1016 = vpop.permute.xlu0 %1015
    %1019 = vset.pattern.permute.xlu0 0
    %1020 = vperm.xlu0 %1019, %v994
    %v1021 = vpop.permute.xlu0 %1020
    %1024 = vset.pattern.permute.xlu0 0
    %1025 = vperm.xlu0 %1024, %v995
    %v1026 = vpop.permute.xlu0 %1025
    %1029 = vset.pattern.permute.xlu0 0
    %1030 = vperm.xlu0 %1029, %v996
    %v1031 = vpop.permute.xlu0 %1030
    %1034 = vset.pattern.permute.xlu0 0
    %1035 = vperm.xlu0 %1034, %v997
    %v1036 = vpop.permute.xlu0 %1035
    %1039 = vset.pattern.permute.xlu0 0
    %1040 = vperm.xlu0 %1039, %v998
    %v1041 = vpop.permute.xlu0 %1040
    %1044 = vset.pattern.permute.xlu0 0
    %1045 = vperm.xlu0 %1044, %v999
    %v1046 = vpop.permute.xlu0 %1045
    %1049 = vset.pattern.permute.xlu0 0
    %1050 = vperm.xlu0 %1049, %v1000
    %v1051 = vpop.permute.xlu0 %1050
    %1054 = vset.pattern.permute.xlu0 0
    %1055 = vperm.xlu0 %1054, %v1001
    %v1056 = vpop.permute.xlu0 %1055
    %1059 = vset.pattern.permute.xlu0 0
    %1060 = vperm.xlu0 %1059, %v1002
    %v1061 = vpop.permute.xlu0 %1060
    %1064 = vset.pattern.permute.xlu0 0
    %1065 = vperm.xlu0 %1064, %v1003
    %v1066 = vpop.permute.xlu0 %1065
    %1069 = vset.pattern.permute.xlu0 0
    %1070 = vperm.xlu0 %1069, %v1004
    %v1071 = vpop.permute.xlu0 %1070
    %1074 = vset.pattern.permute.xlu0 0
    %1075 = vperm.xlu0 %1074, %v1005
    %v1076 = vpop.permute.xlu0 %1075
    %1079 = vset.pattern.permute.xlu0 0
    %1080 = vperm.xlu0 %1079, %v1006
    %v1081 = vpop.permute.xlu0 %1080
    %1084 = vset.pattern.permute.xlu0 0
    %1085 = vperm.xlu0 %1084, %v1007
    %v1086 = vpop.permute.xlu0 %1085
    %v1088 = vmul.f32 %v960, %v1011
    %v1089 = vmul.f32 %v961, %v1016
    %v1090 = vmul.f32 %v962, %v1021
    %v1091 = vmul.f32 %v963, %v1026
    %v1092 = vmul.f32 %v964, %v1031
    %v1093 = vmul.f32 %v965, %v1036
    %v1094 = vmul.f32 %v966, %v1041
    %v1095 = vmul.f32 %v967, %v1046
    %v1096 = vmul.f32 %v968, %v1051
    %v1097 = vmul.f32 %v969, %v1056
    %v1098 = vmul.f32 %v970, %v1061
    %v1099 = vmul.f32 %v971, %v1066
    %v1100 = vmul.f32 %v972, %v1071
    %v1101 = vmul.f32 %v973, %v1076
    %v1102 = vmul.f32 %v974, %v1081
    %v1103 = vmul.f32 %v975, %v1086
    %v1104 = vld [vmem:[%s4] sm:$0x1]
    %v1106 = vlaneseq
    %v1107 = vshrl.u32 %v1106, 7
    %v1108 = vsub.s32 0, %v1107
    %v1109 = vrot.slane %v1104, %v1108
    %v1111 = vadd.f32 %v1088, %v1109
    %v1112 = vadd.f32 %v1089, %v1109
    %v1113 = vadd.f32 %v1090, %v1109
    %v1114 = vadd.f32 %v1091, %v1109
    %v1115 = vadd.f32 %v1092, %v1109
    %v1116 = vadd.f32 %v1093, %v1109
    %v1117 = vadd.f32 %v1094, %v1109
    %v1118 = vadd.f32 %v1095, %v1109
    %v1119 = vadd.f32 %v1096, %v1109
    %v1120 = vadd.f32 %v1097, %v1109
    %v1121 = vadd.f32 %v1098, %v1109
    %v1122 = vadd.f32 %v1099, %v1109
    %v1123 = vadd.f32 %v1100, %v1109
    %v1124 = vadd.f32 %v1101, %v1109
    %v1125 = vadd.f32 %v1102, %v1109
    %v1126 = vadd.f32 %v1103, %v1109
    %1127 = vst [vmem:[%s5] sm:$0xff] %v1111
    %1128 = vst [vmem:[%s5 + $0x8] sm:$0xff] %v1112
    %1129 = vst [vmem:[%s5 + $0x10] sm:$0xff] %v1113
    %1130 = vst [vmem:[%s5 + $0x18] sm:$0xff] %v1114
    %1131 = vst [vmem:[%s5 + $0x20] sm:$0xff] %v1115
    %1132 = vst [vmem:[%s5 + $0x28] sm:$0xff] %v1116
    %1133 = vst [vmem:[%s5 + $0x30] sm:$0xff] %v1117
    %1134 = vst [vmem:[%s5 + $0x38] sm:$0xff] %v1118
    %1135 = vst [vmem:[%s5 + $0x40] sm:$0xff] %v1119
    %1136 = vst [vmem:[%s5 + $0x48] sm:$0xff] %v1120
    %1137 = vst [vmem:[%s5 + $0x50] sm:$0xff] %v1121
    %1138 = vst [vmem:[%s5 + $0x58] sm:$0xff] %v1122
    %1139 = vst [vmem:[%s5 + $0x60] sm:$0xff] %v1123
    %1140 = vst [vmem:[%s5 + $0x68] sm:$0xff] %v1124
    %1141 = vst [vmem:[%s5 + $0x70] sm:$0xff] %v1125
    %1142 = vst [vmem:[%s5 + $0x78] sm:$0xff] %v1126
    %v1143 = vlaneseq
    %v1144 = vand.u32 %v1143, 127
    %vm1145 = vcmp.lt.s32.totalorder %v1144, 4
    %v1146 = vsel %vm1145, %v1111, -1e+30
    %v1147 = vsel %vm1145, %v1112, -1e+30
    %v1148 = vsel %vm1145, %v1113, -1e+30
    %v1149 = vsel %vm1145, %v1114, -1e+30
    %v1150 = vsel %vm1145, %v1115, -1e+30
    %v1151 = vsel %vm1145, %v1116, -1e+30
    %v1152 = vsel %vm1145, %v1117, -1e+30
    %v1153 = vsel %vm1145, %v1118, -1e+30
    %v1154 = vsel %vm1145, %v1119, -1e+30
    %v1155 = vsel %vm1145, %v1120, -1e+30
    %v1156 = vsel %vm1145, %v1121, -1e+30
    %v1157 = vsel %vm1145, %v1122, -1e+30
    %v1158 = vsel %vm1145, %v1123, -1e+30
    %v1159 = vsel %vm1145, %v1124, -1e+30
    %v1160 = vsel %vm1145, %v1125, -1e+30
    %v1161 = vsel %vm1145, %v1126, -1e+30
    %1162 = vmax.xlane.f32.xlu0 %v1146
    %v1163 = vpop.xlane.xlu0 %1162
    %1164 = vmax.xlane.f32.xlu0 %v1147
    %v1165 = vpop.xlane.xlu0 %1164
    %1166 = vmax.xlane.f32.xlu0 %v1148
    %v1167 = vpop.xlane.xlu0 %1166
    %1168 = vmax.xlane.f32.xlu0 %v1149
    %v1169 = vpop.xlane.xlu0 %1168
    %1170 = vmax.xlane.f32.xlu0 %v1150
    %v1171 = vpop.xlane.xlu0 %1170
    %1172 = vmax.xlane.f32.xlu0 %v1151
    %v1173 = vpop.xlane.xlu0 %1172
    %1174 = vmax.xlane.f32.xlu0 %v1152
    %v1175 = vpop.xlane.xlu0 %1174
    %1176 = vmax.xlane.f32.xlu0 %v1153
    %v1177 = vpop.xlane.xlu0 %1176
    %1178 = vmax.xlane.f32.xlu0 %v1154
    %v1179 = vpop.xlane.xlu0 %1178
    %1180 = vmax.xlane.f32.xlu0 %v1155
    %v1181 = vpop.xlane.xlu0 %1180
    %1182 = vmax.xlane.f32.xlu0 %v1156
    %v1183 = vpop.xlane.xlu0 %1182
    %1184 = vmax.xlane.f32.xlu0 %v1157
    %v1185 = vpop.xlane.xlu0 %1184
    %1186 = vmax.xlane.f32.xlu0 %v1158
    %v1187 = vpop.xlane.xlu0 %1186
    %1188 = vmax.xlane.f32.xlu0 %v1159
    %v1189 = vpop.xlane.xlu0 %1188
    %1190 = vmax.xlane.f32.xlu0 %v1160
    %v1191 = vpop.xlane.xlu0 %1190
    %1192 = vmax.xlane.f32.xlu0 %v1161
    %v1193 = vpop.xlane.xlu0 %1192
    %v1194 = vsub.f32 %v1146, %v1163
    %v1195 = vsub.f32 %v1147, %v1165
    %v1196 = vsub.f32 %v1148, %v1167
    %v1197 = vsub.f32 %v1149, %v1169
    %v1198 = vsub.f32 %v1150, %v1171
    %v1199 = vsub.f32 %v1151, %v1173
    %v1200 = vsub.f32 %v1152, %v1175
    %v1201 = vsub.f32 %v1153, %v1177
    %v1202 = vsub.f32 %v1154, %v1179
    %v1203 = vsub.f32 %v1155, %v1181
    %v1204 = vsub.f32 %v1156, %v1183
    %v1205 = vsub.f32 %v1157, %v1185
    %v1206 = vsub.f32 %v1158, %v1187
    %v1207 = vsub.f32 %v1159, %v1189
    %v1208 = vsub.f32 %v1160, %v1191
    %v1209 = vsub.f32 %v1161, %v1193
    %v1210 = vmul.f32 %v1194, 1.442695
    %v1211 = vpow.pop %v1210
    %v1212 = vmul.f32 %v1195, 1.442695
    %v1213 = vpow.pop %v1212
    %v1214 = vmul.f32 %v1196, 1.442695
    %v1215 = vpow.pop %v1214
    %v1216 = vmul.f32 %v1197, 1.442695
    %v1217 = vpow.pop %v1216
    %v1218 = vmul.f32 %v1198, 1.442695
    %v1219 = vpow.pop %v1218
    %v1220 = vmul.f32 %v1199, 1.442695
    %v1221 = vpow.pop %v1220
    %v1222 = vmul.f32 %v1200, 1.442695
    %v1223 = vpow.pop %v1222
    %v1224 = vmul.f32 %v1201, 1.442695
    %v1225 = vpow.pop %v1224
    %v1226 = vmul.f32 %v1202, 1.442695
    %v1227 = vpow.pop %v1226
    %v1228 = vmul.f32 %v1203, 1.442695
    %v1229 = vpow.pop %v1228
    %v1230 = vmul.f32 %v1204, 1.442695
    %v1231 = vpow.pop %v1230
    %v1232 = vmul.f32 %v1205, 1.442695
    %v1233 = vpow.pop %v1232
    %v1234 = vmul.f32 %v1206, 1.442695
    %v1235 = vpow.pop %v1234
    %v1236 = vmul.f32 %v1207, 1.442695
    %v1237 = vpow.pop %v1236
    %v1238 = vmul.f32 %v1208, 1.442695
    %v1239 = vpow.pop %v1238
    %v1240 = vmul.f32 %v1209, 1.442695
    %v1241 = vpow.pop %v1240
    %1242 = vadd.xlane.f32.xlu0 %v1211
    %v1243 = vpop.xlane.xlu0 %1242
    %1244 = vadd.xlane.f32.xlu0 %v1213
    %v1245 = vpop.xlane.xlu0 %1244
    %1246 = vadd.xlane.f32.xlu0 %v1215
    %v1247 = vpop.xlane.xlu0 %1246
    %1248 = vadd.xlane.f32.xlu0 %v1217
    %v1249 = vpop.xlane.xlu0 %1248
    %1250 = vadd.xlane.f32.xlu0 %v1219
    %v1251 = vpop.xlane.xlu0 %1250
    %1252 = vadd.xlane.f32.xlu0 %v1221
    %v1253 = vpop.xlane.xlu0 %1252
    %1254 = vadd.xlane.f32.xlu0 %v1223
    %v1255 = vpop.xlane.xlu0 %1254
    %1256 = vadd.xlane.f32.xlu0 %v1225
    %v1257 = vpop.xlane.xlu0 %1256
    %1258 = vadd.xlane.f32.xlu0 %v1227
    %v1259 = vpop.xlane.xlu0 %1258
    %1260 = vadd.xlane.f32.xlu0 %v1229
    %v1261 = vpop.xlane.xlu0 %1260
    %1262 = vadd.xlane.f32.xlu0 %v1231
    %v1263 = vpop.xlane.xlu0 %1262
    %1264 = vadd.xlane.f32.xlu0 %v1233
    %v1265 = vpop.xlane.xlu0 %1264
    %1266 = vadd.xlane.f32.xlu0 %v1235
    %v1267 = vpop.xlane.xlu0 %1266
    %1268 = vadd.xlane.f32.xlu0 %v1237
    %v1269 = vpop.xlane.xlu0 %1268
    %1270 = vadd.xlane.f32.xlu0 %v1239
    %v1271 = vpop.xlane.xlu0 %1270
    %1272 = vadd.xlane.f32.xlu0 %v1241
    %v1273 = vpop.xlane.xlu0 %1272
    %v1274 = vrcp.pop %v1243
    %v1275 = vmul.f32 %v1211, %v1274
    %v1276 = vrcp.pop %v1245
    %v1277 = vmul.f32 %v1213, %v1276
    %v1278 = vrcp.pop %v1247
    %v1279 = vmul.f32 %v1215, %v1278
    %v1280 = vrcp.pop %v1249
    %v1281 = vmul.f32 %v1217, %v1280
    %v1282 = vrcp.pop %v1251
    %v1283 = vmul.f32 %v1219, %v1282
    %v1284 = vrcp.pop %v1253
    %v1285 = vmul.f32 %v1221, %v1284
    %v1286 = vrcp.pop %v1255
    %v1287 = vmul.f32 %v1223, %v1286
    %v1288 = vrcp.pop %v1257
    %v1289 = vmul.f32 %v1225, %v1288
    %v1290 = vrcp.pop %v1259
    %v1291 = vmul.f32 %v1227, %v1290
    %v1292 = vrcp.pop %v1261
    %v1293 = vmul.f32 %v1229, %v1292
    %v1294 = vrcp.pop %v1263
    %v1295 = vmul.f32 %v1231, %v1294
    %v1296 = vrcp.pop %v1265
    %v1297 = vmul.f32 %v1233, %v1296
    %v1298 = vrcp.pop %v1267
    %v1299 = vmul.f32 %v1235, %v1298
    %v1300 = vrcp.pop %v1269
    %v1301 = vmul.f32 %v1237, %v1300
    %v1302 = vrcp.pop %v1271
    %v1303 = vmul.f32 %v1239, %v1302
    %v1304 = vrcp.pop %v1273
    %v1305 = vmul.f32 %v1241, %v1304
    %1306 = vst [vmem:[%s6] sm:$0xff] %v1275
    %1307 = vst [vmem:[%s6 + $0x8] sm:$0xff] %v1277
    %1308 = vst [vmem:[%s6 + $0x10] sm:$0xff] %v1279
    %1309 = vst [vmem:[%s6 + $0x18] sm:$0xff] %v1281
    %1310 = vst [vmem:[%s6 + $0x20] sm:$0xff] %v1283
    %1311 = vst [vmem:[%s6 + $0x28] sm:$0xff] %v1285
    %1312 = vst [vmem:[%s6 + $0x30] sm:$0xff] %v1287
    %1313 = vst [vmem:[%s6 + $0x38] sm:$0xff] %v1289
    %1314 = vst [vmem:[%s6 + $0x40] sm:$0xff] %v1291
    %1315 = vst [vmem:[%s6 + $0x48] sm:$0xff] %v1293
    %1316 = vst [vmem:[%s6 + $0x50] sm:$0xff] %v1295
    %1317 = vst [vmem:[%s6 + $0x58] sm:$0xff] %v1297
    %1318 = vst [vmem:[%s6 + $0x60] sm:$0xff] %v1299
    %1319 = vst [vmem:[%s6 + $0x68] sm:$0xff] %v1301
    %1320 = vst [vmem:[%s6 + $0x70] sm:$0xff] %v1303
    %1321 = vst [vmem:[%s6 + $0x78] sm:$0xff] %v1305
  $region29: #{gat_forward.7} parent=0 // pred_fallthru
    _
  // Predicated region
  $region30: #{gat_forward.7} parent=0 // pred_check
    _
  $region31: #{gat_forward.7} parent=0 // pred_check_branch
    %1323 = sbr.rel (0) target = $region33
  $region32: #{gat_forward.7} parent=0 // pred_region
    _
  $region33: #{gat_forward.7} parent=0 // pred_fallthru
    _
  // Predicated region
  $region34: #{gat_forward.7} parent=0 // pred_check
    _
  $region35: #{gat_forward.7} parent=0 // pred_check_branch
    %1325 = sbr.rel (0) target = $region37
  $region36: #{gat_forward.7} parent=0 // pred_region
    _
  $region37: #{gat_forward.7} parent=0 // pred_fallthru
    _
  // Predicated region
  $region38: #{gat_forward.7} parent=0 // pred_check
    _
  $region39: #{gat_forward.7} parent=0 // pred_check_branch
    %1327 = sbr.rel (0) target = $region41
  $region40: #{gat_forward.7} parent=0 // pred_region
    _
  $region41: #{gat_forward.7} parent=0 // pred_fallthru
    _
  // Predicated region
  $region42: #{gat_forward.7} parent=0 // pred_check
    _
  $region43: #{gat_forward.7} parent=0 // pred_check_branch
    %1329 = sbr.rel (0) target = $region45
  $region44: #{gat_forward.7} parent=0 // pred_region
    _
  $region45: #{gat_forward.7} parent=0 // pred_fallthru
    _

</llo_original>
